<compile_context>
chip_gen: v6e
topology: v6e:2x2x1
jax: 0.10.0
libtpu: 0.0.40
codegen_flags: <defaults>
</compile_context>

<pallas_src>
import functools
import math

import jax
import jax.numpy as jnp
from jax.experimental import pallas as pl
from jax.experimental.pallas import tpu as pltpu


def _layer_norm(h, g, b, eps=1e-5):
    mu = jnp.mean(h, axis=-1, keepdims=True)
    xc = h - mu
    var = jnp.mean(xc * xc, axis=-1, keepdims=True)
    return xc * jax.lax.rsqrt(var + eps) * g + b


def _gelu_tanh(x):
    # TODO(synk): PyTorch F.gelu default is the exact erf form; the tanh
    # approximation (max abs err ~3e-4) is used because tanh is guaranteed to
    # lower on Mosaic (EUP slot).
    c = 0.7978845608028654  # sqrt(2/pi)
    return 0.5 * x * (1.0 + jnp.tanh(c * (x + 0.044715 * x * x * x)))


def transformer_block_kernel(
    x_ref, cond_ref, ln_g_ref, ln_b_ref,
    wqkv1_ref, wo1_ref, bo1_ref,
    wq2_ref, wkv2_ref, wo2_ref, bo2_ref,
    wff1_ref, bff1_ref, wff2_ref, bff2_ref,
    o_ref, *, n_heads, d_head):
    scale = 1.0 / math.sqrt(d_head)
    d_attn = n_heads * d_head

    def mha(q, k, v):
        # q: (Nq, A), k/v: (Nk, A). Static unroll over heads; static lane
        # slices + concat (no reshapes/transposes of Refs).
        outs = []
        for h in range(n_heads):
            lo, hi = h * d_head, (h + 1) * d_head
            qh, kh, vh = q[:, lo:hi], k[:, lo:hi], v[:, lo:hi]
            s = jax.lax.dot_general(
                qh, kh, (((1,), (1,)), ((), ())),
                preferred_element_type=jnp.float32) * scale
            s = s - jnp.max(s, axis=-1, keepdims=True)
            e = jnp.exp(s)
            p = e / jnp.sum(e, axis=-1, keepdims=True)
            outs.append(jnp.dot(p, vh, preferred_element_type=jnp.float32))
        return jnp.concatenate(outs, axis=-1)

    x = x_ref[0].astype(jnp.float32)        # (N, D)
    cond = cond_ref[0].astype(jnp.float32)  # (Nc, Dc)
    ln_g = ln_g_ref[...]                    # (3, D)
    ln_b = ln_b_ref[...]                    # (3, D)

    # ---- attn1: self-attention ----
    h = _layer_norm(x, ln_g[0:1, :], ln_b[0:1, :])
    qkv = jnp.dot(h, wqkv1_ref[...], preferred_element_type=jnp.float32)
    q = qkv[:, :d_attn]
    k = qkv[:, d_attn:2 * d_attn]
    v = qkv[:, 2 * d_attn:]
    a = mha(q, k, v)
    x = x + jnp.dot(a, wo1_ref[...],
                    preferred_element_type=jnp.float32) + bo1_ref[...]

    # ---- attn2: cross-attention with cond ----
    h = _layer_norm(x, ln_g[1:2, :], ln_b[1:2, :])
    q = jnp.dot(h, wq2_ref[...], preferred_element_type=jnp.float32)
    kv = jnp.dot(cond, wkv2_ref[...], preferred_element_type=jnp.float32)
    k = kv[:, :d_attn]
    v = kv[:, d_attn:]
    a = mha(q, k, v)
    x = x + jnp.dot(a, wo2_ref[...],
                    preferred_element_type=jnp.float32) + bo2_ref[...]

    # ---- GeGLU feed-forward ----
    h = _layer_norm(x, ln_g[2:3, :], ln_b[2:3, :])
    pg = jnp.dot(h, wff1_ref[...],
                 preferred_element_type=jnp.float32) + bff1_ref[...]
    d_ff = wff2_ref.shape[0]
    hh = pg[:, :d_ff] * _gelu_tanh(pg[:, d_ff:])
    x = x + jnp.dot(hh, wff2_ref[...],
                    preferred_element_type=jnp.float32) + bff2_ref[...]

    o_ref[0] = x.astype(o_ref.dtype)


def basic_transformer_block(x, cond, params, *, n_heads, d_head):
    """x: (B, N, d_model); cond: (B, n_cond, d_cond); params: dict of arrays."""
    bsz, seq, d_model = x.shape
    _, n_cond, d_cond = cond.shape

    ordered = [
        params["ln_g"], params["ln_b"],
        params["wqkv1"], params["wo1"], params["bo1"],
        params["wq2"], params["wkv2"], params["wo2"], params["bo2"],
        params["wff1"], params["bff1"], params["wff2"], params["bff2"],
    ]
    weight_specs = [
        pl.BlockSpec(w.shape, lambda i, _nd=w.ndim: (0,) * _nd) for w in ordered
    ]

    kernel = functools.partial(
        transformer_block_kernel, n_heads=n_heads, d_head=d_head)

    return pl.pallas_call(
        kernel,
        out_shape=jax.ShapeDtypeStruct((bsz, seq, d_model), x.dtype),
        grid=(bsz,),
        in_specs=[
            pl.BlockSpec((1, seq, d_model), lambda i: (i, 0, 0)),
            pl.BlockSpec((1, n_cond, d_cond), lambda i: (i, 0, 0)),
        ] + weight_specs,
        out_specs=pl.BlockSpec((1, seq, d_model), lambda i: (i, 0, 0)),
        compiler_params=pltpu.CompilerParams(
            dimension_semantics=("parallel",)),
    )(x, cond, *ordered)


def reference_block(x, cond, params, *, n_heads, d_head):
    """Pure-JAX reference matching the PyTorch forward (f32, exact-erf GELU)."""
    scale = 1.0 / math.sqrt(d_head)
    d_attn = n_heads * d_head

    def ln(h, g, b):
        mu = h.mean(-1, keepdims=True)
        var = ((h - mu) ** 2).mean(-1, keepdims=True)
        return (h - mu) / jnp.sqrt(var + 1e-5) * g + b

    def attn(h, ctx, wq, wk, wv, wo, bo):
        q = h @ wq
        k = ctx @ wk
        v = ctx @ wv
        b_, nq, _ = q.shape
        nk = k.shape[1]
        q = q.reshape(b_, nq, n_heads, d_head)
        k = k.reshape(b_, nk, n_heads, d_head)
        v = v.reshape(b_, nk, n_heads, d_head)
        s = jnp.einsum("bihd,bjhd->bhij", q, k) * scale
        p = jax.nn.softmax(s, axis=-1)
        o = jnp.einsum("bhij,bjhd->bihd", p, v).reshape(b_, nq, d_attn)
        return o @ wo + bo

    wq1 = params["wqkv1"][:, :d_attn]
    wk1 = params["wqkv1"][:, d_attn:2 * d_attn]
    wv1 = params["wqkv1"][:, 2 * d_attn:]
    wk2 = params["wkv2"][:, :d_attn]
    wv2 = params["wkv2"][:, d_attn:]
    g1, g2, g3 = params["ln_g"]
    b1, b2, b3 = params["ln_b"]

    h = ln(x, g1, b1)
    x = x + attn(h, h, wq1, wk1, wv1, params["wo1"], params["bo1"])
    h = ln(x, g2, b2)
    x = x + attn(h, cond, params["wq2"], wk2, wv2, params["wo2"], params["bo2"])
    h = ln(x, g3, b3)
    pg = h @ params["wff1"] + params["bff1"]
    d_ff = params["wff2"].shape[0]
    hh = pg[..., :d_ff] * jax.nn.gelu(pg[..., d_ff:], approximate=False)
    x = x + hh @ params["wff2"] + params["bff2"]
    return x


if __name__ == "__main__":
    batch, seq, d_model = 2, 16, 32
    n_heads, d_head = 4, 8
    n_cond, d_cond = 8, 16
    d_attn = n_heads * d_head
    d_ff = 4 * d_model

    key = jax.random.PRNGKey(0)
    keys = jax.random.split(key, 16)

    def rnd(k, shape, s=0.1):
        return s * jax.random.normal(k, shape, dtype=jnp.float32)

    x = jax.random.normal(keys[0], (batch, seq, d_model), dtype=jnp.float32)
    cond = jax.random.normal(keys[1], (batch, n_cond, d_cond), dtype=jnp.float32)

    params = dict(
        ln_g=1.0 + rnd(keys[2], (3, d_model)),
        ln_b=rnd(keys[3], (3, d_model)),
        wqkv1=rnd(keys[4], (d_model, 3 * d_attn)),
        wo1=rnd(keys[5], (d_attn, d_model)),
        bo1=rnd(keys[6], (1, d_model)),
        wq2=rnd(keys[7], (d_model, d_attn)),
        wkv2=rnd(keys[8], (d_cond, 2 * d_attn)),
        wo2=rnd(keys[9], (d_attn, d_model)),
        bo2=rnd(keys[10], (1, d_model)),
        wff1=rnd(keys[11], (d_model, 2 * d_ff)),
        bff1=rnd(keys[12], (1, 2 * d_ff)),
        wff2=rnd(keys[13], (d_ff, d_model)),
        bff2=rnd(keys[14], (1, d_model)),
    )

    out = basic_transformer_block(x, cond, params, n_heads=n_heads, d_head=d_head)
    out = jax.block_until_ready(out)

    ref = reference_block(x, cond, params, n_heads=n_heads, d_head=d_head)
    assert out.shape == (batch, seq, d_model)
    assert jnp.allclose(out, ref, atol=2e-2, rtol=2e-2), \
        float(jnp.max(jnp.abs(out - ref)))

    print("KERNEL_OK")
</pallas_src>

<mosaic_0001>
module attributes {stable_mosaic.version = 11 : i64} {
  func.func @transformer_block_kernel(%arg0: i32, %arg1: memref<1x16x32xf32, #tpu.memory_space<vmem>>, %arg2: memref<1x8x16xf32, #tpu.memory_space<vmem>>, %arg3: memref<3x32xf32, #tpu.memory_space<vmem>>, %arg4: memref<3x32xf32, #tpu.memory_space<vmem>>, %arg5: memref<32x96xf32, #tpu.memory_space<vmem>>, %arg6: memref<32x32xf32, #tpu.memory_space<vmem>>, %arg7: memref<1x32xf32, #tpu.memory_space<vmem>>, %arg8: memref<32x32xf32, #tpu.memory_space<vmem>>, %arg9: memref<16x64xf32, #tpu.memory_space<vmem>>, %arg10: memref<32x32xf32, #tpu.memory_space<vmem>>, %arg11: memref<1x32xf32, #tpu.memory_space<vmem>>, %arg12: memref<32x256xf32, #tpu.memory_space<vmem>>, %arg13: memref<1x256xf32, #tpu.memory_space<vmem>>, %arg14: memref<128x32xf32, #tpu.memory_space<vmem>>, %arg15: memref<1x32xf32, #tpu.memory_space<vmem>>, %arg16: memref<1x16x32xf32, #tpu.memory_space<vmem>>) attributes {dimension_semantics = [#tpu.dimension_semantics<parallel>], iteration_bounds = array<i64: 2>, scalar_prefetch = 0 : i64, scratch_operands = 0 : i64, tpu.core_type = #tpu.core_type<tc>, window_params = [{transform_indices = @transform_0, window_bounds = array<i64: 1, 16, 32>}, {transform_indices = @transform_1, window_bounds = array<i64: 1, 8, 16>}, {pipeline_mode = #tpu.pipeline_mode<synchronous>, transform_indices = @transform_2, window_bounds = array<i64: 3, 32>}, {pipeline_mode = #tpu.pipeline_mode<synchronous>, transform_indices = @transform_3, window_bounds = array<i64: 3, 32>}, {pipeline_mode = #tpu.pipeline_mode<synchronous>, transform_indices = @transform_4, window_bounds = array<i64: 32, 96>}, {pipeline_mode = #tpu.pipeline_mode<synchronous>, transform_indices = @transform_5, window_bounds = array<i64: 32, 32>}, {pipeline_mode = #tpu.pipeline_mode<synchronous>, transform_indices = @transform_6, window_bounds = array<i64: 1, 32>}, {pipeline_mode = #tpu.pipeline_mode<synchronous>, transform_indices = @transform_7, window_bounds = array<i64: 32, 32>}, {pipeline_mode = #tpu.pipeline_mode<synchronous>, transform_indices = @transform_8, window_bounds = array<i64: 16, 64>}, {pipeline_mode = #tpu.pipeline_mode<synchronous>, transform_indices = @transform_9, window_bounds = array<i64: 32, 32>}, {pipeline_mode = #tpu.pipeline_mode<synchronous>, transform_indices = @transform_10, window_bounds = array<i64: 1, 32>}, {pipeline_mode = #tpu.pipeline_mode<synchronous>, transform_indices = @transform_11, window_bounds = array<i64: 32, 256>}, {pipeline_mode = #tpu.pipeline_mode<synchronous>, transform_indices = @transform_12, window_bounds = array<i64: 1, 256>}, {pipeline_mode = #tpu.pipeline_mode<synchronous>, transform_indices = @transform_13, window_bounds = array<i64: 128, 32>}, {pipeline_mode = #tpu.pipeline_mode<synchronous>, transform_indices = @transform_14, window_bounds = array<i64: 1, 32>}, {transform_indices = @transform_15, window_bounds = array<i64: 1, 16, 32>}]} {
    %c0 = arith.constant 0 : index
    %c0_0 = arith.constant 0 : index
    %c0_1 = arith.constant 0 : index
    %0 = vector.load %arg1[%c0, %c0_0, %c0_1] : memref<1x16x32xf32, #tpu.memory_space<vmem>>, vector<1x16x32xf32>
    %1 = vector.shape_cast %0 : vector<1x16x32xf32> to vector<16x32xf32>
    %c0_2 = arith.constant 0 : index
    %c0_3 = arith.constant 0 : index
    %c0_4 = arith.constant 0 : index
    %2 = vector.load %arg2[%c0_2, %c0_3, %c0_4] : memref<1x8x16xf32, #tpu.memory_space<vmem>>, vector<1x8x16xf32>
    %3 = vector.shape_cast %2 : vector<1x8x16xf32> to vector<8x16xf32>
    %c0_5 = arith.constant 0 : index
    %c0_6 = arith.constant 0 : index
    %4 = vector.load %arg3[%c0_5, %c0_6] : memref<3x32xf32, #tpu.memory_space<vmem>>, vector<3x32xf32>
    %c0_7 = arith.constant 0 : index
    %c0_8 = arith.constant 0 : index
    %5 = vector.load %arg4[%c0_7, %c0_8] : memref<3x32xf32, #tpu.memory_space<vmem>>, vector<3x32xf32>
    %6 = vector.extract_strided_slice %4 {offsets = [0, 0], sizes = [1, 32], strides = [1, 1]} : vector<3x32xf32> to vector<1x32xf32>
    %7 = vector.extract_strided_slice %5 {offsets = [0, 0], sizes = [1, 32], strides = [1, 1]} : vector<3x32xf32> to vector<1x32xf32>
    %cst = arith.constant dense<0.000000e+00> : vector<16xf32>
    %8 = vector.multi_reduction <add>, %1, %cst [1] : vector<16x32xf32> to vector<16xf32>
    %9 = vector.shape_cast %8 : vector<16xf32> to vector<16x1xf32>
    %cst_9 = arith.constant 3.200000e+01 : f32
    %10 = vector.broadcast %cst_9 : f32 to vector<16x1xf32>
    %11 = arith.divf %9, %10 : vector<16x1xf32>
    %12 = vector.broadcast %11 : vector<16x1xf32> to vector<16x32xf32>
    %13 = arith.subf %1, %12 : vector<16x32xf32>
    %14 = arith.mulf %13, %13 : vector<16x32xf32>
    %cst_10 = arith.constant dense<0.000000e+00> : vector<16xf32>
    %15 = vector.multi_reduction <add>, %14, %cst_10 [1] : vector<16x32xf32> to vector<16xf32>
    %16 = vector.shape_cast %15 : vector<16xf32> to vector<16x1xf32>
    %cst_11 = arith.constant 3.200000e+01 : f32
    %17 = vector.broadcast %cst_11 : f32 to vector<16x1xf32>
    %18 = arith.divf %16, %17 : vector<16x1xf32>
    %cst_12 = arith.constant 9.99999974E-6 : f32
    %19 = vector.broadcast %cst_12 : f32 to vector<16x1xf32>
    %20 = arith.addf %18, %19 : vector<16x1xf32>
    %21 = math.rsqrt %20 : vector<16x1xf32>
    %22 = vector.broadcast %21 : vector<16x1xf32> to vector<16x32xf32>
    %23 = arith.mulf %13, %22 : vector<16x32xf32>
    %24 = vector.broadcast %6 : vector<1x32xf32> to vector<16x32xf32>
    %25 = arith.mulf %23, %24 : vector<16x32xf32>
    %26 = vector.broadcast %7 : vector<1x32xf32> to vector<16x32xf32>
    %27 = arith.addf %25, %26 : vector<16x32xf32>
    %c0_13 = arith.constant 0 : index
    %c0_14 = arith.constant 0 : index
    %28 = vector.load %arg5[%c0_13, %c0_14] : memref<32x96xf32, #tpu.memory_space<vmem>>, vector<32x96xf32>
    %cst_15 = arith.constant dense<0.000000e+00> : vector<16x96xf32>
    %29 = tpu.matmul %27, %28, %cst_15 {dimension_numbers = #tpu.dot_dimension_numbers<[1], [0], [0], [1], [0, 0, 1, 1], [], []>} : vector<16x32xf32>, vector<32x96xf32>, vector<16x96xf32> -> vector<16x96xf32>
    %30 = vector.extract_strided_slice %29 {offsets = [0, 0], sizes = [16, 32], strides = [1, 1]} : vector<16x96xf32> to vector<16x32xf32>
    %31 = vector.extract_strided_slice %29 {offsets = [0, 32], sizes = [16, 32], strides = [1, 1]} : vector<16x96xf32> to vector<16x32xf32>
    %32 = vector.extract_strided_slice %29 {offsets = [0, 64], sizes = [16, 32], strides = [1, 1]} : vector<16x96xf32> to vector<16x32xf32>
    %33 = vector.extract_strided_slice %30 {offsets = [0, 0], sizes = [16, 8], strides = [1, 1]} : vector<16x32xf32> to vector<16x8xf32>
    %34 = vector.extract_strided_slice %31 {offsets = [0, 0], sizes = [16, 8], strides = [1, 1]} : vector<16x32xf32> to vector<16x8xf32>
    %35 = vector.extract_strided_slice %32 {offsets = [0, 0], sizes = [16, 8], strides = [1, 1]} : vector<16x32xf32> to vector<16x8xf32>
    %cst_16 = arith.constant dense<0.000000e+00> : vector<16x16xf32>
    %36 = tpu.matmul %33, %34, %cst_16 {dimension_numbers = #tpu.dot_dimension_numbers<[1], [1], [0], [0], [0, 0, 1, 0], [], []>} : vector<16x8xf32>, vector<16x8xf32>, vector<16x16xf32> -> vector<16x16xf32>
    %cst_17 = arith.constant 0.353553385 : f32
    %37 = vector.broadcast %cst_17 : f32 to vector<16x16xf32>
    %38 = arith.mulf %36, %37 : vector<16x16xf32>
    %cst_18 = arith.constant dense<0xFF800000> : vector<16xf32>
    %39 = vector.multi_reduction <maximumf>, %38, %cst_18 [1] : vector<16x16xf32> to vector<16xf32>
    %40 = vector.shape_cast %39 : vector<16xf32> to vector<16x1xf32>
    %41 = vector.broadcast %40 : vector<16x1xf32> to vector<16x16xf32>
    %42 = arith.subf %38, %41 : vector<16x16xf32>
    %43 = math.exp %42 : vector<16x16xf32>
    %cst_19 = arith.constant dense<0.000000e+00> : vector<16xf32>
    %44 = vector.multi_reduction <add>, %43, %cst_19 [1] : vector<16x16xf32> to vector<16xf32>
    %45 = vector.shape_cast %44 : vector<16xf32> to vector<16x1xf32>
    %46 = vector.broadcast %45 : vector<16x1xf32> to vector<16x16xf32>
    %47 = arith.divf %43, %46 : vector<16x16xf32>
    %cst_20 = arith.constant dense<0.000000e+00> : vector<16x8xf32>
    %48 = tpu.matmul %47, %35, %cst_20 {dimension_numbers = #tpu.dot_dimension_numbers<[1], [0], [0], [1], [0, 0, 1, 1], [], []>} : vector<16x16xf32>, vector<16x8xf32>, vector<16x8xf32> -> vector<16x8xf32>
    %49 = vector.extract_strided_slice %30 {offsets = [0, 8], sizes = [16, 8], strides = [1, 1]} : vector<16x32xf32> to vector<16x8xf32>
    %50 = vector.extract_strided_slice %31 {offsets = [0, 8], sizes = [16, 8], strides = [1, 1]} : vector<16x32xf32> to vector<16x8xf32>
    %51 = vector.extract_strided_slice %32 {offsets = [0, 8], sizes = [16, 8], strides = [1, 1]} : vector<16x32xf32> to vector<16x8xf32>
    %cst_21 = arith.constant dense<0.000000e+00> : vector<16x16xf32>
    %52 = tpu.matmul %49, %50, %cst_21 {dimension_numbers = #tpu.dot_dimension_numbers<[1], [1], [0], [0], [0, 0, 1, 0], [], []>} : vector<16x8xf32>, vector<16x8xf32>, vector<16x16xf32> -> vector<16x16xf32>
    %cst_22 = arith.constant 0.353553385 : f32
    %53 = vector.broadcast %cst_22 : f32 to vector<16x16xf32>
    %54 = arith.mulf %52, %53 : vector<16x16xf32>
    %cst_23 = arith.constant dense<0xFF800000> : vector<16xf32>
    %55 = vector.multi_reduction <maximumf>, %54, %cst_23 [1] : vector<16x16xf32> to vector<16xf32>
    %56 = vector.shape_cast %55 : vector<16xf32> to vector<16x1xf32>
    %57 = vector.broadcast %56 : vector<16x1xf32> to vector<16x16xf32>
    %58 = arith.subf %54, %57 : vector<16x16xf32>
    %59 = math.exp %58 : vector<16x16xf32>
    %cst_24 = arith.constant dense<0.000000e+00> : vector<16xf32>
    %60 = vector.multi_reduction <add>, %59, %cst_24 [1] : vector<16x16xf32> to vector<16xf32>
    %61 = vector.shape_cast %60 : vector<16xf32> to vector<16x1xf32>
    %62 = vector.broadcast %61 : vector<16x1xf32> to vector<16x16xf32>
    %63 = arith.divf %59, %62 : vector<16x16xf32>
    %cst_25 = arith.constant dense<0.000000e+00> : vector<16x8xf32>
    %64 = tpu.matmul %63, %51, %cst_25 {dimension_numbers = #tpu.dot_dimension_numbers<[1], [0], [0], [1], [0, 0, 1, 1], [], []>} : vector<16x16xf32>, vector<16x8xf32>, vector<16x8xf32> -> vector<16x8xf32>
    %65 = vector.extract_strided_slice %30 {offsets = [0, 16], sizes = [16, 8], strides = [1, 1]} : vector<16x32xf32> to vector<16x8xf32>
    %66 = vector.extract_strided_slice %31 {offsets = [0, 16], sizes = [16, 8], strides = [1, 1]} : vector<16x32xf32> to vector<16x8xf32>
    %67 = vector.extract_strided_slice %32 {offsets = [0, 16], sizes = [16, 8], strides = [1, 1]} : vector<16x32xf32> to vector<16x8xf32>
    %cst_26 = arith.constant dense<0.000000e+00> : vector<16x16xf32>
    %68 = tpu.matmul %65, %66, %cst_26 {dimension_numbers = #tpu.dot_dimension_numbers<[1], [1], [0], [0], [0, 0, 1, 0], [], []>} : vector<16x8xf32>, vector<16x8xf32>, vector<16x16xf32> -> vector<16x16xf32>
    %cst_27 = arith.constant 0.353553385 : f32
    %69 = vector.broadcast %cst_27 : f32 to vector<16x16xf32>
    %70 = arith.mulf %68, %69 : vector<16x16xf32>
    %cst_28 = arith.constant dense<0xFF800000> : vector<16xf32>
    %71 = vector.multi_reduction <maximumf>, %70, %cst_28 [1] : vector<16x16xf32> to vector<16xf32>
    %72 = vector.shape_cast %71 : vector<16xf32> to vector<16x1xf32>
    %73 = vector.broadcast %72 : vector<16x1xf32> to vector<16x16xf32>
    %74 = arith.subf %70, %73 : vector<16x16xf32>
    %75 = math.exp %74 : vector<16x16xf32>
    %cst_29 = arith.constant dense<0.000000e+00> : vector<16xf32>
    %76 = vector.multi_reduction <add>, %75, %cst_29 [1] : vector<16x16xf32> to vector<16xf32>
    %77 = vector.shape_cast %76 : vector<16xf32> to vector<16x1xf32>
    %78 = vector.broadcast %77 : vector<16x1xf32> to vector<16x16xf32>
    %79 = arith.divf %75, %78 : vector<16x16xf32>
    %cst_30 = arith.constant dense<0.000000e+00> : vector<16x8xf32>
    %80 = tpu.matmul %79, %67, %cst_30 {dimension_numbers = #tpu.dot_dimension_numbers<[1], [0], [0], [1], [0, 0, 1, 1], [], []>} : vector<16x16xf32>, vector<16x8xf32>, vector<16x8xf32> -> vector<16x8xf32>
    %81 = vector.extract_strided_slice %30 {offsets = [0, 24], sizes = [16, 8], strides = [1, 1]} : vector<16x32xf32> to vector<16x8xf32>
    %82 = vector.extract_strided_slice %31 {offsets = [0, 24], sizes = [16, 8], strides = [1, 1]} : vector<16x32xf32> to vector<16x8xf32>
    %83 = vector.extract_strided_slice %32 {offsets = [0, 24], sizes = [16, 8], strides = [1, 1]} : vector<16x32xf32> to vector<16x8xf32>
    %cst_31 = arith.constant dense<0.000000e+00> : vector<16x16xf32>
    %84 = tpu.matmul %81, %82, %cst_31 {dimension_numbers = #tpu.dot_dimension_numbers<[1], [1], [0], [0], [0, 0, 1, 0], [], []>} : vector<16x8xf32>, vector<16x8xf32>, vector<16x16xf32> -> vector<16x16xf32>
    %cst_32 = arith.constant 0.353553385 : f32
    %85 = vector.broadcast %cst_32 : f32 to vector<16x16xf32>
    %86 = arith.mulf %84, %85 : vector<16x16xf32>
    %cst_33 = arith.constant dense<0xFF800000> : vector<16xf32>
    %87 = vector.multi_reduction <maximumf>, %86, %cst_33 [1] : vector<16x16xf32> to vector<16xf32>
    %88 = vector.shape_cast %87 : vector<16xf32> to vector<16x1xf32>
    %89 = vector.broadcast %88 : vector<16x1xf32> to vector<16x16xf32>
    %90 = arith.subf %86, %89 : vector<16x16xf32>
    %91 = math.exp %90 : vector<16x16xf32>
    %cst_34 = arith.constant dense<0.000000e+00> : vector<16xf32>
    %92 = vector.multi_reduction <add>, %91, %cst_34 [1] : vector<16x16xf32> to vector<16xf32>
    %93 = vector.shape_cast %92 : vector<16xf32> to vector<16x1xf32>
    %94 = vector.broadcast %93 : vector<16x1xf32> to vector<16x16xf32>
    %95 = arith.divf %91, %94 : vector<16x16xf32>
    %cst_35 = arith.constant dense<0.000000e+00> : vector<16x8xf32>
    %96 = tpu.matmul %95, %83, %cst_35 {dimension_numbers = #tpu.dot_dimension_numbers<[1], [0], [0], [1], [0, 0, 1, 1], [], []>} : vector<16x16xf32>, vector<16x8xf32>, vector<16x8xf32> -> vector<16x8xf32>
    %97 = tpu.concatenate %48, %64, %80, %96 in 1 : vector<16x8xf32>, vector<16x8xf32>, vector<16x8xf32>, vector<16x8xf32> -> vector<16x32xf32>
    %c0_36 = arith.constant 0 : index
    %c0_37 = arith.constant 0 : index
    %98 = vector.load %arg6[%c0_36, %c0_37] : memref<32x32xf32, #tpu.memory_space<vmem>>, vector<32x32xf32>
    %cst_38 = arith.constant dense<0.000000e+00> : vector<16x32xf32>
    %99 = tpu.matmul %97, %98, %cst_38 {dimension_numbers = #tpu.dot_dimension_numbers<[1], [0], [0], [1], [0, 0, 1, 1], [], []>} : vector<16x32xf32>, vector<32x32xf32>, vector<16x32xf32> -> vector<16x32xf32>
    %100 = arith.addf %1, %99 : vector<16x32xf32>
    %c0_39 = arith.constant 0 : index
    %c0_40 = arith.constant 0 : index
    %101 = vector.load %arg7[%c0_39, %c0_40] : memref<1x32xf32, #tpu.memory_space<vmem>>, vector<1x32xf32>
    %102 = vector.broadcast %101 : vector<1x32xf32> to vector<16x32xf32>
    %103 = arith.addf %100, %102 : vector<16x32xf32>
    %104 = vector.extract_strided_slice %4 {offsets = [1, 0], sizes = [1, 32], strides = [1, 1]} : vector<3x32xf32> to vector<1x32xf32>
    %105 = vector.extract_strided_slice %5 {offsets = [1, 0], sizes = [1, 32], strides = [1, 1]} : vector<3x32xf32> to vector<1x32xf32>
    %cst_41 = arith.constant dense<0.000000e+00> : vector<16xf32>
    %106 = vector.multi_reduction <add>, %103, %cst_41 [1] : vector<16x32xf32> to vector<16xf32>
    %107 = vector.shape_cast %106 : vector<16xf32> to vector<16x1xf32>
    %cst_42 = arith.constant 3.200000e+01 : f32
    %108 = vector.broadcast %cst_42 : f32 to vector<16x1xf32>
    %109 = arith.divf %107, %108 : vector<16x1xf32>
    %110 = vector.broadcast %109 : vector<16x1xf32> to vector<16x32xf32>
    %111 = arith.subf %103, %110 : vector<16x32xf32>
    %112 = arith.mulf %111, %111 : vector<16x32xf32>
    %cst_43 = arith.constant dense<0.000000e+00> : vector<16xf32>
    %113 = vector.multi_reduction <add>, %112, %cst_43 [1] : vector<16x32xf32> to vector<16xf32>
    %114 = vector.shape_cast %113 : vector<16xf32> to vector<16x1xf32>
    %cst_44 = arith.constant 3.200000e+01 : f32
    %115 = vector.broadcast %cst_44 : f32 to vector<16x1xf32>
    %116 = arith.divf %114, %115 : vector<16x1xf32>
    %cst_45 = arith.constant 9.99999974E-6 : f32
    %117 = vector.broadcast %cst_45 : f32 to vector<16x1xf32>
    %118 = arith.addf %116, %117 : vector<16x1xf32>
    %119 = math.rsqrt %118 : vector<16x1xf32>
    %120 = vector.broadcast %119 : vector<16x1xf32> to vector<16x32xf32>
    %121 = arith.mulf %111, %120 : vector<16x32xf32>
    %122 = vector.broadcast %104 : vector<1x32xf32> to vector<16x32xf32>
    %123 = arith.mulf %121, %122 : vector<16x32xf32>
    %124 = vector.broadcast %105 : vector<1x32xf32> to vector<16x32xf32>
    %125 = arith.addf %123, %124 : vector<16x32xf32>
    %c0_46 = arith.constant 0 : index
    %c0_47 = arith.constant 0 : index
    %126 = vector.load %arg8[%c0_46, %c0_47] : memref<32x32xf32, #tpu.memory_space<vmem>>, vector<32x32xf32>
    %cst_48 = arith.constant dense<0.000000e+00> : vector<16x32xf32>
    %127 = tpu.matmul %125, %126, %cst_48 {dimension_numbers = #tpu.dot_dimension_numbers<[1], [0], [0], [1], [0, 0, 1, 1], [], []>} : vector<16x32xf32>, vector<32x32xf32>, vector<16x32xf32> -> vector<16x32xf32>
    %c0_49 = arith.constant 0 : index
    %c0_50 = arith.constant 0 : index
    %128 = vector.load %arg9[%c0_49, %c0_50] : memref<16x64xf32, #tpu.memory_space<vmem>>, vector<16x64xf32>
    %cst_51 = arith.constant dense<0.000000e+00> : vector<8x64xf32>
    %129 = tpu.matmul %3, %128, %cst_51 {dimension_numbers = #tpu.dot_dimension_numbers<[1], [0], [0], [1], [0, 0, 1, 1], [], []>} : vector<8x16xf32>, vector<16x64xf32>, vector<8x64xf32> -> vector<8x64xf32>
    %130 = vector.extract_strided_slice %129 {offsets = [0, 0], sizes = [8, 32], strides = [1, 1]} : vector<8x64xf32> to vector<8x32xf32>
    %131 = vector.extract_strided_slice %129 {offsets = [0, 32], sizes = [8, 32], strides = [1, 1]} : vector<8x64xf32> to vector<8x32xf32>
    %132 = vector.extract_strided_slice %127 {offsets = [0, 0], sizes = [16, 8], strides = [1, 1]} : vector<16x32xf32> to vector<16x8xf32>
    %133 = vector.extract_strided_slice %130 {offsets = [0, 0], sizes = [8, 8], strides = [1, 1]} : vector<8x32xf32> to vector<8x8xf32>
    %134 = vector.extract_strided_slice %131 {offsets = [0, 0], sizes = [8, 8], strides = [1, 1]} : vector<8x32xf32> to vector<8x8xf32>
    %cst_52 = arith.constant dense<0.000000e+00> : vector<16x8xf32>
    %135 = tpu.matmul %132, %133, %cst_52 {dimension_numbers = #tpu.dot_dimension_numbers<[1], [1], [0], [0], [0, 0, 1, 0], [], []>} : vector<16x8xf32>, vector<8x8xf32>, vector<16x8xf32> -> vector<16x8xf32>
    %cst_53 = arith.constant 0.353553385 : f32
    %136 = vector.broadcast %cst_53 : f32 to vector<16x8xf32>
    %137 = arith.mulf %135, %136 : vector<16x8xf32>
    %cst_54 = arith.constant dense<0xFF800000> : vector<16xf32>
    %138 = vector.multi_reduction <maximumf>, %137, %cst_54 [1] : vector<16x8xf32> to vector<16xf32>
    %139 = vector.shape_cast %138 : vector<16xf32> to vector<16x1xf32>
    %140 = vector.broadcast %139 : vector<16x1xf32> to vector<16x8xf32>
    %141 = arith.subf %137, %140 : vector<16x8xf32>
    %142 = math.exp %141 : vector<16x8xf32>
    %cst_55 = arith.constant dense<0.000000e+00> : vector<16xf32>
    %143 = vector.multi_reduction <add>, %142, %cst_55 [1] : vector<16x8xf32> to vector<16xf32>
    %144 = vector.shape_cast %143 : vector<16xf32> to vector<16x1xf32>
    %145 = vector.broadcast %144 : vector<16x1xf32> to vector<16x8xf32>
    %146 = arith.divf %142, %145 : vector<16x8xf32>
    %cst_56 = arith.constant dense<0.000000e+00> : vector<16x8xf32>
    %147 = tpu.matmul %146, %134, %cst_56 {dimension_numbers = #tpu.dot_dimension_numbers<[1], [0], [0], [1], [0, 0, 1, 1], [], []>} : vector<16x8xf32>, vector<8x8xf32>, vector<16x8xf32> -> vector<16x8xf32>
    %148 = vector.extract_strided_slice %127 {offsets = [0, 8], sizes = [16, 8], strides = [1, 1]} : vector<16x32xf32> to vector<16x8xf32>
    %149 = vector.extract_strided_slice %130 {offsets = [0, 8], sizes = [8, 8], strides = [1, 1]} : vector<8x32xf32> to vector<8x8xf32>
    %150 = vector.extract_strided_slice %131 {offsets = [0, 8], sizes = [8, 8], strides = [1, 1]} : vector<8x32xf32> to vector<8x8xf32>
    %cst_57 = arith.constant dense<0.000000e+00> : vector<16x8xf32>
    %151 = tpu.matmul %148, %149, %cst_57 {dimension_numbers = #tpu.dot_dimension_numbers<[1], [1], [0], [0], [0, 0, 1, 0], [], []>} : vector<16x8xf32>, vector<8x8xf32>, vector<16x8xf32> -> vector<16x8xf32>
    %cst_58 = arith.constant 0.353553385 : f32
    %152 = vector.broadcast %cst_58 : f32 to vector<16x8xf32>
    %153 = arith.mulf %151, %152 : vector<16x8xf32>
    %cst_59 = arith.constant dense<0xFF800000> : vector<16xf32>
    %154 = vector.multi_reduction <maximumf>, %153, %cst_59 [1] : vector<16x8xf32> to vector<16xf32>
    %155 = vector.shape_cast %154 : vector<16xf32> to vector<16x1xf32>
    %156 = vector.broadcast %155 : vector<16x1xf32> to vector<16x8xf32>
    %157 = arith.subf %153, %156 : vector<16x8xf32>
    %158 = math.exp %157 : vector<16x8xf32>
    %cst_60 = arith.constant dense<0.000000e+00> : vector<16xf32>
    %159 = vector.multi_reduction <add>, %158, %cst_60 [1] : vector<16x8xf32> to vector<16xf32>
    %160 = vector.shape_cast %159 : vector<16xf32> to vector<16x1xf32>
    %161 = vector.broadcast %160 : vector<16x1xf32> to vector<16x8xf32>
    %162 = arith.divf %158, %161 : vector<16x8xf32>
    %cst_61 = arith.constant dense<0.000000e+00> : vector<16x8xf32>
    %163 = tpu.matmul %162, %150, %cst_61 {dimension_numbers = #tpu.dot_dimension_numbers<[1], [0], [0], [1], [0, 0, 1, 1], [], []>} : vector<16x8xf32>, vector<8x8xf32>, vector<16x8xf32> -> vector<16x8xf32>
    %164 = vector.extract_strided_slice %127 {offsets = [0, 16], sizes = [16, 8], strides = [1, 1]} : vector<16x32xf32> to vector<16x8xf32>
    %165 = vector.extract_strided_slice %130 {offsets = [0, 16], sizes = [8, 8], strides = [1, 1]} : vector<8x32xf32> to vector<8x8xf32>
    %166 = vector.extract_strided_slice %131 {offsets = [0, 16], sizes = [8, 8], strides = [1, 1]} : vector<8x32xf32> to vector<8x8xf32>
    %cst_62 = arith.constant dense<0.000000e+00> : vector<16x8xf32>
    %167 = tpu.matmul %164, %165, %cst_62 {dimension_numbers = #tpu.dot_dimension_numbers<[1], [1], [0], [0], [0, 0, 1, 0], [], []>} : vector<16x8xf32>, vector<8x8xf32>, vector<16x8xf32> -> vector<16x8xf32>
    %cst_63 = arith.constant 0.353553385 : f32
    %168 = vector.broadcast %cst_63 : f32 to vector<16x8xf32>
    %169 = arith.mulf %167, %168 : vector<16x8xf32>
    %cst_64 = arith.constant dense<0xFF800000> : vector<16xf32>
    %170 = vector.multi_reduction <maximumf>, %169, %cst_64 [1] : vector<16x8xf32> to vector<16xf32>
    %171 = vector.shape_cast %170 : vector<16xf32> to vector<16x1xf32>
    %172 = vector.broadcast %171 : vector<16x1xf32> to vector<16x8xf32>
    %173 = arith.subf %169, %172 : vector<16x8xf32>
    %174 = math.exp %173 : vector<16x8xf32>
    %cst_65 = arith.constant dense<0.000000e+00> : vector<16xf32>
    %175 = vector.multi_reduction <add>, %174, %cst_65 [1] : vector<16x8xf32> to vector<16xf32>
    %176 = vector.shape_cast %175 : vector<16xf32> to vector<16x1xf32>
    %177 = vector.broadcast %176 : vector<16x1xf32> to vector<16x8xf32>
    %178 = arith.divf %174, %177 : vector<16x8xf32>
    %cst_66 = arith.constant dense<0.000000e+00> : vector<16x8xf32>
    %179 = tpu.matmul %178, %166, %cst_66 {dimension_numbers = #tpu.dot_dimension_numbers<[1], [0], [0], [1], [0, 0, 1, 1], [], []>} : vector<16x8xf32>, vector<8x8xf32>, vector<16x8xf32> -> vector<16x8xf32>
    %180 = vector.extract_strided_slice %127 {offsets = [0, 24], sizes = [16, 8], strides = [1, 1]} : vector<16x32xf32> to vector<16x8xf32>
    %181 = vector.extract_strided_slice %130 {offsets = [0, 24], sizes = [8, 8], strides = [1, 1]} : vector<8x32xf32> to vector<8x8xf32>
    %182 = vector.extract_strided_slice %131 {offsets = [0, 24], sizes = [8, 8], strides = [1, 1]} : vector<8x32xf32> to vector<8x8xf32>
    %cst_67 = arith.constant dense<0.000000e+00> : vector<16x8xf32>
    %183 = tpu.matmul %180, %181, %cst_67 {dimension_numbers = #tpu.dot_dimension_numbers<[1], [1], [0], [0], [0, 0, 1, 0], [], []>} : vector<16x8xf32>, vector<8x8xf32>, vector<16x8xf32> -> vector<16x8xf32>
    %cst_68 = arith.constant 0.353553385 : f32
    %184 = vector.broadcast %cst_68 : f32 to vector<16x8xf32>
    %185 = arith.mulf %183, %184 : vector<16x8xf32>
    %cst_69 = arith.constant dense<0xFF800000> : vector<16xf32>
    %186 = vector.multi_reduction <maximumf>, %185, %cst_69 [1] : vector<16x8xf32> to vector<16xf32>
    %187 = vector.shape_cast %186 : vector<16xf32> to vector<16x1xf32>
    %188 = vector.broadcast %187 : vector<16x1xf32> to vector<16x8xf32>
    %189 = arith.subf %185, %188 : vector<16x8xf32>
    %190 = math.exp %189 : vector<16x8xf32>
    %cst_70 = arith.constant dense<0.000000e+00> : vector<16xf32>
    %191 = vector.multi_reduction <add>, %190, %cst_70 [1] : vector<16x8xf32> to vector<16xf32>
    %192 = vector.shape_cast %191 : vector<16xf32> to vector<16x1xf32>
    %193 = vector.broadcast %192 : vector<16x1xf32> to vector<16x8xf32>
    %194 = arith.divf %190, %193 : vector<16x8xf32>
    %cst_71 = arith.constant dense<0.000000e+00> : vector<16x8xf32>
    %195 = tpu.matmul %194, %182, %cst_71 {dimension_numbers = #tpu.dot_dimension_numbers<[1], [0], [0], [1], [0, 0, 1, 1], [], []>} : vector<16x8xf32>, vector<8x8xf32>, vector<16x8xf32> -> vector<16x8xf32>
    %196 = tpu.concatenate %147, %163, %179, %195 in 1 : vector<16x8xf32>, vector<16x8xf32>, vector<16x8xf32>, vector<16x8xf32> -> vector<16x32xf32>
    %c0_72 = arith.constant 0 : index
    %c0_73 = arith.constant 0 : index
    %197 = vector.load %arg10[%c0_72, %c0_73] : memref<32x32xf32, #tpu.memory_space<vmem>>, vector<32x32xf32>
    %cst_74 = arith.constant dense<0.000000e+00> : vector<16x32xf32>
    %198 = tpu.matmul %196, %197, %cst_74 {dimension_numbers = #tpu.dot_dimension_numbers<[1], [0], [0], [1], [0, 0, 1, 1], [], []>} : vector<16x32xf32>, vector<32x32xf32>, vector<16x32xf32> -> vector<16x32xf32>
    %199 = arith.addf %103, %198 : vector<16x32xf32>
    %c0_75 = arith.constant 0 : index
    %c0_76 = arith.constant 0 : index
    %200 = vector.load %arg11[%c0_75, %c0_76] : memref<1x32xf32, #tpu.memory_space<vmem>>, vector<1x32xf32>
    %201 = vector.broadcast %200 : vector<1x32xf32> to vector<16x32xf32>
    %202 = arith.addf %199, %201 : vector<16x32xf32>
    %203 = vector.extract_strided_slice %4 {offsets = [2, 0], sizes = [1, 32], strides = [1, 1]} : vector<3x32xf32> to vector<1x32xf32>
    %204 = vector.extract_strided_slice %5 {offsets = [2, 0], sizes = [1, 32], strides = [1, 1]} : vector<3x32xf32> to vector<1x32xf32>
    %cst_77 = arith.constant dense<0.000000e+00> : vector<16xf32>
    %205 = vector.multi_reduction <add>, %202, %cst_77 [1] : vector<16x32xf32> to vector<16xf32>
    %206 = vector.shape_cast %205 : vector<16xf32> to vector<16x1xf32>
    %cst_78 = arith.constant 3.200000e+01 : f32
    %207 = vector.broadcast %cst_78 : f32 to vector<16x1xf32>
    %208 = arith.divf %206, %207 : vector<16x1xf32>
    %209 = vector.broadcast %208 : vector<16x1xf32> to vector<16x32xf32>
    %210 = arith.subf %202, %209 : vector<16x32xf32>
    %211 = arith.mulf %210, %210 : vector<16x32xf32>
    %cst_79 = arith.constant dense<0.000000e+00> : vector<16xf32>
    %212 = vector.multi_reduction <add>, %211, %cst_79 [1] : vector<16x32xf32> to vector<16xf32>
    %213 = vector.shape_cast %212 : vector<16xf32> to vector<16x1xf32>
    %cst_80 = arith.constant 3.200000e+01 : f32
    %214 = vector.broadcast %cst_80 : f32 to vector<16x1xf32>
    %215 = arith.divf %213, %214 : vector<16x1xf32>
    %cst_81 = arith.constant 9.99999974E-6 : f32
    %216 = vector.broadcast %cst_81 : f32 to vector<16x1xf32>
    %217 = arith.addf %215, %216 : vector<16x1xf32>
    %218 = math.rsqrt %217 : vector<16x1xf32>
    %219 = vector.broadcast %218 : vector<16x1xf32> to vector<16x32xf32>
    %220 = arith.mulf %210, %219 : vector<16x32xf32>
    %221 = vector.broadcast %203 : vector<1x32xf32> to vector<16x32xf32>
    %222 = arith.mulf %220, %221 : vector<16x32xf32>
    %223 = vector.broadcast %204 : vector<1x32xf32> to vector<16x32xf32>
    %224 = arith.addf %222, %223 : vector<16x32xf32>
    %c0_82 = arith.constant 0 : index
    %c0_83 = arith.constant 0 : index
    %225 = vector.load %arg12[%c0_82, %c0_83] : memref<32x256xf32, #tpu.memory_space<vmem>>, vector<32x256xf32>
    %cst_84 = arith.constant dense<0.000000e+00> : vector<16x256xf32>
    %226 = tpu.matmul %224, %225, %cst_84 {dimension_numbers = #tpu.dot_dimension_numbers<[1], [0], [0], [1], [0, 0, 1, 1], [], []>} : vector<16x32xf32>, vector<32x256xf32>, vector<16x256xf32> -> vector<16x256xf32>
    %c0_85 = arith.constant 0 : index
    %c0_86 = arith.constant 0 : index
    %227 = vector.load %arg13[%c0_85, %c0_86] : memref<1x256xf32, #tpu.memory_space<vmem>>, vector<1x256xf32>
    %228 = vector.broadcast %227 : vector<1x256xf32> to vector<16x256xf32>
    %229 = arith.addf %226, %228 : vector<16x256xf32>
    %230 = vector.extract_strided_slice %229 {offsets = [0, 0], sizes = [16, 128], strides = [1, 1]} : vector<16x256xf32> to vector<16x128xf32>
    %231 = vector.extract_strided_slice %229 {offsets = [0, 128], sizes = [16, 128], strides = [1, 1]} : vector<16x256xf32> to vector<16x128xf32>
    %cst_87 = arith.constant 5.000000e-01 : f32
    %232 = vector.broadcast %cst_87 : f32 to vector<16x128xf32>
    %233 = arith.mulf %232, %231 : vector<16x128xf32>
    %cst_88 = arith.constant 4.471500e-02 : f32
    %234 = vector.broadcast %cst_88 : f32 to vector<16x128xf32>
    %235 = arith.mulf %234, %231 : vector<16x128xf32>
    %236 = arith.mulf %235, %231 : vector<16x128xf32>
    %237 = arith.mulf %236, %231 : vector<16x128xf32>
    %238 = arith.addf %231, %237 : vector<16x128xf32>
    %cst_89 = arith.constant 0.797884583 : f32
    %239 = vector.broadcast %cst_89 : f32 to vector<16x128xf32>
    %240 = arith.mulf %239, %238 : vector<16x128xf32>
    %241 = math.tanh %240 : vector<16x128xf32>
    %cst_90 = arith.constant 1.000000e+00 : f32
    %242 = vector.broadcast %cst_90 : f32 to vector<16x128xf32>
    %243 = arith.addf %242, %241 : vector<16x128xf32>
    %244 = arith.mulf %233, %243 : vector<16x128xf32>
    %245 = arith.mulf %230, %244 : vector<16x128xf32>
    %c0_91 = arith.constant 0 : index
    %c0_92 = arith.constant 0 : index
    %246 = vector.load %arg14[%c0_91, %c0_92] : memref<128x32xf32, #tpu.memory_space<vmem>>, vector<128x32xf32>
    %cst_93 = arith.constant dense<0.000000e+00> : vector<16x32xf32>
    %247 = tpu.matmul %245, %246, %cst_93 {dimension_numbers = #tpu.dot_dimension_numbers<[1], [0], [0], [1], [0, 0, 1, 1], [], []>} : vector<16x128xf32>, vector<128x32xf32>, vector<16x32xf32> -> vector<16x32xf32>
    %248 = arith.addf %202, %247 : vector<16x32xf32>
    %c0_94 = arith.constant 0 : index
    %c0_95 = arith.constant 0 : index
    %249 = vector.load %arg15[%c0_94, %c0_95] : memref<1x32xf32, #tpu.memory_space<vmem>>, vector<1x32xf32>
    %250 = vector.broadcast %249 : vector<1x32xf32> to vector<16x32xf32>
    %251 = arith.addf %248, %250 : vector<16x32xf32>
    %c0_96 = arith.constant 0 : index
    %c0_97 = arith.constant 0 : index
    %c0_98 = arith.constant 0 : index
    %252 = vector.load %arg16[%c0_96, %c0_97, %c0_98] : memref<1x16x32xf32, #tpu.memory_space<vmem>>, vector<1x16x32xf32>
    %253 = vector.shape_cast %252 : vector<1x16x32xf32> to vector<16x32xf32>
    %254 = vector.shape_cast %251 : vector<16x32xf32> to vector<1x16x32xf32>
    tpu.vector_store %arg16[%c0_96, %c0_97, %c0_98], %254 {strides = array<i32>} : memref<1x16x32xf32, #tpu.memory_space<vmem>>, vector<1x16x32xf32>,
    return
  }
  func.func @transform_0(%arg0: i32) -> (i32, i32, i32) {
    %c0_i32 = arith.constant 0 : i32
    %c0_i32_0 = arith.constant 0 : i32
    %c0_i32_1 = arith.constant 0 : i32
    return %arg0, %c0_i32, %c0_i32_0 : i32, i32, i32
  }
  func.func @transform_1(%arg0: i32) -> (i32, i32, i32) {
    %c0_i32 = arith.constant 0 : i32
    %c0_i32_0 = arith.constant 0 : i32
    %c0_i32_1 = arith.constant 0 : i32
    return %arg0, %c0_i32, %c0_i32_0 : i32, i32, i32
  }
  func.func @transform_2(%arg0: i32) -> (i32, i32) {
    %c0_i32 = arith.constant 0 : i32
    %c0_i32_0 = arith.constant 0 : i32
    %c0_i32_1 = arith.constant 0 : i32
    return %c0_i32, %c0_i32_0 : i32, i32
  }
  func.func @transform_3(%arg0: i32) -> (i32, i32) {
    %c0_i32 = arith.constant 0 : i32
    %c0_i32_0 = arith.constant 0 : i32
    %c0_i32_1 = arith.constant 0 : i32
    return %c0_i32, %c0_i32_0 : i32, i32
  }
  func.func @transform_4(%arg0: i32) -> (i32, i32) {
    %c0_i32 = arith.constant 0 : i32
    %c0_i32_0 = arith.constant 0 : i32
    %c0_i32_1 = arith.constant 0 : i32
    return %c0_i32, %c0_i32_0 : i32, i32
  }
  func.func @transform_5(%arg0: i32) -> (i32, i32) {
    %c0_i32 = arith.constant 0 : i32
    %c0_i32_0 = arith.constant 0 : i32
    %c0_i32_1 = arith.constant 0 : i32
    return %c0_i32, %c0_i32_0 : i32, i32
  }
  func.func @transform_6(%arg0: i32) -> (i32, i32) {
    %c0_i32 = arith.constant 0 : i32
    %c0_i32_0 = arith.constant 0 : i32
    %c0_i32_1 = arith.constant 0 : i32
    return %c0_i32, %c0_i32_0 : i32, i32
  }
  func.func @transform_7(%arg0: i32) -> (i32, i32) {
    %c0_i32 = arith.constant 0 : i32
    %c0_i32_0 = arith.constant 0 : i32
    %c0_i32_1 = arith.constant 0 : i32
    return %c0_i32, %c0_i32_0 : i32, i32
  }
  func.func @transform_8(%arg0: i32) -> (i32, i32) {
    %c0_i32 = arith.constant 0 : i32
    %c0_i32_0 = arith.constant 0 : i32
    %c0_i32_1 = arith.constant 0 : i32
    return %c0_i32, %c0_i32_0 : i32, i32
  }
  func.func @transform_9(%arg0: i32) -> (i32, i32) {
    %c0_i32 = arith.constant 0 : i32
    %c0_i32_0 = arith.constant 0 : i32
    %c0_i32_1 = arith.constant 0 : i32
    return %c0_i32, %c0_i32_0 : i32, i32
  }
  func.func @transform_10(%arg0: i32) -> (i32, i32) {
    %c0_i32 = arith.constant 0 : i32
    %c0_i32_0 = arith.constant 0 : i32
    %c0_i32_1 = arith.constant 0 : i32
    return %c0_i32, %c0_i32_0 : i32, i32
  }
  func.func @transform_11(%arg0: i32) -> (i32, i32) {
    %c0_i32 = arith.constant 0 : i32
    %c0_i32_0 = arith.constant 0 : i32
    %c0_i32_1 = arith.constant 0 : i32
    return %c0_i32, %c0_i32_0 : i32, i32
  }
  func.func @transform_12(%arg0: i32) -> (i32, i32) {
    %c0_i32 = arith.constant 0 : i32
    %c0_i32_0 = arith.constant 0 : i32
    %c0_i32_1 = arith.constant 0 : i32
    return %c0_i32, %c0_i32_0 : i32, i32
  }
  func.func @transform_13(%arg0: i32) -> (i32, i32) {
    %c0_i32 = arith.constant 0 : i32
    %c0_i32_0 = arith.constant 0 : i32
    %c0_i32_1 = arith.constant 0 : i32
    return %c0_i32, %c0_i32_0 : i32, i32
  }
  func.func @transform_14(%arg0: i32) -> (i32, i32) {
    %c0_i32 = arith.constant 0 : i32
    %c0_i32_0 = arith.constant 0 : i32
    %c0_i32_1 = arith.constant 0 : i32
    return %c0_i32, %c0_i32_0 : i32, i32
  }
  func.func @transform_15(%arg0: i32) -> (i32, i32, i32) {
    %c0_i32 = arith.constant 0 : i32
    %c0_i32_0 = arith.constant 0 : i32
    %c0_i32_1 = arith.constant 0 : i32
    return %arg0, %c0_i32, %c0_i32_0 : i32, i32, i32
  }
}

</mosaic_0001>

<llo_original>
// kernel: tpu_custom_call.1
$region0: #{tpu_custom_call.1}
  #allocation0 [shape = 'u32[]', space=smem, size = 0x4, offset = 0x4, fixed_abs, tag = 'smem constant byte address 0x4 - core index']
  #allocation1 [shape = 'u32[144,128]{1,0:T(1,128)}', space=vmem, size = 0x12000, scoped, tag = 'internal scratch']
  %s0 = inlined_call_operand.vmem [shape: f32[2,16,32], index: 0, kind: input, shape index: {}]
  %s1 = inlined_call_operand.hbm [shape: f32[2,8,16], index: 1, kind: input, shape index: {}]
  %s2 = inlined_call_operand.hbm [shape: f32[3,32], index: 2, kind: input, shape index: {}]
  %s3 = inlined_call_operand.vmem [shape: f32[3,32], index: 3, kind: input, shape index: {}]
  %s4 = inlined_call_operand.vmem [shape: f32[32,96], index: 4, kind: input, shape index: {}]
  %s5 = inlined_call_operand.vmem [shape: f32[32,32], index: 5, kind: input, shape index: {}]
  %s6 = inlined_call_operand.vmem [shape: f32[1,32], index: 6, kind: input, shape index: {}]
  %s7 = inlined_call_operand.hbm [shape: f32[32,32], index: 7, kind: input, shape index: {}]
  %s8 = inlined_call_operand.hbm [shape: f32[16,64], index: 8, kind: input, shape index: {}]
  %s9 = inlined_call_operand.hbm [shape: f32[32,32], index: 9, kind: input, shape index: {}]
  %s10 = inlined_call_operand.vmem [shape: f32[1,32], index: 10, kind: input, shape index: {}]
  %s11 = inlined_call_operand.vmem [shape: f32[32,256], index: 11, kind: input, shape index: {}]
  %s12 = inlined_call_operand.vmem [shape: f32[1,256], index: 12, kind: input, shape index: {}]
  %s13 = inlined_call_operand.vmem [shape: f32[128,32], index: 13, kind: input, shape index: {}]
  %s14 = inlined_call_operand.vmem [shape: f32[1,32], index: 14, kind: input, shape index: {}]
  %s15 = inlined_call_operand.hbm [shape: f32[2,16,32], index: 15, kind: output, shape index: {}]
  %s16 = sld [smem:[#allocation0]]
  $region113: #{tpu_custom_call.1} parent=0
    _
  %s18 = ssub.s32 1, %s16
  %s19 = scalar_select 0, %s18, %s16
  $region1: #{tpu_custom_call.1} parent=0
    #allocation2 [shape = 'u8[8192]{0}', space=vmem, size = 0x2000, scoped, tag = 'input window, operand 1']
    #allocation3 [shape = 's32[2]{0}', space=sflag, size = 0x8, scoped, tag = 'scoped memory for tpu_custom_call.1']
    #allocation4 [shape = 's32[2]{0}', space=sflag, size = 0x8, scoped, tag = 'scoped memory for tpu_custom_call.1']
    #allocation5 [shape = 'u8[2048]{0}', space=vmem, size = 0x800, scoped, tag = 'input window, operand 2, single buffered']
    #allocation6 [shape = 's32[1]{0}', space=sflag, size = 0x4, scoped, tag = 'scoped memory for tpu_custom_call.1']
    #allocation7 [shape = 'u8[16384]{0}', space=vmem, size = 0x4000, scoped, tag = 'input window, operand 7, single buffered']
    #allocation8 [shape = 'u8[8192]{0}', space=vmem, size = 0x2000, scoped, tag = 'input window, operand 8, single buffered']
    #allocation9 [shape = 's32[1]{0}', space=sflag, size = 0x4, scoped, tag = 'scoped memory for tpu_custom_call.1']
    #allocation10 [shape = 'u8[16384]{0}', space=vmem, size = 0x4000, scoped, tag = 'input window, operand 9, single buffered']
    #allocation11 [shape = 'u8[16384]{0}', space=vmem, size = 0x4000, scoped, tag = 'output window, operand 0']
    %20 = vsyncpa [#allocation3], 0
    %s21 = scalar_lea.sflag [#allocation3], 1
    %22 = vsyncpa %s21, 0
    %23 = vsyncpa [#allocation6], 0
    %24 = vsyncpa [#allocation9], 0
    %25 = vsyncpa [#allocation4], 0
    %s26 = scalar_lea.sflag [#allocation4], 1
    %27 = vsyncpa %s26, 0
    loop: start=0, step=1, limit=4
    $region2: #{tpu_custom_call.1} parent=1 // loop_pre_header
      _
    $region3: #{tpu_custom_call.1} parent=1 // loop_header
      %s29 = sphi 0, %s33
      %p30 = scmp.ge.s32.totalorder %s29, 4
      %s39 = sphi 0, %s41
      %s42 = sphi 0, %s39
      %s43 = sphi 0, %s42
      %s59 = sphi 0, %s43
      %s65 = sphi 0, %s67
      %s68 = sphi 0, %s65
      %s69 = sphi 0, %s68
      %s85 = sphi 0, %s69
      %s89 = sphi 0, %s89
      %s91 = sphi 0, %s89
      %s92 = sphi 0, %s91
      %s106 = sphi 0, %s92
      %s110 = sphi 0, %s110
      %s112 = sphi 0, %s110
      %s113 = sphi 0, %s112
      %s127 = sphi 0, %s113
      %s131 = sphi 0, %s131
      %s133 = sphi 0, %s131
      %s134 = sphi 0, %s133
      %s148 = sphi 0, %s134
      %s152 = sphi 0, %s152
      %s154 = sphi 0, %s152
      %s155 = sphi 0, %s154
      %s169 = sphi 0, %s155
      %s173 = sphi 0, %s173
      %s175 = sphi 0, %s173
      %s176 = sphi 0, %s175
      %s190 = sphi 0, %s176
      %s194 = sphi 0, %s194
      %s196 = sphi 0, %s194
      %s197 = sphi 0, %s196
      %s211 = sphi 0, %s197
      %s215 = sphi 0, %s215
      %s217 = sphi 0, %s215
      %s218 = sphi 0, %s217
      %s232 = sphi 0, %s218
      %s236 = sphi 0, %s236
      %s238 = sphi 0, %s236
      %s239 = sphi 0, %s238
      %s253 = sphi 0, %s239
      %s257 = sphi 0, %s257
      %s259 = sphi 0, %s257
      %s260 = sphi 0, %s259
      %s274 = sphi 0, %s260
      %s278 = sphi 0, %s278
      %s280 = sphi 0, %s278
      %s281 = sphi 0, %s280
      %s295 = sphi 0, %s281
      %s299 = sphi 0, %s299
      %s301 = sphi 0, %s299
      %s302 = sphi 0, %s301
      %s316 = sphi 0, %s302
      %s320 = sphi 0, %s320
      %s322 = sphi 0, %s320
      %s323 = sphi 0, %s322
      %s337 = sphi 0, %s323
      %s341 = sphi 0, %s341
      %s343 = sphi 0, %s341
      %s344 = sphi 0, %s343
      %s358 = sphi 0, %s344
      %s364 = sphi 0, %s366
      %s367 = sphi 0, %s364
      %s368 = sphi 0, %s367
      %s384 = sphi 0, %s368
    $region4: #{tpu_custom_call.1} parent=1 // loop_header_branch
      %32 = sbr.rel (%p30) target = $region8
    $region5: #{tpu_custom_call.1} parent=1 // loop_body
      %s34 = ssub.s32 %s29, 1
      %s35 = ssub.s32 %s29, 2
      %s36 = sadd.s32 %s29, 1
      %s37 = ssub.s32 %s29, %s36
      %p38 = scmp.eq.s32.totalorder %s37, 0
      %s40 = sadd.s32 %s39, 1
      %s41 = scalar_select %p38, %s39, %s40
      %p44 = pneg %p38
      %p45 = scmp.eq.s32.totalorder %s29, 1
      %p46 = por %p44, %p45
      %p47 = scmp.ne.s32.totalorder %s39, %s42
      %p48 = scmp.eq.s32.totalorder %s29, 0
      %p49 = por %p47, %p48
      %p50 = scmp.ne.s32.totalorder %s39, %s42
      %p51 = scmp.eq.s32.totalorder %s34, 1
      %p52 = por %p50, %p51
      %p53 = scmp.ne.s32.totalorder %s42, %s43
      %p54 = scmp.eq.s32.totalorder %s34, 0
      %p55 = por %p53, %p54
      %p56 = scmp.ne.s32.totalorder %s42, %s43
      %p57 = scmp.eq.s32.totalorder %s35, 1
      %p58 = por %p56, %p57
      %p60 = scmp.ne.s32.totalorder %s43, %s59
      %p61 = scmp.eq.s32.totalorder %s35, 0
      %p62 = por %p60, %p61
      %s63 = ssub.s32 %s29, %s36
      %p64 = scmp.eq.s32.totalorder %s63, 0
      %s66 = sadd.s32 %s65, 1
      %s67 = scalar_select %p64, %s65, %s66
      %p70 = pneg %p64
      %p71 = scmp.eq.s32.totalorder %s29, 1
      %p72 = por %p70, %p71
      %p73 = scmp.ne.s32.totalorder %s65, %s68
      %p74 = scmp.eq.s32.totalorder %s29, 0
      %p75 = por %p73, %p74
      %p76 = scmp.ne.s32.totalorder %s65, %s68
      %p77 = scmp.eq.s32.totalorder %s34, 1
      %p78 = por %p76, %p77
      %p79 = scmp.ne.s32.totalorder %s68, %s69
      %p80 = scmp.eq.s32.totalorder %s34, 0
      %p81 = por %p79, %p80
      %p82 = scmp.ne.s32.totalorder %s68, %s69
      %p83 = scmp.eq.s32.totalorder %s35, 1
      %p84 = por %p82, %p83
      %p86 = scmp.ne.s32.totalorder %s69, %s85
      %p87 = scmp.eq.s32.totalorder %s35, 0
      %p88 = por %p86, %p87
      %s90 = sadd.s32 %s89, 1
      %p93 = scmp.eq.s32.totalorder %s29, 1
      %p94 = scmp.ne.s32.totalorder %s89, %s91
      %p95 = scmp.eq.s32.totalorder %s29, 0
      %p96 = por %p94, %p95
      %p97 = scmp.ne.s32.totalorder %s89, %s91
      %p98 = scmp.eq.s32.totalorder %s34, 1
      %p99 = por %p97, %p98
      %p100 = scmp.ne.s32.totalorder %s91, %s92
      %p101 = scmp.eq.s32.totalorder %s34, 0
      %p102 = por %p100, %p101
      %p103 = scmp.ne.s32.totalorder %s91, %s92
      %p104 = scmp.eq.s32.totalorder %s35, 1
      %p105 = por %p103, %p104
      %p107 = scmp.ne.s32.totalorder %s92, %s106
      %p108 = scmp.eq.s32.totalorder %s35, 0
      %p109 = por %p107, %p108
      %s111 = sadd.s32 %s110, 1
      %p114 = scmp.eq.s32.totalorder %s29, 1
      %p115 = scmp.ne.s32.totalorder %s110, %s112
      %p116 = scmp.eq.s32.totalorder %s29, 0
      %p117 = por %p115, %p116
      %p118 = scmp.ne.s32.totalorder %s110, %s112
      %p119 = scmp.eq.s32.totalorder %s34, 1
      %p120 = por %p118, %p119
      %p121 = scmp.ne.s32.totalorder %s112, %s113
      %p122 = scmp.eq.s32.totalorder %s34, 0
      %p123 = por %p121, %p122
      %p124 = scmp.ne.s32.totalorder %s112, %s113
      %p125 = scmp.eq.s32.totalorder %s35, 1
      %p126 = por %p124, %p125
      %p128 = scmp.ne.s32.totalorder %s113, %s127
      %p129 = scmp.eq.s32.totalorder %s35, 0
      %p130 = por %p128, %p129
      %s132 = sadd.s32 %s131, 1
      %p135 = scmp.eq.s32.totalorder %s29, 1
      %p136 = scmp.ne.s32.totalorder %s131, %s133
      %p137 = scmp.eq.s32.totalorder %s29, 0
      %p138 = por %p136, %p137
      %p139 = scmp.ne.s32.totalorder %s131, %s133
      %p140 = scmp.eq.s32.totalorder %s34, 1
      %p141 = por %p139, %p140
      %p142 = scmp.ne.s32.totalorder %s133, %s134
      %p143 = scmp.eq.s32.totalorder %s34, 0
      %p144 = por %p142, %p143
      %p145 = scmp.ne.s32.totalorder %s133, %s134
      %p146 = scmp.eq.s32.totalorder %s35, 1
      %p147 = por %p145, %p146
      %p149 = scmp.ne.s32.totalorder %s134, %s148
      %p150 = scmp.eq.s32.totalorder %s35, 0
      %p151 = por %p149, %p150
      %s153 = sadd.s32 %s152, 1
      %p156 = scmp.eq.s32.totalorder %s29, 1
      %p157 = scmp.ne.s32.totalorder %s152, %s154
      %p158 = scmp.eq.s32.totalorder %s29, 0
      %p159 = por %p157, %p158
      %p160 = scmp.ne.s32.totalorder %s152, %s154
      %p161 = scmp.eq.s32.totalorder %s34, 1
      %p162 = por %p160, %p161
      %p163 = scmp.ne.s32.totalorder %s154, %s155
      %p164 = scmp.eq.s32.totalorder %s34, 0
      %p165 = por %p163, %p164
      %p166 = scmp.ne.s32.totalorder %s154, %s155
      %p167 = scmp.eq.s32.totalorder %s35, 1
      %p168 = por %p166, %p167
      %p170 = scmp.ne.s32.totalorder %s155, %s169
      %p171 = scmp.eq.s32.totalorder %s35, 0
      %p172 = por %p170, %p171
      %s174 = sadd.s32 %s173, 1
      %p177 = scmp.eq.s32.totalorder %s29, 1
      %p178 = scmp.ne.s32.totalorder %s173, %s175
      %p179 = scmp.eq.s32.totalorder %s29, 0
      %p180 = por %p178, %p179
      %p181 = scmp.ne.s32.totalorder %s173, %s175
      %p182 = scmp.eq.s32.totalorder %s34, 1
      %p183 = por %p181, %p182
      %p184 = scmp.ne.s32.totalorder %s175, %s176
      %p185 = scmp.eq.s32.totalorder %s34, 0
      %p186 = por %p184, %p185
      %p187 = scmp.ne.s32.totalorder %s175, %s176
      %p188 = scmp.eq.s32.totalorder %s35, 1
      %p189 = por %p187, %p188
      %p191 = scmp.ne.s32.totalorder %s176, %s190
      %p192 = scmp.eq.s32.totalorder %s35, 0
      %p193 = por %p191, %p192
      %s195 = sadd.s32 %s194, 1
      %p198 = scmp.eq.s32.totalorder %s29, 1
      %p199 = scmp.ne.s32.totalorder %s194, %s196
      %p200 = scmp.eq.s32.totalorder %s29, 0
      %p201 = por %p199, %p200
      %p202 = scmp.ne.s32.totalorder %s194, %s196
      %p203 = scmp.eq.s32.totalorder %s34, 1
      %p204 = por %p202, %p203
      %p205 = scmp.ne.s32.totalorder %s196, %s197
      %p206 = scmp.eq.s32.totalorder %s34, 0
      %p207 = por %p205, %p206
      %p208 = scmp.ne.s32.totalorder %s196, %s197
      %p209 = scmp.eq.s32.totalorder %s35, 1
      %p210 = por %p208, %p209
      %p212 = scmp.ne.s32.totalorder %s197, %s211
      %p213 = scmp.eq.s32.totalorder %s35, 0
      %p214 = por %p212, %p213
      %s216 = sadd.s32 %s215, 1
      %p219 = scmp.eq.s32.totalorder %s29, 1
      %p220 = scmp.ne.s32.totalorder %s215, %s217
      %p221 = scmp.eq.s32.totalorder %s29, 0
      %p222 = por %p220, %p221
      %p223 = scmp.ne.s32.totalorder %s215, %s217
      %p224 = scmp.eq.s32.totalorder %s34, 1
      %p225 = por %p223, %p224
      %p226 = scmp.ne.s32.totalorder %s217, %s218
      %p227 = scmp.eq.s32.totalorder %s34, 0
      %p228 = por %p226, %p227
      %p229 = scmp.ne.s32.totalorder %s217, %s218
      %p230 = scmp.eq.s32.totalorder %s35, 1
      %p231 = por %p229, %p230
      %p233 = scmp.ne.s32.totalorder %s218, %s232
      %p234 = scmp.eq.s32.totalorder %s35, 0
      %p235 = por %p233, %p234
      %s237 = sadd.s32 %s236, 1
      %p240 = scmp.eq.s32.totalorder %s29, 1
      %p241 = scmp.ne.s32.totalorder %s236, %s238
      %p242 = scmp.eq.s32.totalorder %s29, 0
      %p243 = por %p241, %p242
      %p244 = scmp.ne.s32.totalorder %s236, %s238
      %p245 = scmp.eq.s32.totalorder %s34, 1
      %p246 = por %p244, %p245
      %p247 = scmp.ne.s32.totalorder %s238, %s239
      %p248 = scmp.eq.s32.totalorder %s34, 0
      %p249 = por %p247, %p248
      %p250 = scmp.ne.s32.totalorder %s238, %s239
      %p251 = scmp.eq.s32.totalorder %s35, 1
      %p252 = por %p250, %p251
      %p254 = scmp.ne.s32.totalorder %s239, %s253
      %p255 = scmp.eq.s32.totalorder %s35, 0
      %p256 = por %p254, %p255
      %s258 = sadd.s32 %s257, 1
      %p261 = scmp.eq.s32.totalorder %s29, 1
      %p262 = scmp.ne.s32.totalorder %s257, %s259
      %p263 = scmp.eq.s32.totalorder %s29, 0
      %p264 = por %p262, %p263
      %p265 = scmp.ne.s32.totalorder %s257, %s259
      %p266 = scmp.eq.s32.totalorder %s34, 1
      %p267 = por %p265, %p266
      %p268 = scmp.ne.s32.totalorder %s259, %s260
      %p269 = scmp.eq.s32.totalorder %s34, 0
      %p270 = por %p268, %p269
      %p271 = scmp.ne.s32.totalorder %s259, %s260
      %p272 = scmp.eq.s32.totalorder %s35, 1
      %p273 = por %p271, %p272
      %p275 = scmp.ne.s32.totalorder %s260, %s274
      %p276 = scmp.eq.s32.totalorder %s35, 0
      %p277 = por %p275, %p276
      %s279 = sadd.s32 %s278, 1
      %p282 = scmp.eq.s32.totalorder %s29, 1
      %p283 = scmp.ne.s32.totalorder %s278, %s280
      %p284 = scmp.eq.s32.totalorder %s29, 0
      %p285 = por %p283, %p284
      %p286 = scmp.ne.s32.totalorder %s278, %s280
      %p287 = scmp.eq.s32.totalorder %s34, 1
      %p288 = por %p286, %p287
      %p289 = scmp.ne.s32.totalorder %s280, %s281
      %p290 = scmp.eq.s32.totalorder %s34, 0
      %p291 = por %p289, %p290
      %p292 = scmp.ne.s32.totalorder %s280, %s281
      %p293 = scmp.eq.s32.totalorder %s35, 1
      %p294 = por %p292, %p293
      %p296 = scmp.ne.s32.totalorder %s281, %s295
      %p297 = scmp.eq.s32.totalorder %s35, 0
      %p298 = por %p296, %p297
      %s300 = sadd.s32 %s299, 1
      %p303 = scmp.eq.s32.totalorder %s29, 1
      %p304 = scmp.ne.s32.totalorder %s299, %s301
      %p305 = scmp.eq.s32.totalorder %s29, 0
      %p306 = por %p304, %p305
      %p307 = scmp.ne.s32.totalorder %s299, %s301
      %p308 = scmp.eq.s32.totalorder %s34, 1
      %p309 = por %p307, %p308
      %p310 = scmp.ne.s32.totalorder %s301, %s302
      %p311 = scmp.eq.s32.totalorder %s34, 0
      %p312 = por %p310, %p311
      %p313 = scmp.ne.s32.totalorder %s301, %s302
      %p314 = scmp.eq.s32.totalorder %s35, 1
      %p315 = por %p313, %p314
      %p317 = scmp.ne.s32.totalorder %s302, %s316
      %p318 = scmp.eq.s32.totalorder %s35, 0
      %p319 = por %p317, %p318
      %s321 = sadd.s32 %s320, 1
      %p324 = scmp.eq.s32.totalorder %s29, 1
      %p325 = scmp.ne.s32.totalorder %s320, %s322
      %p326 = scmp.eq.s32.totalorder %s29, 0
      %p327 = por %p325, %p326
      %p328 = scmp.ne.s32.totalorder %s320, %s322
      %p329 = scmp.eq.s32.totalorder %s34, 1
      %p330 = por %p328, %p329
      %p331 = scmp.ne.s32.totalorder %s322, %s323
      %p332 = scmp.eq.s32.totalorder %s34, 0
      %p333 = por %p331, %p332
      %p334 = scmp.ne.s32.totalorder %s322, %s323
      %p335 = scmp.eq.s32.totalorder %s35, 1
      %p336 = por %p334, %p335
      %p338 = scmp.ne.s32.totalorder %s323, %s337
      %p339 = scmp.eq.s32.totalorder %s35, 0
      %p340 = por %p338, %p339
      %s342 = sadd.s32 %s341, 1
      %p345 = scmp.eq.s32.totalorder %s29, 1
      %p346 = scmp.ne.s32.totalorder %s341, %s343
      %p347 = scmp.eq.s32.totalorder %s29, 0
      %p348 = por %p346, %p347
      %p349 = scmp.ne.s32.totalorder %s341, %s343
      %p350 = scmp.eq.s32.totalorder %s34, 1
      %p351 = por %p349, %p350
      %p352 = scmp.ne.s32.totalorder %s343, %s344
      %p353 = scmp.eq.s32.totalorder %s34, 0
      %p354 = por %p352, %p353
      %p355 = scmp.ne.s32.totalorder %s343, %s344
      %p356 = scmp.eq.s32.totalorder %s35, 1
      %p357 = por %p355, %p356
      %p359 = scmp.ne.s32.totalorder %s344, %s358
      %p360 = scmp.eq.s32.totalorder %s35, 0
      %p361 = por %p359, %p360
      %s362 = ssub.s32 %s29, %s36
      %p363 = scmp.eq.s32.totalorder %s362, 0
      %s365 = sadd.s32 %s364, 1
      %s366 = scalar_select %p363, %s364, %s365
      %p369 = pneg %p363
      %p370 = scmp.eq.s32.totalorder %s29, 1
      %p371 = por %p369, %p370
      %p372 = scmp.ne.s32.totalorder %s364, %s367
      %p373 = scmp.eq.s32.totalorder %s29, 0
      %p374 = por %p372, %p373
      %p375 = scmp.ne.s32.totalorder %s364, %s367
      %p376 = scmp.eq.s32.totalorder %s34, 1
      %p377 = por %p375, %p376
      %p378 = scmp.ne.s32.totalorder %s367, %s368
      %p379 = scmp.eq.s32.totalorder %s34, 0
      %p380 = por %p378, %p379
      %p381 = scmp.ne.s32.totalorder %s367, %s368
      %p382 = scmp.eq.s32.totalorder %s35, 1
      %p383 = por %p381, %p382
      %p385 = scmp.ne.s32.totalorder %s368, %s384
      %p386 = scmp.eq.s32.totalorder %s35, 0
      %p387 = por %p385, %p386
      %p388 = scmp.le.s32.totalorder 1, %s29
      %p389 = scmp.lt.s32.totalorder %s29, 3
      %p390 = pnand %p388, %p389
      %p391 = pneg %p390
      // Predicated region
      $region9: #{tpu_custom_call.1} parent=5 // pred_check
        _
      $region10: #{tpu_custom_call.1} parent=5 // pred_check_branch
        %393 = sbr.rel (%p390) target = $region12
      $region11: #{tpu_custom_call.1} parent=5 // pred_region
        %s394 = ssub.s32 %s29, 1
        // Predicated region
        $region13: #{tpu_custom_call.1} parent=11 // pred_check
          %p395 = pneg %p102
        $region14: #{tpu_custom_call.1} parent=11 // pred_check_branch
          %397 = sbr.rel (%p395) target = $region16
        $region15: #{tpu_custom_call.1} parent=11 // pred_region
          %s399 = ssub.s32 64, 64
          %400 = vsyncadd [#allocation6], %s399
          %s402 = sshll.u32 [#allocation5], 4
          %s403 = int_to_ptr.vmem [resolvable:$true] %s402
          %405 = dma.hbm_to_vmem [thread:$0]  %s2, 64, %s403, [#allocation6]
        $region16: #{tpu_custom_call.1} parent=11 // pred_fallthru
          _
        // Predicated region
        $region17: #{tpu_custom_call.1} parent=11 // pred_check
          %p406 = pneg %p123
        $region18: #{tpu_custom_call.1} parent=11 // pred_check_branch
          %408 = sbr.rel (%p406) target = $region20
        $region19: #{tpu_custom_call.1} parent=11 // pred_region
          _
        $region20: #{tpu_custom_call.1} parent=11 // pred_fallthru
          _
        // Predicated region
        $region21: #{tpu_custom_call.1} parent=11 // pred_check
          %p409 = pneg %p144
        $region22: #{tpu_custom_call.1} parent=11 // pred_check_branch
          %411 = sbr.rel (%p409) target = $region24
        $region23: #{tpu_custom_call.1} parent=11 // pred_region
          _
        $region24: #{tpu_custom_call.1} parent=11 // pred_fallthru
          _
        // Predicated region
        $region25: #{tpu_custom_call.1} parent=11 // pred_check
          %p412 = pneg %p165
        $region26: #{tpu_custom_call.1} parent=11 // pred_check_branch
          %414 = sbr.rel (%p412) target = $region28
        $region27: #{tpu_custom_call.1} parent=11 // pred_region
          _
        $region28: #{tpu_custom_call.1} parent=11 // pred_fallthru
          _
        // Predicated region
        $region29: #{tpu_custom_call.1} parent=11 // pred_check
          %p415 = pneg %p186
        $region30: #{tpu_custom_call.1} parent=11 // pred_check_branch
          %417 = sbr.rel (%p415) target = $region32
        $region31: #{tpu_custom_call.1} parent=11 // pred_region
          _
        $region32: #{tpu_custom_call.1} parent=11 // pred_fallthru
          _
        // Predicated region
        $region33: #{tpu_custom_call.1} parent=11 // pred_check
          %p418 = pneg %p207
        $region34: #{tpu_custom_call.1} parent=11 // pred_check_branch
          %420 = sbr.rel (%p418) target = $region36
        $region35: #{tpu_custom_call.1} parent=11 // pred_region
          %s422 = ssub.s32 512, 512
          %423 = vsyncadd [#allocation6], %s422
          %s424 = sshll.u32 [#allocation7], 4
          %s425 = int_to_ptr.vmem [resolvable:$true] %s424
          %430 = dma.hbm_to_vmem [thread:$0]  %s7, 512, %s425, [#allocation6], 128, 128, 8
        $region36: #{tpu_custom_call.1} parent=11 // pred_fallthru
          _
        // Predicated region
        $region37: #{tpu_custom_call.1} parent=11 // pred_check
          %p431 = pneg %p228
        $region38: #{tpu_custom_call.1} parent=11 // pred_check_branch
          %433 = sbr.rel (%p431) target = $region40
        $region39: #{tpu_custom_call.1} parent=11 // pred_region
          %s435 = ssub.s32 256, 256
          %436 = vsyncadd [#allocation9], %s435
          %s437 = sshll.u32 [#allocation8], 4
          %s438 = int_to_ptr.vmem [resolvable:$true] %s437
          %443 = dma.hbm_to_vmem [thread:$0]  %s8, 256, %s438, [#allocation9], 128, 128, 8
        $region40: #{tpu_custom_call.1} parent=11 // pred_fallthru
          _
        // Predicated region
        $region41: #{tpu_custom_call.1} parent=11 // pred_check
          %p444 = pneg %p249
        $region42: #{tpu_custom_call.1} parent=11 // pred_check_branch
          %446 = sbr.rel (%p444) target = $region44
        $region43: #{tpu_custom_call.1} parent=11 // pred_region
          %s448 = ssub.s32 512, 512
          %449 = vsyncadd [#allocation9], %s448
          %s450 = sshll.u32 [#allocation10], 4
          %s451 = int_to_ptr.vmem [resolvable:$true] %s450
          %456 = dma.hbm_to_vmem [thread:$0]  %s9, 512, %s451, [#allocation9], 128, 128, 8
        $region44: #{tpu_custom_call.1} parent=11 // pred_fallthru
          _
        // Predicated region
        $region45: #{tpu_custom_call.1} parent=11 // pred_check
          %p457 = pneg %p270
        $region46: #{tpu_custom_call.1} parent=11 // pred_check_branch
          %459 = sbr.rel (%p457) target = $region48
        $region47: #{tpu_custom_call.1} parent=11 // pred_region
          _
        $region48: #{tpu_custom_call.1} parent=11 // pred_fallthru
          _
        // Predicated region
        $region49: #{tpu_custom_call.1} parent=11 // pred_check
          %p460 = pneg %p291
        $region50: #{tpu_custom_call.1} parent=11 // pred_check_branch
          %462 = sbr.rel (%p460) target = $region52
        $region51: #{tpu_custom_call.1} parent=11 // pred_region
          _
        $region52: #{tpu_custom_call.1} parent=11 // pred_fallthru
          _
        // Predicated region
        $region53: #{tpu_custom_call.1} parent=11 // pred_check
          %p463 = pneg %p312
        $region54: #{tpu_custom_call.1} parent=11 // pred_check_branch
          %465 = sbr.rel (%p463) target = $region56
        $region55: #{tpu_custom_call.1} parent=11 // pred_region
          _
        $region56: #{tpu_custom_call.1} parent=11 // pred_fallthru
          _
        // Predicated region
        $region57: #{tpu_custom_call.1} parent=11 // pred_check
          %p466 = pneg %p333
        $region58: #{tpu_custom_call.1} parent=11 // pred_check_branch
          %468 = sbr.rel (%p466) target = $region60
        $region59: #{tpu_custom_call.1} parent=11 // pred_region
          _
        $region60: #{tpu_custom_call.1} parent=11 // pred_fallthru
          _
        // Predicated region
        $region61: #{tpu_custom_call.1} parent=11 // pred_check
          %p469 = pneg %p354
        $region62: #{tpu_custom_call.1} parent=11 // pred_check_branch
          %471 = sbr.rel (%p469) target = $region64
        $region63: #{tpu_custom_call.1} parent=11 // pred_region
          _
        $region64: #{tpu_custom_call.1} parent=11 // pred_fallthru
          _
      $region12: #{tpu_custom_call.1} parent=5 // pred_fallthru
        _
      %p472 = scmp.lt.s32.totalorder %s29, 2
      // Predicated region
      $region65: #{tpu_custom_call.1} parent=5 // pred_check
        %p473 = pneg %p472
      $region66: #{tpu_custom_call.1} parent=5 // pred_check_branch
        %475 = sbr.rel (%p473) target = $region68
      $region67: #{tpu_custom_call.1} parent=5 // pred_region
        // Predicated region
        $region69: #{tpu_custom_call.1} parent=67 // pred_check
          %p476 = pneg %p49
        $region70: #{tpu_custom_call.1} parent=67 // pred_check_branch
          %478 = sbr.rel (%p476) target = $region72
        $region71: #{tpu_custom_call.1} parent=67 // pred_region
          %p479 = scmp.lt.s32.totalorder %s29, 1
          %s480 = scalar_select %p479, %s29, 1
          %s481 = smul.addr %s480, 2
          %s482 = smul.addr %s481, 8
          %s483 = scalar_lea.vmem %s0, %s482
        $region72: #{tpu_custom_call.1} parent=67 // pred_fallthru
          _
        // Predicated region
        $region73: #{tpu_custom_call.1} parent=67 // pred_check
          %p484 = pneg %p75
        $region74: #{tpu_custom_call.1} parent=67 // pred_check_branch
          %486 = sbr.rel (%p484) target = $region76
        $region75: #{tpu_custom_call.1} parent=67 // pred_region
          %s487 = sand.u32 %s65, 1
          %s488 = scalar_lea.sflag [#allocation3], %s487
          %s489 = sand.u32 %s65, 1
          %s490 = smul.addr %s489, 8
          %s491 = scalar_lea.vmem [#allocation2], %s490
          %s493 = ssub.s32 128, 128
          %494 = vsyncadd %s488, %s493
          %s495 = smul.addr %s29, 128
          %s496 = scalar_lea.hbm %s1, %s495
          %s498 = sshll.u32 %s491, 4
          %s499 = int_to_ptr.vmem [resolvable:$true] %s498
          %501 = dma.hbm_to_vmem [thread:$0]  %s496, 128, %s499, %s488
        $region76: #{tpu_custom_call.1} parent=67 // pred_fallthru
          _
      $region68: #{tpu_custom_call.1} parent=5 // pred_fallthru
        _
      %p502 = scmp.le.s32.totalorder 1, %s29
      %p503 = scmp.lt.s32.totalorder %s29, 3
      %p504 = pnand %p502, %p503
      %p505 = pneg %p504
      // Predicated region
      $region77: #{tpu_custom_call.1} parent=5 // pred_check
        _
      $region78: #{tpu_custom_call.1} parent=5 // pred_check_branch
        %507 = sbr.rel (%p504) target = $region80
      $region79: #{tpu_custom_call.1} parent=5 // pred_region
        %s508 = ssub.s32 %s29, 1
        %s509 = sand.u32 %s68, 1
        %s510 = scalar_lea.sflag [#allocation3], %s509
        %s511 = sand.u32 %s68, 1
        %s512 = smul.addr %s511, 8
        %s513 = scalar_lea.vmem [#allocation2], %s512
        // Predicated region
        $region81: #{tpu_custom_call.1} parent=79 // pred_check
          %p514 = pneg %p81
        $region82: #{tpu_custom_call.1} parent=79 // pred_check_branch
          %516 = sbr.rel (%p514) target = $region84
        $region83: #{tpu_custom_call.1} parent=79 // pred_region
          %517 = dma.done %s510, 128
        $region84: #{tpu_custom_call.1} parent=79 // pred_fallthru
          _
        // Predicated region
        $region85: #{tpu_custom_call.1} parent=79 // pred_check
          %p518 = pneg %p102
        $region86: #{tpu_custom_call.1} parent=79 // pred_check_branch
          %520 = sbr.rel (%p518) target = $region88
        $region87: #{tpu_custom_call.1} parent=79 // pred_region
          %521 = dma.done [#allocation6], 64
        $region88: #{tpu_custom_call.1} parent=79 // pred_fallthru
          _
        // Predicated region
        $region89: #{tpu_custom_call.1} parent=79 // pred_check
          %p522 = pneg %p207
        $region90: #{tpu_custom_call.1} parent=79 // pred_check_branch
          %524 = sbr.rel (%p522) target = $region92
        $region91: #{tpu_custom_call.1} parent=79 // pred_region
          %525 = dma.done [#allocation6], 512
        $region92: #{tpu_custom_call.1} parent=79 // pred_fallthru
          _
        // Predicated region
        $region93: #{tpu_custom_call.1} parent=79 // pred_check
          %p526 = pneg %p228
        $region94: #{tpu_custom_call.1} parent=79 // pred_check_branch
          %528 = sbr.rel (%p526) target = $region96
        $region95: #{tpu_custom_call.1} parent=79 // pred_region
          %529 = dma.done [#allocation9], 256
        $region96: #{tpu_custom_call.1} parent=79 // pred_fallthru
          _
        // Predicated region
        $region97: #{tpu_custom_call.1} parent=79 // pred_check
          %p530 = pneg %p249
        $region98: #{tpu_custom_call.1} parent=79 // pred_check_branch
          %532 = sbr.rel (%p530) target = $region100
        $region99: #{tpu_custom_call.1} parent=79 // pred_region
          %533 = dma.done [#allocation9], 512
        $region100: #{tpu_custom_call.1} parent=79 // pred_fallthru
          _
        %p534 = scmp.lt.s32.totalorder %s34, 1
        %s535 = scalar_select %p534, %s34, 1
        %s536 = smul.addr %s535, 2
        %s537 = smul.addr %s536, 8
        %s538 = scalar_lea.vmem %s0, %s537
        %p539 = pneg %p55
        %p540 = pneg %p52
        %s541 = sand.u32 %s68, 1
        %s542 = scalar_lea.sflag [#allocation3], %s541
        %s543 = sand.u32 %s68, 1
        %s544 = smul.addr %s543, 8
        %s545 = scalar_lea.vmem [#allocation2], %s544
        %p546 = pneg %p81
        %p547 = pneg %p78
        %p548 = pneg %p102
        %p549 = pneg %p99
        %p550 = pneg %p123
        %p551 = pneg %p120
        %p552 = pneg %p144
        %p553 = pneg %p141
        %p554 = pneg %p165
        %p555 = pneg %p162
        %p556 = pneg %p186
        %p557 = pneg %p183
        %p558 = pneg %p207
        %p559 = pneg %p204
        %p560 = pneg %p228
        %p561 = pneg %p225
        %p562 = pneg %p249
        %p563 = pneg %p246
        %p564 = pneg %p270
        %p565 = pneg %p267
        %p566 = pneg %p291
        %p567 = pneg %p288
        %p568 = pneg %p312
        %p569 = pneg %p309
        %p570 = pneg %p333
        %p571 = pneg %p330
        %p572 = pneg %p354
        %p573 = pneg %p351
        %p574 = pneg %p380
        %p575 = pneg %p377
        %s576 = sand.u32 %s367, 1
        %s577 = scalar_lea.sflag [#allocation4], %s576
        %s578 = sand.u32 %s367, 1
        %s579 = smul.addr %s578, 16
        %s580 = scalar_lea.vmem [#allocation11], %s579
        %p581 = scmp.lt.s32.totalorder %s34, 1
        %s582 = scalar_select %p581, %s34, 1
        %s583 = smul.addr %s582, 2
        %s584 = smul.addr %s583, 8
        %s585 = scalar_lea.vmem %s0, %s584
        %v586 = vld [vmem:[%s585] sm:$0xff]
        %v587 = vld [vmem:[%s585 + $0x8] sm:$0xff]
        %v588 = vld [vmem:[%s513] sm:$0xff]
        %v589 = vld [vmem:[#allocation5] sm:$0x7]
        %v590 = vld [vmem:[%s3] sm:$0x7]
        %vm591 = vcmask 261120
        %v592 = vsel %vm591, %v586, 0.0
        %593 = vadd.xlane.f32.xlu0 %v592
        %v594 = vpop.xlane.xlu0 %593
        %v595 = vsel %vm591, %v587, 0.0
        %596 = vadd.xlane.f32.xlu0 %v595
        %v597 = vpop.xlane.xlu0 %596
        %v598 = vrcp.pop 32.0
        %v599 = vmul.f32 %v594, %v598
        %v600 = vmul.f32 %v597, %v598
        %v601 = vsub.f32 %v586, %v599
        %v602 = vsub.f32 %v587, %v600
        %v603 = vmul.f32 %v601, %v601
        %v604 = vmul.f32 %v602, %v602
        %v605 = vsel %vm591, %v603, 0.0
        %606 = vadd.xlane.f32.xlu0 %v605
        %v607 = vpop.xlane.xlu0 %606
        %v608 = vsel %vm591, %v604, 0.0
        %609 = vadd.xlane.f32.xlu0 %v608
        %v610 = vpop.xlane.xlu0 %609
        %v611 = vmul.f32 %v607, %v598
        %v612 = vmul.f32 %v610, %v598
        %v613 = vadd.f32 %v611, 1e-05
        %v614 = vadd.f32 %v612, 1e-05
        %v615 = vrsqrt.pop %v613
        %v616 = vrsqrt.pop %v614
        %v617 = vmul.f32 %v601, %v615
        %v618 = vmul.f32 %v602, %v616
        %v619 = vlaneseq
        %v620 = vshrl.u32 %v619, 7
        %v621 = vsub.s32 0, %v620
        %v622 = vrot.slane %v589, %v621
        %v623 = vmul.f32 %v617, %v622
        %v624 = vmul.f32 %v618, %v622
        %v625 = vlaneseq
        %v626 = vshrl.u32 %v625, 7
        %v627 = vsub.s32 0, %v626
        %v628 = vrot.slane %v590, %v627
        %v629 = vadd.f32 %v623, %v628
        %v630 = vadd.f32 %v624, %v628
        %v631 = vld [vmem:[%s4] sm:$0xff]
        %v632 = vld [vmem:[%s4 + $0x8] sm:$0xff]
        %v633 = vld [vmem:[%s4 + $0x10] sm:$0xff]
        %v634 = vld [vmem:[%s4 + $0x18] sm:$0xff]
        %v636 = vsel %vm591, %v629, 0
        %v639 = vsel %vm591, %v630, 0
        %641 = vmatprep.subr.mxu0 0.0
        %642 = vmatpush1.msra.mxu0 0.0
        %643 = vmatprep.subr.mxu0 0.0
        %644 = vmatpush1.msra.mxu0 0.0
        %645 = vmatprep.subr.mxu0 0.0
        %646 = vmatpush1.msra.mxu0 0.0
        %647 = vmatprep.subr.mxu0 0.0
        %648 = vmatpush1.msra.mxu0 0.0
        %649 = vmatprep.subr.mxu0 0.0
        %650 = vmatpush1.msra.mxu0 0.0
        %651 = vmatprep.subr.mxu0 0.0
        %652 = vmatpush1.msra.mxu0 0.0
        %653 = vmatprep.subr.mxu0 0.0
        %654 = vmatpush1.msra.mxu0 0.0
        %655 = vmatprep.subr.mxu0 0.0
        %656 = vmatpush1.msra.mxu0 0.0
        %657 = vmatprep.subr.mxu0 0.0
        %658 = vmatpush1.msra.mxu0 0.0
        %659 = vmatprep.subr.mxu0 0.0
        %660 = vmatpush1.msra.mxu0 0.0
        %661 = vmatprep.subr.mxu0 0.0
        %662 = vmatpush1.msra.mxu0 0.0
        %663 = vmatprep.subr.mxu0 0.0
        %664 = vmatpush1.msra.mxu0 0.0
        %665 = vmatprep.subr.mxu0 0.0
        %666 = vmatpush1.msra.mxu0 %v634
        %667 = vmatprep.subr.mxu0 0.0
        %668 = vmatpush1.msra.mxu0 %v633
        %669 = vmatprep.subr.mxu0 0.0
        %670 = vmatpush1.msra.mxu0 %v632
        %671 = vmatprep.subr.mxu0 0.0
        %672 = vmatpush1.msra.mxu0 %v631
        %673 = vmatprep.subr.mxu0 0.0
        %674 = vmatpush2.msra.mxu0 0.0
        %675 = vmatprep.subr.mxu0 0.0
        %676 = vmatpush2.msra.mxu0 0.0
        %677 = vmatprep.subr.mxu0 0.0
        %678 = vmatpush2.msra.mxu0 0.0
        %679 = vmatprep.subr.mxu0 0.0
        %680 = vmatpush2.msra.mxu0 0.0
        %681 = vmatprep.subr.mxu0 0.0
        %682 = vmatpush2.msra.mxu0 0.0
        %683 = vmatprep.subr.mxu0 0.0
        %684 = vmatpush2.msra.mxu0 0.0
        %685 = vmatprep.subr.mxu0 0.0
        %686 = vmatpush2.msra.mxu0 0.0
        %687 = vmatprep.subr.mxu0 0.0
        %688 = vmatpush2.msra.mxu0 0.0
        %689 = vmatprep.subr.mxu0 0.0
        %690 = vmatpush2.msra.mxu0 0.0
        %691 = vmatprep.subr.mxu0 0.0
        %692 = vmatpush2.msra.mxu0 0.0
        %693 = vmatprep.subr.mxu0 0.0
        %694 = vmatpush2.msra.mxu0 0.0
        %695 = vmatprep.subr.mxu0 0.0
        %696 = vmatpush2.msra.mxu0 0.0
        %697 = vmatprep.subr.mxu0 0.0
        %698 = vmatpush2.msra.mxu0 0.0
        %699 = vmatprep.subr.mxu0 0.0
        %700 = vmatpush2.msra.mxu0 0.0
        %701 = vmatprep.subr.mxu0 0.0
        %702 = vmatpush2.msra.mxu0 0.0
        %703 = vmatprep.subr.mxu0 0.0
        %704 = vmatpush2.msra.mxu0 0.0
        %705 = vmatprep.mubr.f32.mxu0 0.0
        %706 = vmatmul.mubr.f32.gmra.mxu0 %v636
        %v707 = vpop.f32.mrf.mxu0
        %v708 = vadd.f32 0.0, %v707
        %v709 = vpop.f32.mrf.mxu0
        %710 = vmatprep.mubr.f32.mxu0 0.0
        %711 = vmatmul.mubr.f32.gmra.mxu0 %v639
        %v712 = vpop.f32.mrf.mxu0
        %v713 = vadd.f32 0.0, %v712
        %v714 = vpop.f32.mrf.mxu0
        %715 = vdwg.mxu0
        %718 = vrot.lane.b32.xlu0 %v708, 96
        %v719 = vpop.permute.xlu0 %718
        %720 = vrot.lane.b32.xlu0 %v713, 96
        %v721 = vpop.permute.xlu0 %720
        %vm722 = vcmask 64512
        %v723 = vsel %vm722, %v708, 0
        %v725 = vsel %vm722, %v713, 0
        %v727 = vsel %vm722, %v719, 0
        %v729 = vsel %vm722, %v721, 0
        %731 = vmatprep.subr.mxu0 0.0
        %732 = vmatpush1.xpose.msra.mxu0 0.0
        %733 = vmatprep.subr.mxu0 0.0
        %734 = vmatpush1.xpose.msra.mxu0 0.0
        %735 = vmatprep.subr.mxu0 0.0
        %736 = vmatpush1.xpose.msra.mxu0 0.0
        %737 = vmatprep.subr.mxu0 0.0
        %738 = vmatpush1.xpose.msra.mxu0 0.0
        %739 = vmatprep.subr.mxu0 0.0
        %740 = vmatpush1.xpose.msra.mxu0 0.0
        %741 = vmatprep.subr.mxu0 0.0
        %742 = vmatpush1.xpose.msra.mxu0 0.0
        %743 = vmatprep.subr.mxu0 0.0
        %744 = vmatpush1.xpose.msra.mxu0 0.0
        %745 = vmatprep.subr.mxu0 0.0
        %746 = vmatpush1.xpose.msra.mxu0 0.0
        %747 = vmatprep.subr.mxu0 0.0
        %748 = vmatpush1.xpose.msra.mxu0 0.0
        %749 = vmatprep.subr.mxu0 0.0
        %750 = vmatpush1.xpose.msra.mxu0 0.0
        %751 = vmatprep.subr.mxu0 0.0
        %752 = vmatpush1.xpose.msra.mxu0 0.0
        %753 = vmatprep.subr.mxu0 0.0
        %754 = vmatpush1.xpose.msra.mxu0 0.0
        %755 = vmatprep.subr.mxu0 0.0
        %756 = vmatpush1.xpose.msra.mxu0 0.0
        %757 = vmatprep.subr.mxu0 0.0
        %758 = vmatpush1.xpose.msra.mxu0 0.0
        %759 = vmatprep.subr.mxu0 0.0
        %760 = vmatpush1.xpose.msra.mxu0 %v729
        %761 = vmatprep.subr.mxu0 0.0
        %762 = vmatpush1.xpose.msra.mxu0 %v727
        %763 = vmatprep.subr.mxu0 0.0
        %764 = vmatpush2.xpose.msra.mxu0 0.0
        %765 = vmatprep.subr.mxu0 0.0
        %766 = vmatpush2.xpose.msra.mxu0 0.0
        %767 = vmatprep.subr.mxu0 0.0
        %768 = vmatpush2.xpose.msra.mxu0 0.0
        %769 = vmatprep.subr.mxu0 0.0
        %770 = vmatpush2.xpose.msra.mxu0 0.0
        %771 = vmatprep.subr.mxu0 0.0
        %772 = vmatpush2.xpose.msra.mxu0 0.0
        %773 = vmatprep.subr.mxu0 0.0
        %774 = vmatpush2.xpose.msra.mxu0 0.0
        %775 = vmatprep.subr.mxu0 0.0
        %776 = vmatpush2.xpose.msra.mxu0 0.0
        %777 = vmatprep.subr.mxu0 0.0
        %778 = vmatpush2.xpose.msra.mxu0 0.0
        %779 = vmatprep.subr.mxu0 0.0
        %780 = vmatpush2.xpose.msra.mxu0 0.0
        %781 = vmatprep.subr.mxu0 0.0
        %782 = vmatpush2.xpose.msra.mxu0 0.0
        %783 = vmatprep.subr.mxu0 0.0
        %784 = vmatpush2.xpose.msra.mxu0 0.0
        %785 = vmatprep.subr.mxu0 0.0
        %786 = vmatpush2.xpose.msra.mxu0 0.0
        %787 = vmatprep.subr.mxu0 0.0
        %788 = vmatpush2.xpose.msra.mxu0 0.0
        %789 = vmatprep.subr.mxu0 0.0
        %790 = vmatpush2.xpose.msra.mxu0 0.0
        %791 = vmatprep.subr.mxu0 0.0
        %792 = vmatpush2.xpose.msra.mxu0 0.0
        %793 = vmatprep.subr.mxu0 0.0
        %794 = vmatpush2.xpose.msra.mxu0 0.0
        %795 = vmatprep.mubr.f32.mxu0 0.0
        %796 = vmatmul.mubr.f32.gmra.mxu0 %v723
        %v797 = vpop.f32.mrf.mxu0
        %v798 = vadd.f32 0.0, %v797
        %v799 = vpop.f32.mrf.mxu0
        %800 = vmatprep.mubr.f32.mxu0 0.0
        %801 = vmatmul.mubr.f32.gmra.mxu0 %v725
        %v802 = vpop.f32.mrf.mxu0
        %v803 = vadd.f32 0.0, %v802
        %v804 = vpop.f32.mrf.mxu0
        %805 = vdwg.mxu0
        %v806 = vmul.f32 %v798, 0.35355338
        %v807 = vmul.f32 %v803, 0.35355338
        %vm808 = vcmask 130048
        %v809 = vsel %vm808, %v806, -inf
        %810 = vmax.xlane.f32.xlu0 %v809
        %v811 = vpop.xlane.xlu0 %810
        %v812 = vsel %vm808, %v807, -inf
        %813 = vmax.xlane.f32.xlu0 %v812
        %v814 = vpop.xlane.xlu0 %813
        %v815 = vsub.f32 %v806, %v811
        %v816 = vsub.f32 %v807, %v814
        %v817 = vmul.f32 %v815, 1.442695
        %v818 = vpow.pop %v817
        %v819 = vmul.f32 %v816, 1.442695
        %v820 = vpow.pop %v819
        %v821 = vsel %vm808, %v818, 0.0
        %822 = vadd.xlane.f32.xlu0 %v821
        %v823 = vpop.xlane.xlu0 %822
        %v824 = vsel %vm808, %v820, 0.0
        %825 = vadd.xlane.f32.xlu0 %v824
        %v826 = vpop.xlane.xlu0 %825
        %v827 = vrcp.pop %v823
        %v828 = vmul.f32 %v818, %v827
        %v829 = vrcp.pop %v826
        %v830 = vmul.f32 %v820, %v829
        %831 = vrot.lane.b32.xlu0 %v708, 64
        %v832 = vpop.permute.xlu0 %831
        %833 = vrot.lane.b32.xlu0 %v713, 64
        %v834 = vpop.permute.xlu0 %833
        %v838 = vsel %vm808, %v828, 0
        %v841 = vsel %vm808, %v830, 0
        %843 = vmatprep.subr.mxu0 0.0
        %844 = vmatpush1.msra.mxu0 0.0
        %845 = vmatprep.subr.mxu0 0.0
        %846 = vmatpush1.msra.mxu0 0.0
        %847 = vmatprep.subr.mxu0 0.0
        %848 = vmatpush1.msra.mxu0 0.0
        %849 = vmatprep.subr.mxu0 0.0
        %850 = vmatpush1.msra.mxu0 0.0
        %851 = vmatprep.subr.mxu0 0.0
        %852 = vmatpush1.msra.mxu0 0.0
        %853 = vmatprep.subr.mxu0 0.0
        %854 = vmatpush1.msra.mxu0 0.0
        %855 = vmatprep.subr.mxu0 0.0
        %856 = vmatpush1.msra.mxu0 0.0
        %857 = vmatprep.subr.mxu0 0.0
        %858 = vmatpush1.msra.mxu0 0.0
        %859 = vmatprep.subr.mxu0 0.0
        %860 = vmatpush1.msra.mxu0 0.0
        %861 = vmatprep.subr.mxu0 0.0
        %862 = vmatpush1.msra.mxu0 0.0
        %863 = vmatprep.subr.mxu0 0.0
        %864 = vmatpush1.msra.mxu0 0.0
        %865 = vmatprep.subr.mxu0 0.0
        %866 = vmatpush1.msra.mxu0 0.0
        %867 = vmatprep.subr.mxu0 0.0
        %868 = vmatpush1.msra.mxu0 0.0
        %869 = vmatprep.subr.mxu0 0.0
        %870 = vmatpush1.msra.mxu0 0.0
        %871 = vmatprep.subr.mxu0 0.0
        %872 = vmatpush1.msra.mxu0 %v834
        %873 = vmatprep.subr.mxu0 0.0
        %874 = vmatpush1.msra.mxu0 %v832
        %875 = vmatprep.subr.mxu0 0.0
        %876 = vmatpush2.msra.mxu0 0.0
        %877 = vmatprep.subr.mxu0 0.0
        %878 = vmatpush2.msra.mxu0 0.0
        %879 = vmatprep.subr.mxu0 0.0
        %880 = vmatpush2.msra.mxu0 0.0
        %881 = vmatprep.subr.mxu0 0.0
        %882 = vmatpush2.msra.mxu0 0.0
        %883 = vmatprep.subr.mxu0 0.0
        %884 = vmatpush2.msra.mxu0 0.0
        %885 = vmatprep.subr.mxu0 0.0
        %886 = vmatpush2.msra.mxu0 0.0
        %887 = vmatprep.subr.mxu0 0.0
        %888 = vmatpush2.msra.mxu0 0.0
        %889 = vmatprep.subr.mxu0 0.0
        %890 = vmatpush2.msra.mxu0 0.0
        %891 = vmatprep.subr.mxu0 0.0
        %892 = vmatpush2.msra.mxu0 0.0
        %893 = vmatprep.subr.mxu0 0.0
        %894 = vmatpush2.msra.mxu0 0.0
        %895 = vmatprep.subr.mxu0 0.0
        %896 = vmatpush2.msra.mxu0 0.0
        %897 = vmatprep.subr.mxu0 0.0
        %898 = vmatpush2.msra.mxu0 0.0
        %899 = vmatprep.subr.mxu0 0.0
        %900 = vmatpush2.msra.mxu0 0.0
        %901 = vmatprep.subr.mxu0 0.0
        %902 = vmatpush2.msra.mxu0 0.0
        %903 = vmatprep.subr.mxu0 0.0
        %904 = vmatpush2.msra.mxu0 0.0
        %905 = vmatprep.subr.mxu0 0.0
        %906 = vmatpush2.msra.mxu0 0.0
        %907 = vmatprep.mubr.f32.mxu0 0.0
        %908 = vmatmul.mubr.f32.gmra.mxu0 %v838
        %v909 = vpop.f32.mrf.mxu0
        %v910 = vadd.f32 0.0, %v909
        %v911 = vpop.f32.mrf.mxu0
        %912 = vmatprep.mubr.f32.mxu0 0.0
        %913 = vmatmul.mubr.f32.gmra.mxu0 %v841
        %v914 = vpop.f32.mrf.mxu0
        %v915 = vadd.f32 0.0, %v914
        %v916 = vpop.f32.mrf.mxu0
        %917 = vdwg.mxu0
        %918 = vrot.lane.b32.xlu0 %v708, 120
        %v919 = vpop.permute.xlu0 %918
        %920 = vrot.lane.b32.xlu0 %v713, 120
        %v921 = vpop.permute.xlu0 %920
        %922 = vrot.lane.b32.xlu0 %v708, 88
        %v923 = vpop.permute.xlu0 %922
        %924 = vrot.lane.b32.xlu0 %v713, 88
        %v925 = vpop.permute.xlu0 %924
        %v926 = vsel %vm722, %v919, 0
        %v928 = vsel %vm722, %v921, 0
        %v930 = vsel %vm722, %v923, 0
        %v932 = vsel %vm722, %v925, 0
        %934 = vmatprep.subr.mxu0 0.0
        %935 = vmatpush1.xpose.msra.mxu0 0.0
        %936 = vmatprep.subr.mxu0 0.0
        %937 = vmatpush1.xpose.msra.mxu0 0.0
        %938 = vmatprep.subr.mxu0 0.0
        %939 = vmatpush1.xpose.msra.mxu0 0.0
        %940 = vmatprep.subr.mxu0 0.0
        %941 = vmatpush1.xpose.msra.mxu0 0.0
        %942 = vmatprep.subr.mxu0 0.0
        %943 = vmatpush1.xpose.msra.mxu0 0.0
        %944 = vmatprep.subr.mxu0 0.0
        %945 = vmatpush1.xpose.msra.mxu0 0.0
        %946 = vmatprep.subr.mxu0 0.0
        %947 = vmatpush1.xpose.msra.mxu0 0.0
        %948 = vmatprep.subr.mxu0 0.0
        %949 = vmatpush1.xpose.msra.mxu0 0.0
        %950 = vmatprep.subr.mxu0 0.0
        %951 = vmatpush1.xpose.msra.mxu0 0.0
        %952 = vmatprep.subr.mxu0 0.0
        %953 = vmatpush1.xpose.msra.mxu0 0.0
        %954 = vmatprep.subr.mxu0 0.0
        %955 = vmatpush1.xpose.msra.mxu0 0.0
        %956 = vmatprep.subr.mxu0 0.0
        %957 = vmatpush1.xpose.msra.mxu0 0.0
        %958 = vmatprep.subr.mxu0 0.0
        %959 = vmatpush1.xpose.msra.mxu0 0.0
        %960 = vmatprep.subr.mxu0 0.0
        %961 = vmatpush1.xpose.msra.mxu0 0.0
        %962 = vmatprep.subr.mxu0 0.0
        %963 = vmatpush1.xpose.msra.mxu0 %v932
        %964 = vmatprep.subr.mxu0 0.0
        %965 = vmatpush1.xpose.msra.mxu0 %v930
        %966 = vmatprep.subr.mxu0 0.0
        %967 = vmatpush2.xpose.msra.mxu0 0.0
        %968 = vmatprep.subr.mxu0 0.0
        %969 = vmatpush2.xpose.msra.mxu0 0.0
        %970 = vmatprep.subr.mxu0 0.0
        %971 = vmatpush2.xpose.msra.mxu0 0.0
        %972 = vmatprep.subr.mxu0 0.0
        %973 = vmatpush2.xpose.msra.mxu0 0.0
        %974 = vmatprep.subr.mxu0 0.0
        %975 = vmatpush2.xpose.msra.mxu0 0.0
        %976 = vmatprep.subr.mxu0 0.0
        %977 = vmatpush2.xpose.msra.mxu0 0.0
        %978 = vmatprep.subr.mxu0 0.0
        %979 = vmatpush2.xpose.msra.mxu0 0.0
        %980 = vmatprep.subr.mxu0 0.0
        %981 = vmatpush2.xpose.msra.mxu0 0.0
        %982 = vmatprep.subr.mxu0 0.0
        %983 = vmatpush2.xpose.msra.mxu0 0.0
        %984 = vmatprep.subr.mxu0 0.0
        %985 = vmatpush2.xpose.msra.mxu0 0.0
        %986 = vmatprep.subr.mxu0 0.0
        %987 = vmatpush2.xpose.msra.mxu0 0.0
        %988 = vmatprep.subr.mxu0 0.0
        %989 = vmatpush2.xpose.msra.mxu0 0.0
        %990 = vmatprep.subr.mxu0 0.0
        %991 = vmatpush2.xpose.msra.mxu0 0.0
        %992 = vmatprep.subr.mxu0 0.0
        %993 = vmatpush2.xpose.msra.mxu0 0.0
        %994 = vmatprep.subr.mxu0 0.0
        %995 = vmatpush2.xpose.msra.mxu0 0.0
        %996 = vmatprep.subr.mxu0 0.0
        %997 = vmatpush2.xpose.msra.mxu0 0.0
        %998 = vmatprep.mubr.f32.mxu0 0.0
        %999 = vmatmul.mubr.f32.gmra.mxu0 %v926
        %v1000 = vpop.f32.mrf.mxu0
        %v1001 = vadd.f32 0.0, %v1000
        %v1002 = vpop.f32.mrf.mxu0
        %1003 = vmatprep.mubr.f32.mxu0 0.0
        %1004 = vmatmul.mubr.f32.gmra.mxu0 %v928
        %v1005 = vpop.f32.mrf.mxu0
        %v1006 = vadd.f32 0.0, %v1005
        %v1007 = vpop.f32.mrf.mxu0
        %1008 = vdwg.mxu0
        %v1009 = vmul.f32 %v1001, 0.35355338
        %v1010 = vmul.f32 %v1006, 0.35355338
        %v1011 = vsel %vm808, %v1009, -inf
        %1012 = vmax.xlane.f32.xlu0 %v1011
        %v1013 = vpop.xlane.xlu0 %1012
        %v1014 = vsel %vm808, %v1010, -inf
        %1015 = vmax.xlane.f32.xlu0 %v1014
        %v1016 = vpop.xlane.xlu0 %1015
        %v1017 = vsub.f32 %v1009, %v1013
        %v1018 = vsub.f32 %v1010, %v1016
        %v1019 = vmul.f32 %v1017, 1.442695
        %v1020 = vpow.pop %v1019
        %v1021 = vmul.f32 %v1018, 1.442695
        %v1022 = vpow.pop %v1021
        %v1023 = vsel %vm808, %v1020, 0.0
        %1024 = vadd.xlane.f32.xlu0 %v1023
        %v1025 = vpop.xlane.xlu0 %1024
        %v1026 = vsel %vm808, %v1022, 0.0
        %1027 = vadd.xlane.f32.xlu0 %v1026
        %v1028 = vpop.xlane.xlu0 %1027
        %v1029 = vrcp.pop %v1025
        %v1030 = vmul.f32 %v1020, %v1029
        %v1031 = vrcp.pop %v1028
        %v1032 = vmul.f32 %v1022, %v1031
        %1033 = vrot.lane.b32.xlu0 %v708, 56
        %v1034 = vpop.permute.xlu0 %1033
        %1035 = vrot.lane.b32.xlu0 %v713, 56
        %v1036 = vpop.permute.xlu0 %1035
        %v1040 = vsel %vm808, %v1030, 0
        %v1043 = vsel %vm808, %v1032, 0
        %1045 = vmatprep.subr.mxu0 0.0
        %1046 = vmatpush1.msra.mxu0 0.0
        %1047 = vmatprep.subr.mxu0 0.0
        %1048 = vmatpush1.msra.mxu0 0.0
        %1049 = vmatprep.subr.mxu0 0.0
        %1050 = vmatpush1.msra.mxu0 0.0
        %1051 = vmatprep.subr.mxu0 0.0
        %1052 = vmatpush1.msra.mxu0 0.0
        %1053 = vmatprep.subr.mxu0 0.0
        %1054 = vmatpush1.msra.mxu0 0.0
        %1055 = vmatprep.subr.mxu0 0.0
        %1056 = vmatpush1.msra.mxu0 0.0
        %1057 = vmatprep.subr.mxu0 0.0
        %1058 = vmatpush1.msra.mxu0 0.0
        %1059 = vmatprep.subr.mxu0 0.0
        %1060 = vmatpush1.msra.mxu0 0.0
        %1061 = vmatprep.subr.mxu0 0.0
        %1062 = vmatpush1.msra.mxu0 0.0
        %1063 = vmatprep.subr.mxu0 0.0
        %1064 = vmatpush1.msra.mxu0 0.0
        %1065 = vmatprep.subr.mxu0 0.0
        %1066 = vmatpush1.msra.mxu0 0.0
        %1067 = vmatprep.subr.mxu0 0.0
        %1068 = vmatpush1.msra.mxu0 0.0
        %1069 = vmatprep.subr.mxu0 0.0
        %1070 = vmatpush1.msra.mxu0 0.0
        %1071 = vmatprep.subr.mxu0 0.0
        %1072 = vmatpush1.msra.mxu0 0.0
        %1073 = vmatprep.subr.mxu0 0.0
        %1074 = vmatpush1.msra.mxu0 %v1036
        %1075 = vmatprep.subr.mxu0 0.0
        %1076 = vmatpush1.msra.mxu0 %v1034
        %1077 = vmatprep.subr.mxu0 0.0
        %1078 = vmatpush2.msra.mxu0 0.0
        %1079 = vmatprep.subr.mxu0 0.0
        %1080 = vmatpush2.msra.mxu0 0.0
        %1081 = vmatprep.subr.mxu0 0.0
        %1082 = vmatpush2.msra.mxu0 0.0
        %1083 = vmatprep.subr.mxu0 0.0
        %1084 = vmatpush2.msra.mxu0 0.0
        %1085 = vmatprep.subr.mxu0 0.0
        %1086 = vmatpush2.msra.mxu0 0.0
        %1087 = vmatprep.subr.mxu0 0.0
        %1088 = vmatpush2.msra.mxu0 0.0
        %1089 = vmatprep.subr.mxu0 0.0
        %1090 = vmatpush2.msra.mxu0 0.0
        %1091 = vmatprep.subr.mxu0 0.0
        %1092 = vmatpush2.msra.mxu0 0.0
        %1093 = vmatprep.subr.mxu0 0.0
        %1094 = vmatpush2.msra.mxu0 0.0
        %1095 = vmatprep.subr.mxu0 0.0
        %1096 = vmatpush2.msra.mxu0 0.0
        %1097 = vmatprep.subr.mxu0 0.0
        %1098 = vmatpush2.msra.mxu0 0.0
        %1099 = vmatprep.subr.mxu0 0.0
        %1100 = vmatpush2.msra.mxu0 0.0
        %1101 = vmatprep.subr.mxu0 0.0
        %1102 = vmatpush2.msra.mxu0 0.0
        %1103 = vmatprep.subr.mxu0 0.0
        %1104 = vmatpush2.msra.mxu0 0.0
        %1105 = vmatprep.subr.mxu0 0.0
        %1106 = vmatpush2.msra.mxu0 0.0
        %1107 = vmatprep.subr.mxu0 0.0
        %1108 = vmatpush2.msra.mxu0 0.0
        %1109 = vmatprep.mubr.f32.mxu0 0.0
        %1110 = vmatmul.mubr.f32.gmra.mxu0 %v1040
        %v1111 = vpop.f32.mrf.mxu0
        %v1112 = vadd.f32 0.0, %v1111
        %v1113 = vpop.f32.mrf.mxu0
        %1114 = vmatprep.mubr.f32.mxu0 0.0
        %1115 = vmatmul.mubr.f32.gmra.mxu0 %v1043
        %v1116 = vpop.f32.mrf.mxu0
        %v1117 = vadd.f32 0.0, %v1116
        %v1118 = vpop.f32.mrf.mxu0
        %1119 = vdwg.mxu0
        %1120 = vrot.lane.b32.xlu0 %v708, 112
        %v1121 = vpop.permute.xlu0 %1120
        %1122 = vrot.lane.b32.xlu0 %v713, 112
        %v1123 = vpop.permute.xlu0 %1122
        %1124 = vrot.lane.b32.xlu0 %v708, 80
        %v1125 = vpop.permute.xlu0 %1124
        %1126 = vrot.lane.b32.xlu0 %v713, 80
        %v1127 = vpop.permute.xlu0 %1126
        %v1128 = vsel %vm722, %v1121, 0
        %v1130 = vsel %vm722, %v1123, 0
        %v1132 = vsel %vm722, %v1125, 0
        %v1134 = vsel %vm722, %v1127, 0
        %1136 = vmatprep.subr.mxu0 0.0
        %1137 = vmatpush1.xpose.msra.mxu0 0.0
        %1138 = vmatprep.subr.mxu0 0.0
        %1139 = vmatpush1.xpose.msra.mxu0 0.0
        %1140 = vmatprep.subr.mxu0 0.0
        %1141 = vmatpush1.xpose.msra.mxu0 0.0
        %1142 = vmatprep.subr.mxu0 0.0
        %1143 = vmatpush1.xpose.msra.mxu0 0.0
        %1144 = vmatprep.subr.mxu0 0.0
        %1145 = vmatpush1.xpose.msra.mxu0 0.0
        %1146 = vmatprep.subr.mxu0 0.0
        %1147 = vmatpush1.xpose.msra.mxu0 0.0
        %1148 = vmatprep.subr.mxu0 0.0
        %1149 = vmatpush1.xpose.msra.mxu0 0.0
        %1150 = vmatprep.subr.mxu0 0.0
        %1151 = vmatpush1.xpose.msra.mxu0 0.0
        %1152 = vmatprep.subr.mxu0 0.0
        %1153 = vmatpush1.xpose.msra.mxu0 0.0
        %1154 = vmatprep.subr.mxu0 0.0
        %1155 = vmatpush1.xpose.msra.mxu0 0.0
        %1156 = vmatprep.subr.mxu0 0.0
        %1157 = vmatpush1.xpose.msra.mxu0 0.0
        %1158 = vmatprep.subr.mxu0 0.0
        %1159 = vmatpush1.xpose.msra.mxu0 0.0
        %1160 = vmatprep.subr.mxu0 0.0
        %1161 = vmatpush1.xpose.msra.mxu0 0.0
        %1162 = vmatprep.subr.mxu0 0.0
        %1163 = vmatpush1.xpose.msra.mxu0 0.0
        %1164 = vmatprep.subr.mxu0 0.0
        %1165 = vmatpush1.xpose.msra.mxu0 %v1134
        %1166 = vmatprep.subr.mxu0 0.0
        %1167 = vmatpush1.xpose.msra.mxu0 %v1132
        %1168 = vmatprep.subr.mxu0 0.0
        %1169 = vmatpush2.xpose.msra.mxu0 0.0
        %1170 = vmatprep.subr.mxu0 0.0
        %1171 = vmatpush2.xpose.msra.mxu0 0.0
        %1172 = vmatprep.subr.mxu0 0.0
        %1173 = vmatpush2.xpose.msra.mxu0 0.0
        %1174 = vmatprep.subr.mxu0 0.0
        %1175 = vmatpush2.xpose.msra.mxu0 0.0
        %1176 = vmatprep.subr.mxu0 0.0
        %1177 = vmatpush2.xpose.msra.mxu0 0.0
        %1178 = vmatprep.subr.mxu0 0.0
        %1179 = vmatpush2.xpose.msra.mxu0 0.0
        %1180 = vmatprep.subr.mxu0 0.0
        %1181 = vmatpush2.xpose.msra.mxu0 0.0
        %1182 = vmatprep.subr.mxu0 0.0
        %1183 = vmatpush2.xpose.msra.mxu0 0.0
        %1184 = vmatprep.subr.mxu0 0.0
        %1185 = vmatpush2.xpose.msra.mxu0 0.0
        %1186 = vmatprep.subr.mxu0 0.0
        %1187 = vmatpush2.xpose.msra.mxu0 0.0
        %1188 = vmatprep.subr.mxu0 0.0
        %1189 = vmatpush2.xpose.msra.mxu0 0.0
        %1190 = vmatprep.subr.mxu0 0.0
        %1191 = vmatpush2.xpose.msra.mxu0 0.0
        %1192 = vmatprep.subr.mxu0 0.0
        %1193 = vmatpush2.xpose.msra.mxu0 0.0
        %1194 = vmatprep.subr.mxu0 0.0
        %1195 = vmatpush2.xpose.msra.mxu0 0.0
        %1196 = vmatprep.subr.mxu0 0.0
        %1197 = vmatpush2.xpose.msra.mxu0 0.0
        %1198 = vmatprep.subr.mxu0 0.0
        %1199 = vmatpush2.xpose.msra.mxu0 0.0
        %1200 = vmatprep.mubr.f32.mxu0 0.0
        %1201 = vmatmul.mubr.f32.gmra.mxu0 %v1128
        %v1202 = vpop.f32.mrf.mxu0
        %v1203 = vadd.f32 0.0, %v1202
        %v1204 = vpop.f32.mrf.mxu0
        %1205 = vmatprep.mubr.f32.mxu0 0.0
        %1206 = vmatmul.mubr.f32.gmra.mxu0 %v1130
        %v1207 = vpop.f32.mrf.mxu0
        %v1208 = vadd.f32 0.0, %v1207
        %v1209 = vpop.f32.mrf.mxu0
        %1210 = vdwg.mxu0
        %v1211 = vmul.f32 %v1203, 0.35355338
        %v1212 = vmul.f32 %v1208, 0.35355338
        %v1213 = vsel %vm808, %v1211, -inf
        %1214 = vmax.xlane.f32.xlu0 %v1213
        %v1215 = vpop.xlane.xlu0 %1214
        %v1216 = vsel %vm808, %v1212, -inf
        %1217 = vmax.xlane.f32.xlu0 %v1216
        %v1218 = vpop.xlane.xlu0 %1217
        %v1219 = vsub.f32 %v1211, %v1215
        %v1220 = vsub.f32 %v1212, %v1218
        %v1221 = vmul.f32 %v1219, 1.442695
        %v1222 = vpow.pop %v1221
        %v1223 = vmul.f32 %v1220, 1.442695
        %v1224 = vpow.pop %v1223
        %v1225 = vsel %vm808, %v1222, 0.0
        %1226 = vadd.xlane.f32.xlu0 %v1225
        %v1227 = vpop.xlane.xlu0 %1226
        %v1228 = vsel %vm808, %v1224, 0.0
        %1229 = vadd.xlane.f32.xlu0 %v1228
        %v1230 = vpop.xlane.xlu0 %1229
        %v1231 = vrcp.pop %v1227
        %v1232 = vmul.f32 %v1222, %v1231
        %v1233 = vrcp.pop %v1230
        %v1234 = vmul.f32 %v1224, %v1233
        %1235 = vrot.lane.b32.xlu0 %v708, 48
        %v1236 = vpop.permute.xlu0 %1235
        %1237 = vrot.lane.b32.xlu0 %v713, 48
        %v1238 = vpop.permute.xlu0 %1237
        %v1242 = vsel %vm808, %v1232, 0
        %v1245 = vsel %vm808, %v1234, 0
        %1247 = vmatprep.subr.mxu0 0.0
        %1248 = vmatpush1.msra.mxu0 0.0
        %1249 = vmatprep.subr.mxu0 0.0
        %1250 = vmatpush1.msra.mxu0 0.0
        %1251 = vmatprep.subr.mxu0 0.0
        %1252 = vmatpush1.msra.mxu0 0.0
        %1253 = vmatprep.subr.mxu0 0.0
        %1254 = vmatpush1.msra.mxu0 0.0
        %1255 = vmatprep.subr.mxu0 0.0
        %1256 = vmatpush1.msra.mxu0 0.0
        %1257 = vmatprep.subr.mxu0 0.0
        %1258 = vmatpush1.msra.mxu0 0.0
        %1259 = vmatprep.subr.mxu0 0.0
        %1260 = vmatpush1.msra.mxu0 0.0
        %1261 = vmatprep.subr.mxu0 0.0
        %1262 = vmatpush1.msra.mxu0 0.0
        %1263 = vmatprep.subr.mxu0 0.0
        %1264 = vmatpush1.msra.mxu0 0.0
        %1265 = vmatprep.subr.mxu0 0.0
        %1266 = vmatpush1.msra.mxu0 0.0
        %1267 = vmatprep.subr.mxu0 0.0
        %1268 = vmatpush1.msra.mxu0 0.0
        %1269 = vmatprep.subr.mxu0 0.0
        %1270 = vmatpush1.msra.mxu0 0.0
        %1271 = vmatprep.subr.mxu0 0.0
        %1272 = vmatpush1.msra.mxu0 0.0
        %1273 = vmatprep.subr.mxu0 0.0
        %1274 = vmatpush1.msra.mxu0 0.0
        %1275 = vmatprep.subr.mxu0 0.0
        %1276 = vmatpush1.msra.mxu0 %v1238
        %1277 = vmatprep.subr.mxu0 0.0
        %1278 = vmatpush1.msra.mxu0 %v1236
        %1279 = vmatprep.subr.mxu0 0.0
        %1280 = vmatpush2.msra.mxu0 0.0
        %1281 = vmatprep.subr.mxu0 0.0
        %1282 = vmatpush2.msra.mxu0 0.0
        %1283 = vmatprep.subr.mxu0 0.0
        %1284 = vmatpush2.msra.mxu0 0.0
        %1285 = vmatprep.subr.mxu0 0.0
        %1286 = vmatpush2.msra.mxu0 0.0
        %1287 = vmatprep.subr.mxu0 0.0
        %1288 = vmatpush2.msra.mxu0 0.0
        %1289 = vmatprep.subr.mxu0 0.0
        %1290 = vmatpush2.msra.mxu0 0.0
        %1291 = vmatprep.subr.mxu0 0.0
        %1292 = vmatpush2.msra.mxu0 0.0
        %1293 = vmatprep.subr.mxu0 0.0
        %1294 = vmatpush2.msra.mxu0 0.0
        %1295 = vmatprep.subr.mxu0 0.0
        %1296 = vmatpush2.msra.mxu0 0.0
        %1297 = vmatprep.subr.mxu0 0.0
        %1298 = vmatpush2.msra.mxu0 0.0
        %1299 = vmatprep.subr.mxu0 0.0
        %1300 = vmatpush2.msra.mxu0 0.0
        %1301 = vmatprep.subr.mxu0 0.0
        %1302 = vmatpush2.msra.mxu0 0.0
        %1303 = vmatprep.subr.mxu0 0.0
        %1304 = vmatpush2.msra.mxu0 0.0
        %1305 = vmatprep.subr.mxu0 0.0
        %1306 = vmatpush2.msra.mxu0 0.0
        %1307 = vmatprep.subr.mxu0 0.0
        %1308 = vmatpush2.msra.mxu0 0.0
        %1309 = vmatprep.subr.mxu0 0.0
        %1310 = vmatpush2.msra.mxu0 0.0
        %1311 = vmatprep.mubr.f32.mxu0 0.0
        %1312 = vmatmul.mubr.f32.gmra.mxu0 %v1242
        %v1313 = vpop.f32.mrf.mxu0
        %v1314 = vadd.f32 0.0, %v1313
        %v1315 = vpop.f32.mrf.mxu0
        %1316 = vmatprep.mubr.f32.mxu0 0.0
        %1317 = vmatmul.mubr.f32.gmra.mxu0 %v1245
        %v1318 = vpop.f32.mrf.mxu0
        %v1319 = vadd.f32 0.0, %v1318
        %v1320 = vpop.f32.mrf.mxu0
        %1321 = vdwg.mxu0
        %1322 = vrot.lane.b32.xlu0 %v708, 104
        %v1323 = vpop.permute.xlu0 %1322
        %1324 = vrot.lane.b32.xlu0 %v713, 104
        %v1325 = vpop.permute.xlu0 %1324
        %1326 = vrot.lane.b32.xlu0 %v708, 72
        %v1327 = vpop.permute.xlu0 %1326
        %1328 = vrot.lane.b32.xlu0 %v713, 72
        %v1329 = vpop.permute.xlu0 %1328
        %v1330 = vsel %vm722, %v1323, 0
        %v1332 = vsel %vm722, %v1325, 0
        %v1334 = vsel %vm722, %v1327, 0
        %v1336 = vsel %vm722, %v1329, 0
        %1338 = vmatprep.subr.mxu0 0.0
        %1339 = vmatpush1.xpose.msra.mxu0 0.0
        %1340 = vmatprep.subr.mxu0 0.0
        %1341 = vmatpush1.xpose.msra.mxu0 0.0
        %1342 = vmatprep.subr.mxu0 0.0
        %1343 = vmatpush1.xpose.msra.mxu0 0.0
        %1344 = vmatprep.subr.mxu0 0.0
        %1345 = vmatpush1.xpose.msra.mxu0 0.0
        %1346 = vmatprep.subr.mxu0 0.0
        %1347 = vmatpush1.xpose.msra.mxu0 0.0
        %1348 = vmatprep.subr.mxu0 0.0
        %1349 = vmatpush1.xpose.msra.mxu0 0.0
        %1350 = vmatprep.subr.mxu0 0.0
        %1351 = vmatpush1.xpose.msra.mxu0 0.0
        %1352 = vmatprep.subr.mxu0 0.0
        %1353 = vmatpush1.xpose.msra.mxu0 0.0
        %1354 = vmatprep.subr.mxu0 0.0
        %1355 = vmatpush1.xpose.msra.mxu0 0.0
        %1356 = vmatprep.subr.mxu0 0.0
        %1357 = vmatpush1.xpose.msra.mxu0 0.0
        %1358 = vmatprep.subr.mxu0 0.0
        %1359 = vmatpush1.xpose.msra.mxu0 0.0
        %1360 = vmatprep.subr.mxu0 0.0
        %1361 = vmatpush1.xpose.msra.mxu0 0.0
        %1362 = vmatprep.subr.mxu0 0.0
        %1363 = vmatpush1.xpose.msra.mxu0 0.0
        %1364 = vmatprep.subr.mxu0 0.0
        %1365 = vmatpush1.xpose.msra.mxu0 0.0
        %1366 = vmatprep.subr.mxu0 0.0
        %1367 = vmatpush1.xpose.msra.mxu0 %v1336
        %1368 = vmatprep.subr.mxu0 0.0
        %1369 = vmatpush1.xpose.msra.mxu0 %v1334
        %1370 = vmatprep.subr.mxu0 0.0
        %1371 = vmatpush2.xpose.msra.mxu0 0.0
        %1372 = vmatprep.subr.mxu0 0.0
        %1373 = vmatpush2.xpose.msra.mxu0 0.0
        %1374 = vmatprep.subr.mxu0 0.0
        %1375 = vmatpush2.xpose.msra.mxu0 0.0
        %1376 = vmatprep.subr.mxu0 0.0
        %1377 = vmatpush2.xpose.msra.mxu0 0.0
        %1378 = vmatprep.subr.mxu0 0.0
        %1379 = vmatpush2.xpose.msra.mxu0 0.0
        %1380 = vmatprep.subr.mxu0 0.0
        %1381 = vmatpush2.xpose.msra.mxu0 0.0
        %1382 = vmatprep.subr.mxu0 0.0
        %1383 = vmatpush2.xpose.msra.mxu0 0.0
        %1384 = vmatprep.subr.mxu0 0.0
        %1385 = vmatpush2.xpose.msra.mxu0 0.0
        %1386 = vmatprep.subr.mxu0 0.0
        %1387 = vmatpush2.xpose.msra.mxu0 0.0
        %1388 = vmatprep.subr.mxu0 0.0
        %1389 = vmatpush2.xpose.msra.mxu0 0.0
        %1390 = vmatprep.subr.mxu0 0.0
        %1391 = vmatpush2.xpose.msra.mxu0 0.0
        %1392 = vmatprep.subr.mxu0 0.0
        %1393 = vmatpush2.xpose.msra.mxu0 0.0
        %1394 = vmatprep.subr.mxu0 0.0
        %1395 = vmatpush2.xpose.msra.mxu0 0.0
        %1396 = vmatprep.subr.mxu0 0.0
        %1397 = vmatpush2.xpose.msra.mxu0 0.0
        %1398 = vmatprep.subr.mxu0 0.0
        %1399 = vmatpush2.xpose.msra.mxu0 0.0
        %1400 = vmatprep.subr.mxu0 0.0
        %1401 = vmatpush2.xpose.msra.mxu0 0.0
        %1402 = vmatprep.mubr.f32.mxu0 0.0
        %1403 = vmatmul.mubr.f32.gmra.mxu0 %v1330
        %v1404 = vpop.f32.mrf.mxu0
        %v1405 = vadd.f32 0.0, %v1404
        %v1406 = vpop.f32.mrf.mxu0
        %1407 = vmatprep.mubr.f32.mxu0 0.0
        %1408 = vmatmul.mubr.f32.gmra.mxu0 %v1332
        %v1409 = vpop.f32.mrf.mxu0
        %v1410 = vadd.f32 0.0, %v1409
        %v1411 = vpop.f32.mrf.mxu0
        %1412 = vdwg.mxu0
        %v1413 = vmul.f32 %v1405, 0.35355338
        %v1414 = vmul.f32 %v1410, 0.35355338
        %v1415 = vsel %vm808, %v1413, -inf
        %1416 = vmax.xlane.f32.xlu0 %v1415
        %v1417 = vpop.xlane.xlu0 %1416
        %v1418 = vsel %vm808, %v1414, -inf
        %1419 = vmax.xlane.f32.xlu0 %v1418
        %v1420 = vpop.xlane.xlu0 %1419
        %v1421 = vsub.f32 %v1413, %v1417
        %v1422 = vsub.f32 %v1414, %v1420
        %v1423 = vmul.f32 %v1421, 1.442695
        %v1424 = vpow.pop %v1423
        %v1425 = vmul.f32 %v1422, 1.442695
        %v1426 = vpow.pop %v1425
        %v1427 = vsel %vm808, %v1424, 0.0
        %1428 = vadd.xlane.f32.xlu0 %v1427
        %v1429 = vpop.xlane.xlu0 %1428
        %v1430 = vsel %vm808, %v1426, 0.0
        %1431 = vadd.xlane.f32.xlu0 %v1430
        %v1432 = vpop.xlane.xlu0 %1431
        %v1433 = vrcp.pop %v1429
        %v1434 = vmul.f32 %v1424, %v1433
        %v1435 = vrcp.pop %v1432
        %v1436 = vmul.f32 %v1426, %v1435
        %1437 = vrot.lane.b32.xlu0 %v708, 40
        %v1438 = vpop.permute.xlu0 %1437
        %1439 = vrot.lane.b32.xlu0 %v713, 40
        %v1440 = vpop.permute.xlu0 %1439
        %v1444 = vsel %vm808, %v1434, 0
        %v1447 = vsel %vm808, %v1436, 0
        %1449 = vmatprep.subr.mxu0 0.0
        %1450 = vmatpush1.msra.mxu0 0.0
        %1451 = vmatprep.subr.mxu0 0.0
        %1452 = vmatpush1.msra.mxu0 0.0
        %1453 = vmatprep.subr.mxu0 0.0
        %1454 = vmatpush1.msra.mxu0 0.0
        %1455 = vmatprep.subr.mxu0 0.0
        %1456 = vmatpush1.msra.mxu0 0.0
        %1457 = vmatprep.subr.mxu0 0.0
        %1458 = vmatpush1.msra.mxu0 0.0
        %1459 = vmatprep.subr.mxu0 0.0
        %1460 = vmatpush1.msra.mxu0 0.0
        %1461 = vmatprep.subr.mxu0 0.0
        %1462 = vmatpush1.msra.mxu0 0.0
        %1463 = vmatprep.subr.mxu0 0.0
        %1464 = vmatpush1.msra.mxu0 0.0
        %1465 = vmatprep.subr.mxu0 0.0
        %1466 = vmatpush1.msra.mxu0 0.0
        %1467 = vmatprep.subr.mxu0 0.0
        %1468 = vmatpush1.msra.mxu0 0.0
        %1469 = vmatprep.subr.mxu0 0.0
        %1470 = vmatpush1.msra.mxu0 0.0
        %1471 = vmatprep.subr.mxu0 0.0
        %1472 = vmatpush1.msra.mxu0 0.0
        %1473 = vmatprep.subr.mxu0 0.0
        %1474 = vmatpush1.msra.mxu0 0.0
        %1475 = vmatprep.subr.mxu0 0.0
        %1476 = vmatpush1.msra.mxu0 0.0
        %1477 = vmatprep.subr.mxu0 0.0
        %1478 = vmatpush1.msra.mxu0 %v1440
        %1479 = vmatprep.subr.mxu0 0.0
        %1480 = vmatpush1.msra.mxu0 %v1438
        %1481 = vmatprep.subr.mxu0 0.0
        %1482 = vmatpush2.msra.mxu0 0.0
        %1483 = vmatprep.subr.mxu0 0.0
        %1484 = vmatpush2.msra.mxu0 0.0
        %1485 = vmatprep.subr.mxu0 0.0
        %1486 = vmatpush2.msra.mxu0 0.0
        %1487 = vmatprep.subr.mxu0 0.0
        %1488 = vmatpush2.msra.mxu0 0.0
        %1489 = vmatprep.subr.mxu0 0.0
        %1490 = vmatpush2.msra.mxu0 0.0
        %1491 = vmatprep.subr.mxu0 0.0
        %1492 = vmatpush2.msra.mxu0 0.0
        %1493 = vmatprep.subr.mxu0 0.0
        %1494 = vmatpush2.msra.mxu0 0.0
        %1495 = vmatprep.subr.mxu0 0.0
        %1496 = vmatpush2.msra.mxu0 0.0
        %1497 = vmatprep.subr.mxu0 0.0
        %1498 = vmatpush2.msra.mxu0 0.0
        %1499 = vmatprep.subr.mxu0 0.0
        %1500 = vmatpush2.msra.mxu0 0.0
        %1501 = vmatprep.subr.mxu0 0.0
        %1502 = vmatpush2.msra.mxu0 0.0
        %1503 = vmatprep.subr.mxu0 0.0
        %1504 = vmatpush2.msra.mxu0 0.0
        %1505 = vmatprep.subr.mxu0 0.0
        %1506 = vmatpush2.msra.mxu0 0.0
        %1507 = vmatprep.subr.mxu0 0.0
        %1508 = vmatpush2.msra.mxu0 0.0
        %1509 = vmatprep.subr.mxu0 0.0
        %1510 = vmatpush2.msra.mxu0 0.0
        %1511 = vmatprep.subr.mxu0 0.0
        %1512 = vmatpush2.msra.mxu0 0.0
        %1513 = vmatprep.mubr.f32.mxu0 0.0
        %1514 = vmatmul.mubr.f32.gmra.mxu0 %v1444
        %v1515 = vpop.f32.mrf.mxu0
        %v1516 = vadd.f32 0.0, %v1515
        %v1517 = vpop.f32.mrf.mxu0
        %1518 = vmatprep.mubr.f32.mxu0 0.0
        %1519 = vmatmul.mubr.f32.gmra.mxu0 %v1447
        %v1520 = vpop.f32.mrf.mxu0
        %v1521 = vadd.f32 0.0, %v1520
        %v1522 = vpop.f32.mrf.mxu0
        %1523 = vdwg.mxu0
        %1526 = vrot.lane.b32.xlu0 %v1112, 8
        %v1527 = vpop.permute.xlu0 %1526
        %1528 = vrot.lane.b32.xlu0 %v1117, 8
        %v1529 = vpop.permute.xlu0 %1528
        %1534 = vrot.lane.b32.xlu0 %v1314, 16
        %v1535 = vpop.permute.xlu0 %1534
        %1536 = vrot.lane.b32.xlu0 %v1319, 16
        %v1537 = vpop.permute.xlu0 %1536
        %1542 = vrot.lane.b32.xlu0 %v1516, 24
        %v1543 = vpop.permute.xlu0 %1542
        %1544 = vrot.lane.b32.xlu0 %v1521, 24
        %v1545 = vpop.permute.xlu0 %1544
        %v1548 = vsel %vm722, %v910, %v1527
        %v1549 = vsel %vm722, %v915, %v1529
        %v1550 = vsel %vm808, %v1548, %v1535
        %v1551 = vsel %vm808, %v1549, %v1537
        %vm1552 = vcmask 195584
        %v1553 = vsel %vm1552, %v1550, %v1543
        %v1554 = vsel %vm1552, %v1551, %v1545
        %v1555 = vld [vmem:[%s5] sm:$0xff]
        %v1556 = vld [vmem:[%s5 + $0x8] sm:$0xff]
        %v1557 = vld [vmem:[%s5 + $0x10] sm:$0xff]
        %v1558 = vld [vmem:[%s5 + $0x18] sm:$0xff]
        %v1560 = vsel %vm591, %v1553, 0
        %v1563 = vsel %vm591, %v1554, 0
        %1565 = vmatprep.subr.mxu0 0.0
        %1566 = vmatpush1.msra.mxu0 0.0
        %1567 = vmatprep.subr.mxu0 0.0
        %1568 = vmatpush1.msra.mxu0 0.0
        %1569 = vmatprep.subr.mxu0 0.0
        %1570 = vmatpush1.msra.mxu0 0.0
        %1571 = vmatprep.subr.mxu0 0.0
        %1572 = vmatpush1.msra.mxu0 0.0
        %1573 = vmatprep.subr.mxu0 0.0
        %1574 = vmatpush1.msra.mxu0 0.0
        %1575 = vmatprep.subr.mxu0 0.0
        %1576 = vmatpush1.msra.mxu0 0.0
        %1577 = vmatprep.subr.mxu0 0.0
        %1578 = vmatpush1.msra.mxu0 0.0
        %1579 = vmatprep.subr.mxu0 0.0
        %1580 = vmatpush1.msra.mxu0 0.0
        %1581 = vmatprep.subr.mxu0 0.0
        %1582 = vmatpush1.msra.mxu0 0.0
        %1583 = vmatprep.subr.mxu0 0.0
        %1584 = vmatpush1.msra.mxu0 0.0
        %1585 = vmatprep.subr.mxu0 0.0
        %1586 = vmatpush1.msra.mxu0 0.0
        %1587 = vmatprep.subr.mxu0 0.0
        %1588 = vmatpush1.msra.mxu0 0.0
        %1589 = vmatprep.subr.mxu0 0.0
        %1590 = vmatpush1.msra.mxu0 %v1558
        %1591 = vmatprep.subr.mxu0 0.0
        %1592 = vmatpush1.msra.mxu0 %v1557
        %1593 = vmatprep.subr.mxu0 0.0
        %1594 = vmatpush1.msra.mxu0 %v1556
        %1595 = vmatprep.subr.mxu0 0.0
        %1596 = vmatpush1.msra.mxu0 %v1555
        %1597 = vmatprep.subr.mxu0 0.0
        %1598 = vmatpush2.msra.mxu0 0.0
        %1599 = vmatprep.subr.mxu0 0.0
        %1600 = vmatpush2.msra.mxu0 0.0
        %1601 = vmatprep.subr.mxu0 0.0
        %1602 = vmatpush2.msra.mxu0 0.0
        %1603 = vmatprep.subr.mxu0 0.0
        %1604 = vmatpush2.msra.mxu0 0.0
        %1605 = vmatprep.subr.mxu0 0.0
        %1606 = vmatpush2.msra.mxu0 0.0
        %1607 = vmatprep.subr.mxu0 0.0
        %1608 = vmatpush2.msra.mxu0 0.0
        %1609 = vmatprep.subr.mxu0 0.0
        %1610 = vmatpush2.msra.mxu0 0.0
        %1611 = vmatprep.subr.mxu0 0.0
        %1612 = vmatpush2.msra.mxu0 0.0
        %1613 = vmatprep.subr.mxu0 0.0
        %1614 = vmatpush2.msra.mxu0 0.0
        %1615 = vmatprep.subr.mxu0 0.0
        %1616 = vmatpush2.msra.mxu0 0.0
        %1617 = vmatprep.subr.mxu0 0.0
        %1618 = vmatpush2.msra.mxu0 0.0
        %1619 = vmatprep.subr.mxu0 0.0
        %1620 = vmatpush2.msra.mxu0 0.0
        %1621 = vmatprep.subr.mxu0 0.0
        %1622 = vmatpush2.msra.mxu0 0.0
        %1623 = vmatprep.subr.mxu0 0.0
        %1624 = vmatpush2.msra.mxu0 0.0
        %1625 = vmatprep.subr.mxu0 0.0
        %1626 = vmatpush2.msra.mxu0 0.0
        %1627 = vmatprep.subr.mxu0 0.0
        %1628 = vmatpush2.msra.mxu0 0.0
        %1629 = vmatprep.mubr.f32.mxu0 0.0
        %1630 = vmatmul.mubr.f32.gmra.mxu0 %v1560
        %v1631 = vpop.f32.mrf.mxu0
        %v1632 = vadd.f32 0.0, %v1631
        %v1633 = vpop.f32.mrf.mxu0
        %1634 = vmatprep.mubr.f32.mxu0 0.0
        %1635 = vmatmul.mubr.f32.gmra.mxu0 %v1563
        %v1636 = vpop.f32.mrf.mxu0
        %v1637 = vadd.f32 0.0, %v1636
        %v1638 = vpop.f32.mrf.mxu0
        %1639 = vdwg.mxu0
        %v1640 = vadd.f32 %v586, %v1632
        %v1641 = vadd.f32 %v587, %v1637
        %v1642 = vld [vmem:[%s6] sm:$0x1]
        %v1644 = vlaneseq
        %v1645 = vshrl.u32 %v1644, 7
        %v1646 = vsub.s32 0, %v1645
        %v1647 = vrot.slane %v1642, %v1646
        %v1649 = vadd.f32 %v1640, %v1647
        %v1650 = vadd.f32 %v1641, %v1647
        %v1651 = vsel %vm591, %v1649, 0.0
        %1652 = vadd.xlane.f32.xlu0 %v1651
        %v1653 = vpop.xlane.xlu0 %1652
        %v1654 = vsel %vm591, %v1650, 0.0
        %1655 = vadd.xlane.f32.xlu0 %v1654
        %v1656 = vpop.xlane.xlu0 %1655
        %v1657 = vmul.f32 %v1653, %v598
        %v1658 = vmul.f32 %v1656, %v598
        %v1659 = vsub.f32 %v1649, %v1657
        %v1660 = vsub.f32 %v1650, %v1658
        %v1661 = vmul.f32 %v1659, %v1659
        %v1662 = vmul.f32 %v1660, %v1660
        %v1663 = vsel %vm591, %v1661, 0.0
        %1664 = vadd.xlane.f32.xlu0 %v1663
        %v1665 = vpop.xlane.xlu0 %1664
        %v1666 = vsel %vm591, %v1662, 0.0
        %1667 = vadd.xlane.f32.xlu0 %v1666
        %v1668 = vpop.xlane.xlu0 %1667
        %v1669 = vmul.f32 %v1665, %v598
        %v1670 = vmul.f32 %v1668, %v598
        %v1671 = vadd.f32 %v1669, 1e-05
        %v1672 = vadd.f32 %v1670, 1e-05
        %v1673 = vrsqrt.pop %v1671
        %v1674 = vrsqrt.pop %v1672
        %v1675 = vmul.f32 %v1659, %v1673
        %v1676 = vmul.f32 %v1660, %v1674
        %v1677 = vlaneseq
        %v1678 = vshrl.u32 %v1677, 7
        %v1679 = vsub.s32 1, %v1678
        %v1680 = vrot.slane %v589, %v1679
        %v1681 = vmul.f32 %v1675, %v1680
        %v1682 = vmul.f32 %v1676, %v1680
        %v1683 = vlaneseq
        %v1684 = vshrl.u32 %v1683, 7
        %v1685 = vsub.s32 1, %v1684
        %v1686 = vrot.slane %v590, %v1685
        %v1687 = vadd.f32 %v1681, %v1686
        %v1688 = vadd.f32 %v1682, %v1686
        %v1689 = vld [vmem:[#allocation7] sm:$0xff]
        %v1690 = vld [vmem:[#allocation7 + $0x8] sm:$0xff]
        %v1691 = vld [vmem:[#allocation7 + $0x10] sm:$0xff]
        %v1692 = vld [vmem:[#allocation7 + $0x18] sm:$0xff]
        %v1694 = vsel %vm591, %v1687, 0
        %v1697 = vsel %vm591, %v1688, 0
        %1699 = vmatprep.subr.mxu0 0.0
        %1700 = vmatpush1.msra.mxu0 0.0
        %1701 = vmatprep.subr.mxu0 0.0
        %1702 = vmatpush1.msra.mxu0 0.0
        %1703 = vmatprep.subr.mxu0 0.0
        %1704 = vmatpush1.msra.mxu0 0.0
        %1705 = vmatprep.subr.mxu0 0.0
        %1706 = vmatpush1.msra.mxu0 0.0
        %1707 = vmatprep.subr.mxu0 0.0
        %1708 = vmatpush1.msra.mxu0 0.0
        %1709 = vmatprep.subr.mxu0 0.0
        %1710 = vmatpush1.msra.mxu0 0.0
        %1711 = vmatprep.subr.mxu0 0.0
        %1712 = vmatpush1.msra.mxu0 0.0
        %1713 = vmatprep.subr.mxu0 0.0
        %1714 = vmatpush1.msra.mxu0 0.0
        %1715 = vmatprep.subr.mxu0 0.0
        %1716 = vmatpush1.msra.mxu0 0.0
        %1717 = vmatprep.subr.mxu0 0.0
        %1718 = vmatpush1.msra.mxu0 0.0
        %1719 = vmatprep.subr.mxu0 0.0
        %1720 = vmatpush1.msra.mxu0 0.0
        %1721 = vmatprep.subr.mxu0 0.0
        %1722 = vmatpush1.msra.mxu0 0.0
        %1723 = vmatprep.subr.mxu0 0.0
        %1724 = vmatpush1.msra.mxu0 %v1692
        %1725 = vmatprep.subr.mxu0 0.0
        %1726 = vmatpush1.msra.mxu0 %v1691
        %1727 = vmatprep.subr.mxu0 0.0
        %1728 = vmatpush1.msra.mxu0 %v1690
        %1729 = vmatprep.subr.mxu0 0.0
        %1730 = vmatpush1.msra.mxu0 %v1689
        %1731 = vmatprep.subr.mxu0 0.0
        %1732 = vmatpush2.msra.mxu0 0.0
        %1733 = vmatprep.subr.mxu0 0.0
        %1734 = vmatpush2.msra.mxu0 0.0
        %1735 = vmatprep.subr.mxu0 0.0
        %1736 = vmatpush2.msra.mxu0 0.0
        %1737 = vmatprep.subr.mxu0 0.0
        %1738 = vmatpush2.msra.mxu0 0.0
        %1739 = vmatprep.subr.mxu0 0.0
        %1740 = vmatpush2.msra.mxu0 0.0
        %1741 = vmatprep.subr.mxu0 0.0
        %1742 = vmatpush2.msra.mxu0 0.0
        %1743 = vmatprep.subr.mxu0 0.0
        %1744 = vmatpush2.msra.mxu0 0.0
        %1745 = vmatprep.subr.mxu0 0.0
        %1746 = vmatpush2.msra.mxu0 0.0
        %1747 = vmatprep.subr.mxu0 0.0
        %1748 = vmatpush2.msra.mxu0 0.0
        %1749 = vmatprep.subr.mxu0 0.0
        %1750 = vmatpush2.msra.mxu0 0.0
        %1751 = vmatprep.subr.mxu0 0.0
        %1752 = vmatpush2.msra.mxu0 0.0
        %1753 = vmatprep.subr.mxu0 0.0
        %1754 = vmatpush2.msra.mxu0 0.0
        %1755 = vmatprep.subr.mxu0 0.0
        %1756 = vmatpush2.msra.mxu0 0.0
        %1757 = vmatprep.subr.mxu0 0.0
        %1758 = vmatpush2.msra.mxu0 0.0
        %1759 = vmatprep.subr.mxu0 0.0
        %1760 = vmatpush2.msra.mxu0 0.0
        %1761 = vmatprep.subr.mxu0 0.0
        %1762 = vmatpush2.msra.mxu0 0.0
        %1763 = vmatprep.mubr.f32.mxu0 0.0
        %1764 = vmatmul.mubr.f32.gmra.mxu0 %v1694
        %v1765 = vpop.f32.mrf.mxu0
        %v1766 = vadd.f32 0.0, %v1765
        %v1767 = vpop.f32.mrf.mxu0
        %1768 = vmatprep.mubr.f32.mxu0 0.0
        %1769 = vmatmul.mubr.f32.gmra.mxu0 %v1697
        %v1770 = vpop.f32.mrf.mxu0
        %v1771 = vadd.f32 0.0, %v1770
        %v1772 = vpop.f32.mrf.mxu0
        %1773 = vdwg.mxu0
        %v1774 = vld [vmem:[#allocation8] sm:$0xff]
        %v1775 = vld [vmem:[#allocation8 + $0x8] sm:$0xff]
        %v1777 = vsel %vm808, %v588, 0
        %1779 = vmatprep.subr.mxu0 0.0
        %1780 = vmatpush1.msra.mxu0 0.0
        %1781 = vmatprep.subr.mxu0 0.0
        %1782 = vmatpush1.msra.mxu0 0.0
        %1783 = vmatprep.subr.mxu0 0.0
        %1784 = vmatpush1.msra.mxu0 0.0
        %1785 = vmatprep.subr.mxu0 0.0
        %1786 = vmatpush1.msra.mxu0 0.0
        %1787 = vmatprep.subr.mxu0 0.0
        %1788 = vmatpush1.msra.mxu0 0.0
        %1789 = vmatprep.subr.mxu0 0.0
        %1790 = vmatpush1.msra.mxu0 0.0
        %1791 = vmatprep.subr.mxu0 0.0
        %1792 = vmatpush1.msra.mxu0 0.0
        %1793 = vmatprep.subr.mxu0 0.0
        %1794 = vmatpush1.msra.mxu0 0.0
        %1795 = vmatprep.subr.mxu0 0.0
        %1796 = vmatpush1.msra.mxu0 0.0
        %1797 = vmatprep.subr.mxu0 0.0
        %1798 = vmatpush1.msra.mxu0 0.0
        %1799 = vmatprep.subr.mxu0 0.0
        %1800 = vmatpush1.msra.mxu0 0.0
        %1801 = vmatprep.subr.mxu0 0.0
        %1802 = vmatpush1.msra.mxu0 0.0
        %1803 = vmatprep.subr.mxu0 0.0
        %1804 = vmatpush1.msra.mxu0 0.0
        %1805 = vmatprep.subr.mxu0 0.0
        %1806 = vmatpush1.msra.mxu0 0.0
        %1807 = vmatprep.subr.mxu0 0.0
        %1808 = vmatpush1.msra.mxu0 %v1775
        %1809 = vmatprep.subr.mxu0 0.0
        %1810 = vmatpush1.msra.mxu0 %v1774
        %1811 = vmatprep.subr.mxu0 0.0
        %1812 = vmatpush2.msra.mxu0 0.0
        %1813 = vmatprep.subr.mxu0 0.0
        %1814 = vmatpush2.msra.mxu0 0.0
        %1815 = vmatprep.subr.mxu0 0.0
        %1816 = vmatpush2.msra.mxu0 0.0
        %1817 = vmatprep.subr.mxu0 0.0
        %1818 = vmatpush2.msra.mxu0 0.0
        %1819 = vmatprep.subr.mxu0 0.0
        %1820 = vmatpush2.msra.mxu0 0.0
        %1821 = vmatprep.subr.mxu0 0.0
        %1822 = vmatpush2.msra.mxu0 0.0
        %1823 = vmatprep.subr.mxu0 0.0
        %1824 = vmatpush2.msra.mxu0 0.0
        %1825 = vmatprep.subr.mxu0 0.0
        %1826 = vmatpush2.msra.mxu0 0.0
        %1827 = vmatprep.subr.mxu0 0.0
        %1828 = vmatpush2.msra.mxu0 0.0
        %1829 = vmatprep.subr.mxu0 0.0
        %1830 = vmatpush2.msra.mxu0 0.0
        %1831 = vmatprep.subr.mxu0 0.0
        %1832 = vmatpush2.msra.mxu0 0.0
        %1833 = vmatprep.subr.mxu0 0.0
        %1834 = vmatpush2.msra.mxu0 0.0
        %1835 = vmatprep.subr.mxu0 0.0
        %1836 = vmatpush2.msra.mxu0 0.0
        %1837 = vmatprep.subr.mxu0 0.0
        %1838 = vmatpush2.msra.mxu0 0.0
        %1839 = vmatprep.subr.mxu0 0.0
        %1840 = vmatpush2.msra.mxu0 0.0
        %1841 = vmatprep.subr.mxu0 0.0
        %1842 = vmatpush2.msra.mxu0 0.0
        %1843 = vmatprep.mubr.f32.mxu0 0.0
        %1844 = vmatmul.mubr.f32.gmra.mxu0 %v1777
        %v1845 = vpop.f32.mrf.mxu0
        %v1846 = vadd.f32 0.0, %v1845
        %v1847 = vpop.f32.mrf.mxu0
        %1848 = vdwg.mxu0
        %v1850 = vsel %vm722, %v1766, 0
        %v1853 = vsel %vm722, %v1771, 0
        %v1856 = vsel %vm722, %v1846, 0
        %1858 = vmatprep.subr.mxu0 0.0
        %1859 = vmatpush1.xpose.msra.mxu0 0.0
        %1860 = vmatprep.subr.mxu0 0.0
        %1861 = vmatpush1.xpose.msra.mxu0 0.0
        %1862 = vmatprep.subr.mxu0 0.0
        %1863 = vmatpush1.xpose.msra.mxu0 0.0
        %1864 = vmatprep.subr.mxu0 0.0
        %1865 = vmatpush1.xpose.msra.mxu0 0.0
        %1866 = vmatprep.subr.mxu0 0.0
        %1867 = vmatpush1.xpose.msra.mxu0 0.0
        %1868 = vmatprep.subr.mxu0 0.0
        %1869 = vmatpush1.xpose.msra.mxu0 0.0
        %1870 = vmatprep.subr.mxu0 0.0
        %1871 = vmatpush1.xpose.msra.mxu0 0.0
        %1872 = vmatprep.subr.mxu0 0.0
        %1873 = vmatpush1.xpose.msra.mxu0 0.0
        %1874 = vmatprep.subr.mxu0 0.0
        %1875 = vmatpush1.xpose.msra.mxu0 0.0
        %1876 = vmatprep.subr.mxu0 0.0
        %1877 = vmatpush1.xpose.msra.mxu0 0.0
        %1878 = vmatprep.subr.mxu0 0.0
        %1879 = vmatpush1.xpose.msra.mxu0 0.0
        %1880 = vmatprep.subr.mxu0 0.0
        %1881 = vmatpush1.xpose.msra.mxu0 0.0
        %1882 = vmatprep.subr.mxu0 0.0
        %1883 = vmatpush1.xpose.msra.mxu0 0.0
        %1884 = vmatprep.subr.mxu0 0.0
        %1885 = vmatpush1.xpose.msra.mxu0 0.0
        %1886 = vmatprep.subr.mxu0 0.0
        %1887 = vmatpush1.xpose.msra.mxu0 0.0
        %1888 = vmatprep.subr.mxu0 0.0
        %1889 = vmatpush1.xpose.msra.mxu0 %v1856
        %1890 = vmatprep.subr.mxu0 0.0
        %1891 = vmatpush2.xpose.msra.mxu0 0.0
        %1892 = vmatprep.subr.mxu0 0.0
        %1893 = vmatpush2.xpose.msra.mxu0 0.0
        %1894 = vmatprep.subr.mxu0 0.0
        %1895 = vmatpush2.xpose.msra.mxu0 0.0
        %1896 = vmatprep.subr.mxu0 0.0
        %1897 = vmatpush2.xpose.msra.mxu0 0.0
        %1898 = vmatprep.subr.mxu0 0.0
        %1899 = vmatpush2.xpose.msra.mxu0 0.0
        %1900 = vmatprep.subr.mxu0 0.0
        %1901 = vmatpush2.xpose.msra.mxu0 0.0
        %1902 = vmatprep.subr.mxu0 0.0
        %1903 = vmatpush2.xpose.msra.mxu0 0.0
        %1904 = vmatprep.subr.mxu0 0.0
        %1905 = vmatpush2.xpose.msra.mxu0 0.0
        %1906 = vmatprep.subr.mxu0 0.0
        %1907 = vmatpush2.xpose.msra.mxu0 0.0
        %1908 = vmatprep.subr.mxu0 0.0
        %1909 = vmatpush2.xpose.msra.mxu0 0.0
        %1910 = vmatprep.subr.mxu0 0.0
        %1911 = vmatpush2.xpose.msra.mxu0 0.0
        %1912 = vmatprep.subr.mxu0 0.0
        %1913 = vmatpush2.xpose.msra.mxu0 0.0
        %1914 = vmatprep.subr.mxu0 0.0
        %1915 = vmatpush2.xpose.msra.mxu0 0.0
        %1916 = vmatprep.subr.mxu0 0.0
        %1917 = vmatpush2.xpose.msra.mxu0 0.0
        %1918 = vmatprep.subr.mxu0 0.0
        %1919 = vmatpush2.xpose.msra.mxu0 0.0
        %1920 = vmatprep.subr.mxu0 0.0
        %1921 = vmatpush2.xpose.msra.mxu0 0.0
        %1922 = vmatprep.mubr.f32.mxu0 0.0
        %1923 = vmatmul.mubr.f32.gmra.mxu0 %v1850
        %v1924 = vpop.f32.mrf.mxu0
        %v1925 = vadd.f32 0.0, %v1924
        %v1926 = vpop.f32.mrf.mxu0
        %1927 = vmatprep.mubr.f32.mxu0 0.0
        %1928 = vmatmul.mubr.f32.gmra.mxu0 %v1853
        %v1929 = vpop.f32.mrf.mxu0
        %v1930 = vadd.f32 0.0, %v1929
        %v1931 = vpop.f32.mrf.mxu0
        %1932 = vdwg.mxu0
        %v1933 = vmul.f32 %v1925, 0.35355338
        %v1934 = vmul.f32 %v1930, 0.35355338
        %v1935 = vsel %vm722, %v1933, -inf
        %1936 = vmax.xlane.f32.xlu0 %v1935
        %v1937 = vpop.xlane.xlu0 %1936
        %v1938 = vsel %vm722, %v1934, -inf
        %1939 = vmax.xlane.f32.xlu0 %v1938
        %v1940 = vpop.xlane.xlu0 %1939
        %v1941 = vsub.f32 %v1933, %v1937
        %v1942 = vsub.f32 %v1934, %v1940
        %v1943 = vmul.f32 %v1941, 1.442695
        %v1944 = vpow.pop %v1943
        %v1945 = vmul.f32 %v1942, 1.442695
        %v1946 = vpow.pop %v1945
        %v1947 = vsel %vm722, %v1944, 0.0
        %1948 = vadd.xlane.f32.xlu0 %v1947
        %v1949 = vpop.xlane.xlu0 %1948
        %v1950 = vsel %vm722, %v1946, 0.0
        %1951 = vadd.xlane.f32.xlu0 %v1950
        %v1952 = vpop.xlane.xlu0 %1951
        %v1953 = vrcp.pop %v1949
        %v1954 = vmul.f32 %v1944, %v1953
        %v1955 = vrcp.pop %v1952
        %v1956 = vmul.f32 %v1946, %v1955
        %1957 = vrot.lane.b32.xlu0 %v1846, 96
        %v1958 = vpop.permute.xlu0 %1957
        %v1961 = vsel %vm722, %v1954, 0
        %v1964 = vsel %vm722, %v1956, 0
        %1966 = vmatprep.subr.mxu0 0.0
        %1967 = vmatpush1.msra.mxu0 0.0
        %1968 = vmatprep.subr.mxu0 0.0
        %1969 = vmatpush1.msra.mxu0 0.0
        %1970 = vmatprep.subr.mxu0 0.0
        %1971 = vmatpush1.msra.mxu0 0.0
        %1972 = vmatprep.subr.mxu0 0.0
        %1973 = vmatpush1.msra.mxu0 0.0
        %1974 = vmatprep.subr.mxu0 0.0
        %1975 = vmatpush1.msra.mxu0 0.0
        %1976 = vmatprep.subr.mxu0 0.0
        %1977 = vmatpush1.msra.mxu0 0.0
        %1978 = vmatprep.subr.mxu0 0.0
        %1979 = vmatpush1.msra.mxu0 0.0
        %1980 = vmatprep.subr.mxu0 0.0
        %1981 = vmatpush1.msra.mxu0 0.0
        %1982 = vmatprep.subr.mxu0 0.0
        %1983 = vmatpush1.msra.mxu0 0.0
        %1984 = vmatprep.subr.mxu0 0.0
        %1985 = vmatpush1.msra.mxu0 0.0
        %1986 = vmatprep.subr.mxu0 0.0
        %1987 = vmatpush1.msra.mxu0 0.0
        %1988 = vmatprep.subr.mxu0 0.0
        %1989 = vmatpush1.msra.mxu0 0.0
        %1990 = vmatprep.subr.mxu0 0.0
        %1991 = vmatpush1.msra.mxu0 0.0
        %1992 = vmatprep.subr.mxu0 0.0
        %1993 = vmatpush1.msra.mxu0 0.0
        %1994 = vmatprep.subr.mxu0 0.0
        %1995 = vmatpush1.msra.mxu0 0.0
        %1996 = vmatprep.subr.mxu0 0.0
        %1997 = vmatpush1.msra.mxu0 %v1958
        %1998 = vmatprep.subr.mxu0 0.0
        %1999 = vmatpush2.msra.mxu0 0.0
        %2000 = vmatprep.subr.mxu0 0.0
        %2001 = vmatpush2.msra.mxu0 0.0
        %2002 = vmatprep.subr.mxu0 0.0
        %2003 = vmatpush2.msra.mxu0 0.0
        %2004 = vmatprep.subr.mxu0 0.0
        %2005 = vmatpush2.msra.mxu0 0.0
        %2006 = vmatprep.subr.mxu0 0.0
        %2007 = vmatpush2.msra.mxu0 0.0
        %2008 = vmatprep.subr.mxu0 0.0
        %2009 = vmatpush2.msra.mxu0 0.0
        %2010 = vmatprep.subr.mxu0 0.0
        %2011 = vmatpush2.msra.mxu0 0.0
        %2012 = vmatprep.subr.mxu0 0.0
        %2013 = vmatpush2.msra.mxu0 0.0
        %2014 = vmatprep.subr.mxu0 0.0
        %2015 = vmatpush2.msra.mxu0 0.0
        %2016 = vmatprep.subr.mxu0 0.0
        %2017 = vmatpush2.msra.mxu0 0.0
        %2018 = vmatprep.subr.mxu0 0.0
        %2019 = vmatpush2.msra.mxu0 0.0
        %2020 = vmatprep.subr.mxu0 0.0
        %2021 = vmatpush2.msra.mxu0 0.0
        %2022 = vmatprep.subr.mxu0 0.0
        %2023 = vmatpush2.msra.mxu0 0.0
        %2024 = vmatprep.subr.mxu0 0.0
        %2025 = vmatpush2.msra.mxu0 0.0
        %2026 = vmatprep.subr.mxu0 0.0
        %2027 = vmatpush2.msra.mxu0 0.0
        %2028 = vmatprep.subr.mxu0 0.0
        %2029 = vmatpush2.msra.mxu0 0.0
        %2030 = vmatprep.mubr.f32.mxu0 0.0
        %2031 = vmatmul.mubr.f32.gmra.mxu0 %v1961
        %v2032 = vpop.f32.mrf.mxu0
        %v2033 = vadd.f32 0.0, %v2032
        %v2034 = vpop.f32.mrf.mxu0
        %2035 = vmatprep.mubr.f32.mxu0 0.0
        %2036 = vmatmul.mubr.f32.gmra.mxu0 %v1964
        %v2037 = vpop.f32.mrf.mxu0
        %v2038 = vadd.f32 0.0, %v2037
        %v2039 = vpop.f32.mrf.mxu0
        %2040 = vdwg.mxu0
        %2041 = vrot.lane.b32.xlu0 %v1766, 120
        %v2042 = vpop.permute.xlu0 %2041
        %2043 = vrot.lane.b32.xlu0 %v1771, 120
        %v2044 = vpop.permute.xlu0 %2043
        %2045 = vrot.lane.b32.xlu0 %v1846, 120
        %v2046 = vpop.permute.xlu0 %2045
        %v2047 = vsel %vm722, %v2042, 0
        %v2049 = vsel %vm722, %v2044, 0
        %v2051 = vsel %vm722, %v2046, 0
        %2053 = vmatprep.subr.mxu0 0.0
        %2054 = vmatpush1.xpose.msra.mxu0 0.0
        %2055 = vmatprep.subr.mxu0 0.0
        %2056 = vmatpush1.xpose.msra.mxu0 0.0
        %2057 = vmatprep.subr.mxu0 0.0
        %2058 = vmatpush1.xpose.msra.mxu0 0.0
        %2059 = vmatprep.subr.mxu0 0.0
        %2060 = vmatpush1.xpose.msra.mxu0 0.0
        %2061 = vmatprep.subr.mxu0 0.0
        %2062 = vmatpush1.xpose.msra.mxu0 0.0
        %2063 = vmatprep.subr.mxu0 0.0
        %2064 = vmatpush1.xpose.msra.mxu0 0.0
        %2065 = vmatprep.subr.mxu0 0.0
        %2066 = vmatpush1.xpose.msra.mxu0 0.0
        %2067 = vmatprep.subr.mxu0 0.0
        %2068 = vmatpush1.xpose.msra.mxu0 0.0
        %2069 = vmatprep.subr.mxu0 0.0
        %2070 = vmatpush1.xpose.msra.mxu0 0.0
        %2071 = vmatprep.subr.mxu0 0.0
        %2072 = vmatpush1.xpose.msra.mxu0 0.0
        %2073 = vmatprep.subr.mxu0 0.0
        %2074 = vmatpush1.xpose.msra.mxu0 0.0
        %2075 = vmatprep.subr.mxu0 0.0
        %2076 = vmatpush1.xpose.msra.mxu0 0.0
        %2077 = vmatprep.subr.mxu0 0.0
        %2078 = vmatpush1.xpose.msra.mxu0 0.0
        %2079 = vmatprep.subr.mxu0 0.0
        %2080 = vmatpush1.xpose.msra.mxu0 0.0
        %2081 = vmatprep.subr.mxu0 0.0
        %2082 = vmatpush1.xpose.msra.mxu0 0.0
        %2083 = vmatprep.subr.mxu0 0.0
        %2084 = vmatpush1.xpose.msra.mxu0 %v2051
        %2085 = vmatprep.subr.mxu0 0.0
        %2086 = vmatpush2.xpose.msra.mxu0 0.0
        %2087 = vmatprep.subr.mxu0 0.0
        %2088 = vmatpush2.xpose.msra.mxu0 0.0
        %2089 = vmatprep.subr.mxu0 0.0
        %2090 = vmatpush2.xpose.msra.mxu0 0.0
        %2091 = vmatprep.subr.mxu0 0.0
        %2092 = vmatpush2.xpose.msra.mxu0 0.0
        %2093 = vmatprep.subr.mxu0 0.0
        %2094 = vmatpush2.xpose.msra.mxu0 0.0
        %2095 = vmatprep.subr.mxu0 0.0
        %2096 = vmatpush2.xpose.msra.mxu0 0.0
        %2097 = vmatprep.subr.mxu0 0.0
        %2098 = vmatpush2.xpose.msra.mxu0 0.0
        %2099 = vmatprep.subr.mxu0 0.0
        %2100 = vmatpush2.xpose.msra.mxu0 0.0
        %2101 = vmatprep.subr.mxu0 0.0
        %2102 = vmatpush2.xpose.msra.mxu0 0.0
        %2103 = vmatprep.subr.mxu0 0.0
        %2104 = vmatpush2.xpose.msra.mxu0 0.0
        %2105 = vmatprep.subr.mxu0 0.0
        %2106 = vmatpush2.xpose.msra.mxu0 0.0
        %2107 = vmatprep.subr.mxu0 0.0
        %2108 = vmatpush2.xpose.msra.mxu0 0.0
        %2109 = vmatprep.subr.mxu0 0.0
        %2110 = vmatpush2.xpose.msra.mxu0 0.0
        %2111 = vmatprep.subr.mxu0 0.0
        %2112 = vmatpush2.xpose.msra.mxu0 0.0
        %2113 = vmatprep.subr.mxu0 0.0
        %2114 = vmatpush2.xpose.msra.mxu0 0.0
        %2115 = vmatprep.subr.mxu0 0.0
        %2116 = vmatpush2.xpose.msra.mxu0 0.0
        %2117 = vmatprep.mubr.f32.mxu0 0.0
        %2118 = vmatmul.mubr.f32.gmra.mxu0 %v2047
        %v2119 = vpop.f32.mrf.mxu0
        %v2120 = vadd.f32 0.0, %v2119
        %v2121 = vpop.f32.mrf.mxu0
        %2122 = vmatprep.mubr.f32.mxu0 0.0
        %2123 = vmatmul.mubr.f32.gmra.mxu0 %v2049
        %v2124 = vpop.f32.mrf.mxu0
        %v2125 = vadd.f32 0.0, %v2124
        %v2126 = vpop.f32.mrf.mxu0
        %2127 = vdwg.mxu0
        %v2128 = vmul.f32 %v2120, 0.35355338
        %v2129 = vmul.f32 %v2125, 0.35355338
        %v2130 = vsel %vm722, %v2128, -inf
        %2131 = vmax.xlane.f32.xlu0 %v2130
        %v2132 = vpop.xlane.xlu0 %2131
        %v2133 = vsel %vm722, %v2129, -inf
        %2134 = vmax.xlane.f32.xlu0 %v2133
        %v2135 = vpop.xlane.xlu0 %2134
        %v2136 = vsub.f32 %v2128, %v2132
        %v2137 = vsub.f32 %v2129, %v2135
        %v2138 = vmul.f32 %v2136, 1.442695
        %v2139 = vpow.pop %v2138
        %v2140 = vmul.f32 %v2137, 1.442695
        %v2141 = vpow.pop %v2140
        %v2142 = vsel %vm722, %v2139, 0.0
        %2143 = vadd.xlane.f32.xlu0 %v2142
        %v2144 = vpop.xlane.xlu0 %2143
        %v2145 = vsel %vm722, %v2141, 0.0
        %2146 = vadd.xlane.f32.xlu0 %v2145
        %v2147 = vpop.xlane.xlu0 %2146
        %v2148 = vrcp.pop %v2144
        %v2149 = vmul.f32 %v2139, %v2148
        %v2150 = vrcp.pop %v2147
        %v2151 = vmul.f32 %v2141, %v2150
        %2152 = vrot.lane.b32.xlu0 %v1846, 88
        %v2153 = vpop.permute.xlu0 %2152
        %v2156 = vsel %vm722, %v2149, 0
        %v2159 = vsel %vm722, %v2151, 0
        %2161 = vmatprep.subr.mxu0 0.0
        %2162 = vmatpush1.msra.mxu0 0.0
        %2163 = vmatprep.subr.mxu0 0.0
        %2164 = vmatpush1.msra.mxu0 0.0
        %2165 = vmatprep.subr.mxu0 0.0
        %2166 = vmatpush1.msra.mxu0 0.0
        %2167 = vmatprep.subr.mxu0 0.0
        %2168 = vmatpush1.msra.mxu0 0.0
        %2169 = vmatprep.subr.mxu0 0.0
        %2170 = vmatpush1.msra.mxu0 0.0
        %2171 = vmatprep.subr.mxu0 0.0
        %2172 = vmatpush1.msra.mxu0 0.0
        %2173 = vmatprep.subr.mxu0 0.0
        %2174 = vmatpush1.msra.mxu0 0.0
        %2175 = vmatprep.subr.mxu0 0.0
        %2176 = vmatpush1.msra.mxu0 0.0
        %2177 = vmatprep.subr.mxu0 0.0
        %2178 = vmatpush1.msra.mxu0 0.0
        %2179 = vmatprep.subr.mxu0 0.0
        %2180 = vmatpush1.msra.mxu0 0.0
        %2181 = vmatprep.subr.mxu0 0.0
        %2182 = vmatpush1.msra.mxu0 0.0
        %2183 = vmatprep.subr.mxu0 0.0
        %2184 = vmatpush1.msra.mxu0 0.0
        %2185 = vmatprep.subr.mxu0 0.0
        %2186 = vmatpush1.msra.mxu0 0.0
        %2187 = vmatprep.subr.mxu0 0.0
        %2188 = vmatpush1.msra.mxu0 0.0
        %2189 = vmatprep.subr.mxu0 0.0
        %2190 = vmatpush1.msra.mxu0 0.0
        %2191 = vmatprep.subr.mxu0 0.0
        %2192 = vmatpush1.msra.mxu0 %v2153
        %2193 = vmatprep.subr.mxu0 0.0
        %2194 = vmatpush2.msra.mxu0 0.0
        %2195 = vmatprep.subr.mxu0 0.0
        %2196 = vmatpush2.msra.mxu0 0.0
        %2197 = vmatprep.subr.mxu0 0.0
        %2198 = vmatpush2.msra.mxu0 0.0
        %2199 = vmatprep.subr.mxu0 0.0
        %2200 = vmatpush2.msra.mxu0 0.0
        %2201 = vmatprep.subr.mxu0 0.0
        %2202 = vmatpush2.msra.mxu0 0.0
        %2203 = vmatprep.subr.mxu0 0.0
        %2204 = vmatpush2.msra.mxu0 0.0
        %2205 = vmatprep.subr.mxu0 0.0
        %2206 = vmatpush2.msra.mxu0 0.0
        %2207 = vmatprep.subr.mxu0 0.0
        %2208 = vmatpush2.msra.mxu0 0.0
        %2209 = vmatprep.subr.mxu0 0.0
        %2210 = vmatpush2.msra.mxu0 0.0
        %2211 = vmatprep.subr.mxu0 0.0
        %2212 = vmatpush2.msra.mxu0 0.0
        %2213 = vmatprep.subr.mxu0 0.0
        %2214 = vmatpush2.msra.mxu0 0.0
        %2215 = vmatprep.subr.mxu0 0.0
        %2216 = vmatpush2.msra.mxu0 0.0
        %2217 = vmatprep.subr.mxu0 0.0
        %2218 = vmatpush2.msra.mxu0 0.0
        %2219 = vmatprep.subr.mxu0 0.0
        %2220 = vmatpush2.msra.mxu0 0.0
        %2221 = vmatprep.subr.mxu0 0.0
        %2222 = vmatpush2.msra.mxu0 0.0
        %2223 = vmatprep.subr.mxu0 0.0
        %2224 = vmatpush2.msra.mxu0 0.0
        %2225 = vmatprep.mubr.f32.mxu0 0.0
        %2226 = vmatmul.mubr.f32.gmra.mxu0 %v2156
        %v2227 = vpop.f32.mrf.mxu0
        %v2228 = vadd.f32 0.0, %v2227
        %v2229 = vpop.f32.mrf.mxu0
        %2230 = vmatprep.mubr.f32.mxu0 0.0
        %2231 = vmatmul.mubr.f32.gmra.mxu0 %v2159
        %v2232 = vpop.f32.mrf.mxu0
        %v2233 = vadd.f32 0.0, %v2232
        %v2234 = vpop.f32.mrf.mxu0
        %2235 = vdwg.mxu0
        %2236 = vrot.lane.b32.xlu0 %v1766, 112
        %v2237 = vpop.permute.xlu0 %2236
        %2238 = vrot.lane.b32.xlu0 %v1771, 112
        %v2239 = vpop.permute.xlu0 %2238
        %2240 = vrot.lane.b32.xlu0 %v1846, 112
        %v2241 = vpop.permute.xlu0 %2240
        %v2242 = vsel %vm722, %v2237, 0
        %v2244 = vsel %vm722, %v2239, 0
        %v2246 = vsel %vm722, %v2241, 0
        %2248 = vmatprep.subr.mxu0 0.0
        %2249 = vmatpush1.xpose.msra.mxu0 0.0
        %2250 = vmatprep.subr.mxu0 0.0
        %2251 = vmatpush1.xpose.msra.mxu0 0.0
        %2252 = vmatprep.subr.mxu0 0.0
        %2253 = vmatpush1.xpose.msra.mxu0 0.0
        %2254 = vmatprep.subr.mxu0 0.0
        %2255 = vmatpush1.xpose.msra.mxu0 0.0
        %2256 = vmatprep.subr.mxu0 0.0
        %2257 = vmatpush1.xpose.msra.mxu0 0.0
        %2258 = vmatprep.subr.mxu0 0.0
        %2259 = vmatpush1.xpose.msra.mxu0 0.0
        %2260 = vmatprep.subr.mxu0 0.0
        %2261 = vmatpush1.xpose.msra.mxu0 0.0
        %2262 = vmatprep.subr.mxu0 0.0
        %2263 = vmatpush1.xpose.msra.mxu0 0.0
        %2264 = vmatprep.subr.mxu0 0.0
        %2265 = vmatpush1.xpose.msra.mxu0 0.0
        %2266 = vmatprep.subr.mxu0 0.0
        %2267 = vmatpush1.xpose.msra.mxu0 0.0
        %2268 = vmatprep.subr.mxu0 0.0
        %2269 = vmatpush1.xpose.msra.mxu0 0.0
        %2270 = vmatprep.subr.mxu0 0.0
        %2271 = vmatpush1.xpose.msra.mxu0 0.0
        %2272 = vmatprep.subr.mxu0 0.0
        %2273 = vmatpush1.xpose.msra.mxu0 0.0
        %2274 = vmatprep.subr.mxu0 0.0
        %2275 = vmatpush1.xpose.msra.mxu0 0.0
        %2276 = vmatprep.subr.mxu0 0.0
        %2277 = vmatpush1.xpose.msra.mxu0 0.0
        %2278 = vmatprep.subr.mxu0 0.0
        %2279 = vmatpush1.xpose.msra.mxu0 %v2246
        %2280 = vmatprep.subr.mxu0 0.0
        %2281 = vmatpush2.xpose.msra.mxu0 0.0
        %2282 = vmatprep.subr.mxu0 0.0
        %2283 = vmatpush2.xpose.msra.mxu0 0.0
        %2284 = vmatprep.subr.mxu0 0.0
        %2285 = vmatpush2.xpose.msra.mxu0 0.0
        %2286 = vmatprep.subr.mxu0 0.0
        %2287 = vmatpush2.xpose.msra.mxu0 0.0
        %2288 = vmatprep.subr.mxu0 0.0
        %2289 = vmatpush2.xpose.msra.mxu0 0.0
        %2290 = vmatprep.subr.mxu0 0.0
        %2291 = vmatpush2.xpose.msra.mxu0 0.0
        %2292 = vmatprep.subr.mxu0 0.0
        %2293 = vmatpush2.xpose.msra.mxu0 0.0
        %2294 = vmatprep.subr.mxu0 0.0
        %2295 = vmatpush2.xpose.msra.mxu0 0.0
        %2296 = vmatprep.subr.mxu0 0.0
        %2297 = vmatpush2.xpose.msra.mxu0 0.0
        %2298 = vmatprep.subr.mxu0 0.0
        %2299 = vmatpush2.xpose.msra.mxu0 0.0
        %2300 = vmatprep.subr.mxu0 0.0
        %2301 = vmatpush2.xpose.msra.mxu0 0.0
        %2302 = vmatprep.subr.mxu0 0.0
        %2303 = vmatpush2.xpose.msra.mxu0 0.0
        %2304 = vmatprep.subr.mxu0 0.0
        %2305 = vmatpush2.xpose.msra.mxu0 0.0
        %2306 = vmatprep.subr.mxu0 0.0
        %2307 = vmatpush2.xpose.msra.mxu0 0.0
        %2308 = vmatprep.subr.mxu0 0.0
        %2309 = vmatpush2.xpose.msra.mxu0 0.0
        %2310 = vmatprep.subr.mxu0 0.0
        %2311 = vmatpush2.xpose.msra.mxu0 0.0
        %2312 = vmatprep.mubr.f32.mxu0 0.0
        %2313 = vmatmul.mubr.f32.gmra.mxu0 %v2242
        %v2314 = vpop.f32.mrf.mxu0
        %v2315 = vadd.f32 0.0, %v2314
        %v2316 = vpop.f32.mrf.mxu0
        %2317 = vmatprep.mubr.f32.mxu0 0.0
        %2318 = vmatmul.mubr.f32.gmra.mxu0 %v2244
        %v2319 = vpop.f32.mrf.mxu0
        %v2320 = vadd.f32 0.0, %v2319
        %v2321 = vpop.f32.mrf.mxu0
        %2322 = vdwg.mxu0
        %v2323 = vmul.f32 %v2315, 0.35355338
        %v2324 = vmul.f32 %v2320, 0.35355338
        %v2325 = vsel %vm722, %v2323, -inf
        %2326 = vmax.xlane.f32.xlu0 %v2325
        %v2327 = vpop.xlane.xlu0 %2326
        %v2328 = vsel %vm722, %v2324, -inf
        %2329 = vmax.xlane.f32.xlu0 %v2328
        %v2330 = vpop.xlane.xlu0 %2329
        %v2331 = vsub.f32 %v2323, %v2327
        %v2332 = vsub.f32 %v2324, %v2330
        %v2333 = vmul.f32 %v2331, 1.442695
        %v2334 = vpow.pop %v2333
        %v2335 = vmul.f32 %v2332, 1.442695
        %v2336 = vpow.pop %v2335
        %v2337 = vsel %vm722, %v2334, 0.0
        %2338 = vadd.xlane.f32.xlu0 %v2337
        %v2339 = vpop.xlane.xlu0 %2338
        %v2340 = vsel %vm722, %v2336, 0.0
        %2341 = vadd.xlane.f32.xlu0 %v2340
        %v2342 = vpop.xlane.xlu0 %2341
        %v2343 = vrcp.pop %v2339
        %v2344 = vmul.f32 %v2334, %v2343
        %v2345 = vrcp.pop %v2342
        %v2346 = vmul.f32 %v2336, %v2345
        %2347 = vrot.lane.b32.xlu0 %v1846, 80
        %v2348 = vpop.permute.xlu0 %2347
        %v2351 = vsel %vm722, %v2344, 0
        %v2354 = vsel %vm722, %v2346, 0
        %2356 = vmatprep.subr.mxu0 0.0
        %2357 = vmatpush1.msra.mxu0 0.0
        %2358 = vmatprep.subr.mxu0 0.0
        %2359 = vmatpush1.msra.mxu0 0.0
        %2360 = vmatprep.subr.mxu0 0.0
        %2361 = vmatpush1.msra.mxu0 0.0
        %2362 = vmatprep.subr.mxu0 0.0
        %2363 = vmatpush1.msra.mxu0 0.0
        %2364 = vmatprep.subr.mxu0 0.0
        %2365 = vmatpush1.msra.mxu0 0.0
        %2366 = vmatprep.subr.mxu0 0.0
        %2367 = vmatpush1.msra.mxu0 0.0
        %2368 = vmatprep.subr.mxu0 0.0
        %2369 = vmatpush1.msra.mxu0 0.0
        %2370 = vmatprep.subr.mxu0 0.0
        %2371 = vmatpush1.msra.mxu0 0.0
        %2372 = vmatprep.subr.mxu0 0.0
        %2373 = vmatpush1.msra.mxu0 0.0
        %2374 = vmatprep.subr.mxu0 0.0
        %2375 = vmatpush1.msra.mxu0 0.0
        %2376 = vmatprep.subr.mxu0 0.0
        %2377 = vmatpush1.msra.mxu0 0.0
        %2378 = vmatprep.subr.mxu0 0.0
        %2379 = vmatpush1.msra.mxu0 0.0
        %2380 = vmatprep.subr.mxu0 0.0
        %2381 = vmatpush1.msra.mxu0 0.0
        %2382 = vmatprep.subr.mxu0 0.0
        %2383 = vmatpush1.msra.mxu0 0.0
        %2384 = vmatprep.subr.mxu0 0.0
        %2385 = vmatpush1.msra.mxu0 0.0
        %2386 = vmatprep.subr.mxu0 0.0
        %2387 = vmatpush1.msra.mxu0 %v2348
        %2388 = vmatprep.subr.mxu0 0.0
        %2389 = vmatpush2.msra.mxu0 0.0
        %2390 = vmatprep.subr.mxu0 0.0
        %2391 = vmatpush2.msra.mxu0 0.0
        %2392 = vmatprep.subr.mxu0 0.0
        %2393 = vmatpush2.msra.mxu0 0.0
        %2394 = vmatprep.subr.mxu0 0.0
        %2395 = vmatpush2.msra.mxu0 0.0
        %2396 = vmatprep.subr.mxu0 0.0
        %2397 = vmatpush2.msra.mxu0 0.0
        %2398 = vmatprep.subr.mxu0 0.0
        %2399 = vmatpush2.msra.mxu0 0.0
        %2400 = vmatprep.subr.mxu0 0.0
        %2401 = vmatpush2.msra.mxu0 0.0
        %2402 = vmatprep.subr.mxu0 0.0
        %2403 = vmatpush2.msra.mxu0 0.0
        %2404 = vmatprep.subr.mxu0 0.0
        %2405 = vmatpush2.msra.mxu0 0.0
        %2406 = vmatprep.subr.mxu0 0.0
        %2407 = vmatpush2.msra.mxu0 0.0
        %2408 = vmatprep.subr.mxu0 0.0
        %2409 = vmatpush2.msra.mxu0 0.0
        %2410 = vmatprep.subr.mxu0 0.0
        %2411 = vmatpush2.msra.mxu0 0.0
        %2412 = vmatprep.subr.mxu0 0.0
        %2413 = vmatpush2.msra.mxu0 0.0
        %2414 = vmatprep.subr.mxu0 0.0
        %2415 = vmatpush2.msra.mxu0 0.0
        %2416 = vmatprep.subr.mxu0 0.0
        %2417 = vmatpush2.msra.mxu0 0.0
        %2418 = vmatprep.subr.mxu0 0.0
        %2419 = vmatpush2.msra.mxu0 0.0
        %2420 = vmatprep.mubr.f32.mxu0 0.0
        %2421 = vmatmul.mubr.f32.gmra.mxu0 %v2351
        %v2422 = vpop.f32.mrf.mxu0
        %v2423 = vadd.f32 0.0, %v2422
        %v2424 = vpop.f32.mrf.mxu0
        %2425 = vmatprep.mubr.f32.mxu0 0.0
        %2426 = vmatmul.mubr.f32.gmra.mxu0 %v2354
        %v2427 = vpop.f32.mrf.mxu0
        %v2428 = vadd.f32 0.0, %v2427
        %v2429 = vpop.f32.mrf.mxu0
        %2430 = vdwg.mxu0
        %2431 = vrot.lane.b32.xlu0 %v1766, 104
        %v2432 = vpop.permute.xlu0 %2431
        %2433 = vrot.lane.b32.xlu0 %v1771, 104
        %v2434 = vpop.permute.xlu0 %2433
        %2435 = vrot.lane.b32.xlu0 %v1846, 104
        %v2436 = vpop.permute.xlu0 %2435
        %v2437 = vsel %vm722, %v2432, 0
        %v2439 = vsel %vm722, %v2434, 0
        %v2441 = vsel %vm722, %v2436, 0
        %2443 = vmatprep.subr.mxu0 0.0
        %2444 = vmatpush1.xpose.msra.mxu0 0.0
        %2445 = vmatprep.subr.mxu0 0.0
        %2446 = vmatpush1.xpose.msra.mxu0 0.0
        %2447 = vmatprep.subr.mxu0 0.0
        %2448 = vmatpush1.xpose.msra.mxu0 0.0
        %2449 = vmatprep.subr.mxu0 0.0
        %2450 = vmatpush1.xpose.msra.mxu0 0.0
        %2451 = vmatprep.subr.mxu0 0.0
        %2452 = vmatpush1.xpose.msra.mxu0 0.0
        %2453 = vmatprep.subr.mxu0 0.0
        %2454 = vmatpush1.xpose.msra.mxu0 0.0
        %2455 = vmatprep.subr.mxu0 0.0
        %2456 = vmatpush1.xpose.msra.mxu0 0.0
        %2457 = vmatprep.subr.mxu0 0.0
        %2458 = vmatpush1.xpose.msra.mxu0 0.0
        %2459 = vmatprep.subr.mxu0 0.0
        %2460 = vmatpush1.xpose.msra.mxu0 0.0
        %2461 = vmatprep.subr.mxu0 0.0
        %2462 = vmatpush1.xpose.msra.mxu0 0.0
        %2463 = vmatprep.subr.mxu0 0.0
        %2464 = vmatpush1.xpose.msra.mxu0 0.0
        %2465 = vmatprep.subr.mxu0 0.0
        %2466 = vmatpush1.xpose.msra.mxu0 0.0
        %2467 = vmatprep.subr.mxu0 0.0
        %2468 = vmatpush1.xpose.msra.mxu0 0.0
        %2469 = vmatprep.subr.mxu0 0.0
        %2470 = vmatpush1.xpose.msra.mxu0 0.0
        %2471 = vmatprep.subr.mxu0 0.0
        %2472 = vmatpush1.xpose.msra.mxu0 0.0
        %2473 = vmatprep.subr.mxu0 0.0
        %2474 = vmatpush1.xpose.msra.mxu0 %v2441
        %2475 = vmatprep.subr.mxu0 0.0
        %2476 = vmatpush2.xpose.msra.mxu0 0.0
        %2477 = vmatprep.subr.mxu0 0.0
        %2478 = vmatpush2.xpose.msra.mxu0 0.0
        %2479 = vmatprep.subr.mxu0 0.0
        %2480 = vmatpush2.xpose.msra.mxu0 0.0
        %2481 = vmatprep.subr.mxu0 0.0
        %2482 = vmatpush2.xpose.msra.mxu0 0.0
        %2483 = vmatprep.subr.mxu0 0.0
        %2484 = vmatpush2.xpose.msra.mxu0 0.0
        %2485 = vmatprep.subr.mxu0 0.0
        %2486 = vmatpush2.xpose.msra.mxu0 0.0
        %2487 = vmatprep.subr.mxu0 0.0
        %2488 = vmatpush2.xpose.msra.mxu0 0.0
        %2489 = vmatprep.subr.mxu0 0.0
        %2490 = vmatpush2.xpose.msra.mxu0 0.0
        %2491 = vmatprep.subr.mxu0 0.0
        %2492 = vmatpush2.xpose.msra.mxu0 0.0
        %2493 = vmatprep.subr.mxu0 0.0
        %2494 = vmatpush2.xpose.msra.mxu0 0.0
        %2495 = vmatprep.subr.mxu0 0.0
        %2496 = vmatpush2.xpose.msra.mxu0 0.0
        %2497 = vmatprep.subr.mxu0 0.0
        %2498 = vmatpush2.xpose.msra.mxu0 0.0
        %2499 = vmatprep.subr.mxu0 0.0
        %2500 = vmatpush2.xpose.msra.mxu0 0.0
        %2501 = vmatprep.subr.mxu0 0.0
        %2502 = vmatpush2.xpose.msra.mxu0 0.0
        %2503 = vmatprep.subr.mxu0 0.0
        %2504 = vmatpush2.xpose.msra.mxu0 0.0
        %2505 = vmatprep.subr.mxu0 0.0
        %2506 = vmatpush2.xpose.msra.mxu0 0.0
        %2507 = vmatprep.mubr.f32.mxu0 0.0
        %2508 = vmatmul.mubr.f32.gmra.mxu0 %v2437
        %v2509 = vpop.f32.mrf.mxu0
        %v2510 = vadd.f32 0.0, %v2509
        %v2511 = vpop.f32.mrf.mxu0
        %2512 = vmatprep.mubr.f32.mxu0 0.0
        %2513 = vmatmul.mubr.f32.gmra.mxu0 %v2439
        %v2514 = vpop.f32.mrf.mxu0
        %v2515 = vadd.f32 0.0, %v2514
        %v2516 = vpop.f32.mrf.mxu0
        %2517 = vdwg.mxu0
        %v2518 = vmul.f32 %v2510, 0.35355338
        %v2519 = vmul.f32 %v2515, 0.35355338
        %v2520 = vsel %vm722, %v2518, -inf
        %2521 = vmax.xlane.f32.xlu0 %v2520
        %v2522 = vpop.xlane.xlu0 %2521
        %v2523 = vsel %vm722, %v2519, -inf
        %2524 = vmax.xlane.f32.xlu0 %v2523
        %v2525 = vpop.xlane.xlu0 %2524
        %v2526 = vsub.f32 %v2518, %v2522
        %v2527 = vsub.f32 %v2519, %v2525
        %v2528 = vmul.f32 %v2526, 1.442695
        %v2529 = vpow.pop %v2528
        %v2530 = vmul.f32 %v2527, 1.442695
        %v2531 = vpow.pop %v2530
        %v2532 = vsel %vm722, %v2529, 0.0
        %2533 = vadd.xlane.f32.xlu0 %v2532
        %v2534 = vpop.xlane.xlu0 %2533
        %v2535 = vsel %vm722, %v2531, 0.0
        %2536 = vadd.xlane.f32.xlu0 %v2535
        %v2537 = vpop.xlane.xlu0 %2536
        %v2538 = vrcp.pop %v2534
        %v2539 = vmul.f32 %v2529, %v2538
        %v2540 = vrcp.pop %v2537
        %v2541 = vmul.f32 %v2531, %v2540
        %2542 = vrot.lane.b32.xlu0 %v1846, 72
        %v2543 = vpop.permute.xlu0 %2542
        %v2546 = vsel %vm722, %v2539, 0
        %v2549 = vsel %vm722, %v2541, 0
        %2551 = vmatprep.subr.mxu0 0.0
        %2552 = vmatpush1.msra.mxu0 0.0
        %2553 = vmatprep.subr.mxu0 0.0
        %2554 = vmatpush1.msra.mxu0 0.0
        %2555 = vmatprep.subr.mxu0 0.0
        %2556 = vmatpush1.msra.mxu0 0.0
        %2557 = vmatprep.subr.mxu0 0.0
        %2558 = vmatpush1.msra.mxu0 0.0
        %2559 = vmatprep.subr.mxu0 0.0
        %2560 = vmatpush1.msra.mxu0 0.0
        %2561 = vmatprep.subr.mxu0 0.0
        %2562 = vmatpush1.msra.mxu0 0.0
        %2563 = vmatprep.subr.mxu0 0.0
        %2564 = vmatpush1.msra.mxu0 0.0
        %2565 = vmatprep.subr.mxu0 0.0
        %2566 = vmatpush1.msra.mxu0 0.0
        %2567 = vmatprep.subr.mxu0 0.0
        %2568 = vmatpush1.msra.mxu0 0.0
        %2569 = vmatprep.subr.mxu0 0.0
        %2570 = vmatpush1.msra.mxu0 0.0
        %2571 = vmatprep.subr.mxu0 0.0
        %2572 = vmatpush1.msra.mxu0 0.0
        %2573 = vmatprep.subr.mxu0 0.0
        %2574 = vmatpush1.msra.mxu0 0.0
        %2575 = vmatprep.subr.mxu0 0.0
        %2576 = vmatpush1.msra.mxu0 0.0
        %2577 = vmatprep.subr.mxu0 0.0
        %2578 = vmatpush1.msra.mxu0 0.0
        %2579 = vmatprep.subr.mxu0 0.0
        %2580 = vmatpush1.msra.mxu0 0.0
        %2581 = vmatprep.subr.mxu0 0.0
        %2582 = vmatpush1.msra.mxu0 %v2543
        %2583 = vmatprep.subr.mxu0 0.0
        %2584 = vmatpush2.msra.mxu0 0.0
        %2585 = vmatprep.subr.mxu0 0.0
        %2586 = vmatpush2.msra.mxu0 0.0
        %2587 = vmatprep.subr.mxu0 0.0
        %2588 = vmatpush2.msra.mxu0 0.0
        %2589 = vmatprep.subr.mxu0 0.0
        %2590 = vmatpush2.msra.mxu0 0.0
        %2591 = vmatprep.subr.mxu0 0.0
        %2592 = vmatpush2.msra.mxu0 0.0
        %2593 = vmatprep.subr.mxu0 0.0
        %2594 = vmatpush2.msra.mxu0 0.0
        %2595 = vmatprep.subr.mxu0 0.0
        %2596 = vmatpush2.msra.mxu0 0.0
        %2597 = vmatprep.subr.mxu0 0.0
        %2598 = vmatpush2.msra.mxu0 0.0
        %2599 = vmatprep.subr.mxu0 0.0
        %2600 = vmatpush2.msra.mxu0 0.0
        %2601 = vmatprep.subr.mxu0 0.0
        %2602 = vmatpush2.msra.mxu0 0.0
        %2603 = vmatprep.subr.mxu0 0.0
        %2604 = vmatpush2.msra.mxu0 0.0
        %2605 = vmatprep.subr.mxu0 0.0
        %2606 = vmatpush2.msra.mxu0 0.0
        %2607 = vmatprep.subr.mxu0 0.0
        %2608 = vmatpush2.msra.mxu0 0.0
        %2609 = vmatprep.subr.mxu0 0.0
        %2610 = vmatpush2.msra.mxu0 0.0
        %2611 = vmatprep.subr.mxu0 0.0
        %2612 = vmatpush2.msra.mxu0 0.0
        %2613 = vmatprep.subr.mxu0 0.0
        %2614 = vmatpush2.msra.mxu0 0.0
        %2615 = vmatprep.mubr.f32.mxu0 0.0
        %2616 = vmatmul.mubr.f32.gmra.mxu0 %v2546
        %v2617 = vpop.f32.mrf.mxu0
        %v2618 = vadd.f32 0.0, %v2617
        %v2619 = vpop.f32.mrf.mxu0
        %2620 = vmatprep.mubr.f32.mxu0 0.0
        %2621 = vmatmul.mubr.f32.gmra.mxu0 %v2549
        %v2622 = vpop.f32.mrf.mxu0
        %v2623 = vadd.f32 0.0, %v2622
        %v2624 = vpop.f32.mrf.mxu0
        %2625 = vdwg.mxu0
        %2628 = vrot.lane.b32.xlu0 %v2228, 8
        %v2629 = vpop.permute.xlu0 %2628
        %2630 = vrot.lane.b32.xlu0 %v2233, 8
        %v2631 = vpop.permute.xlu0 %2630
        %2636 = vrot.lane.b32.xlu0 %v2423, 16
        %v2637 = vpop.permute.xlu0 %2636
        %2638 = vrot.lane.b32.xlu0 %v2428, 16
        %v2639 = vpop.permute.xlu0 %2638
        %2644 = vrot.lane.b32.xlu0 %v2618, 24
        %v2645 = vpop.permute.xlu0 %2644
        %2646 = vrot.lane.b32.xlu0 %v2623, 24
        %v2647 = vpop.permute.xlu0 %2646
        %v2650 = vsel %vm722, %v2033, %v2629
        %v2651 = vsel %vm722, %v2038, %v2631
        %v2652 = vsel %vm808, %v2650, %v2637
        %v2653 = vsel %vm808, %v2651, %v2639
        %v2654 = vsel %vm1552, %v2652, %v2645
        %v2655 = vsel %vm1552, %v2653, %v2647
        %v2656 = vld [vmem:[#allocation10] sm:$0xff]
        %v2657 = vld [vmem:[#allocation10 + $0x8] sm:$0xff]
        %v2658 = vld [vmem:[#allocation10 + $0x10] sm:$0xff]
        %v2659 = vld [vmem:[#allocation10 + $0x18] sm:$0xff]
        %v2661 = vsel %vm591, %v2654, 0
        %v2664 = vsel %vm591, %v2655, 0
        %2666 = vmatprep.subr.mxu0 0.0
        %2667 = vmatpush1.msra.mxu0 0.0
        %2668 = vmatprep.subr.mxu0 0.0
        %2669 = vmatpush1.msra.mxu0 0.0
        %2670 = vmatprep.subr.mxu0 0.0
        %2671 = vmatpush1.msra.mxu0 0.0
        %2672 = vmatprep.subr.mxu0 0.0
        %2673 = vmatpush1.msra.mxu0 0.0
        %2674 = vmatprep.subr.mxu0 0.0
        %2675 = vmatpush1.msra.mxu0 0.0
        %2676 = vmatprep.subr.mxu0 0.0
        %2677 = vmatpush1.msra.mxu0 0.0
        %2678 = vmatprep.subr.mxu0 0.0
        %2679 = vmatpush1.msra.mxu0 0.0
        %2680 = vmatprep.subr.mxu0 0.0
        %2681 = vmatpush1.msra.mxu0 0.0
        %2682 = vmatprep.subr.mxu0 0.0
        %2683 = vmatpush1.msra.mxu0 0.0
        %2684 = vmatprep.subr.mxu0 0.0
        %2685 = vmatpush1.msra.mxu0 0.0
        %2686 = vmatprep.subr.mxu0 0.0
        %2687 = vmatpush1.msra.mxu0 0.0
        %2688 = vmatprep.subr.mxu0 0.0
        %2689 = vmatpush1.msra.mxu0 0.0
        %2690 = vmatprep.subr.mxu0 0.0
        %2691 = vmatpush1.msra.mxu0 %v2659
        %2692 = vmatprep.subr.mxu0 0.0
        %2693 = vmatpush1.msra.mxu0 %v2658
        %2694 = vmatprep.subr.mxu0 0.0
        %2695 = vmatpush1.msra.mxu0 %v2657
        %2696 = vmatprep.subr.mxu0 0.0
        %2697 = vmatpush1.msra.mxu0 %v2656
        %2698 = vmatprep.subr.mxu0 0.0
        %2699 = vmatpush2.msra.mxu0 0.0
        %2700 = vmatprep.subr.mxu0 0.0
        %2701 = vmatpush2.msra.mxu0 0.0
        %2702 = vmatprep.subr.mxu0 0.0
        %2703 = vmatpush2.msra.mxu0 0.0
        %2704 = vmatprep.subr.mxu0 0.0
        %2705 = vmatpush2.msra.mxu0 0.0
        %2706 = vmatprep.subr.mxu0 0.0
        %2707 = vmatpush2.msra.mxu0 0.0
        %2708 = vmatprep.subr.mxu0 0.0
        %2709 = vmatpush2.msra.mxu0 0.0
        %2710 = vmatprep.subr.mxu0 0.0
        %2711 = vmatpush2.msra.mxu0 0.0
        %2712 = vmatprep.subr.mxu0 0.0
        %2713 = vmatpush2.msra.mxu0 0.0
        %2714 = vmatprep.subr.mxu0 0.0
        %2715 = vmatpush2.msra.mxu0 0.0
        %2716 = vmatprep.subr.mxu0 0.0
        %2717 = vmatpush2.msra.mxu0 0.0
        %2718 = vmatprep.subr.mxu0 0.0
        %2719 = vmatpush2.msra.mxu0 0.0
        %2720 = vmatprep.subr.mxu0 0.0
        %2721 = vmatpush2.msra.mxu0 0.0
        %2722 = vmatprep.subr.mxu0 0.0
        %2723 = vmatpush2.msra.mxu0 0.0
        %2724 = vmatprep.subr.mxu0 0.0
        %2725 = vmatpush2.msra.mxu0 0.0
        %2726 = vmatprep.subr.mxu0 0.0
        %2727 = vmatpush2.msra.mxu0 0.0
        %2728 = vmatprep.subr.mxu0 0.0
        %2729 = vmatpush2.msra.mxu0 0.0
        %2730 = vmatprep.mubr.f32.mxu0 0.0
        %2731 = vmatmul.mubr.f32.gmra.mxu0 %v2661
        %v2732 = vpop.f32.mrf.mxu0
        %v2733 = vadd.f32 0.0, %v2732
        %v2734 = vpop.f32.mrf.mxu0
        %2735 = vmatprep.mubr.f32.mxu0 0.0
        %2736 = vmatmul.mubr.f32.gmra.mxu0 %v2664
        %v2737 = vpop.f32.mrf.mxu0
        %v2738 = vadd.f32 0.0, %v2737
        %v2739 = vpop.f32.mrf.mxu0
        %2740 = vdwg.mxu0
        %v2741 = vadd.f32 %v1649, %v2733
        %v2742 = vadd.f32 %v1650, %v2738
        %v2743 = vld [vmem:[%s10] sm:$0x1]
        %v2745 = vlaneseq
        %v2746 = vshrl.u32 %v2745, 7
        %v2747 = vsub.s32 0, %v2746
        %v2748 = vrot.slane %v2743, %v2747
        %v2750 = vadd.f32 %v2741, %v2748
        %v2751 = vadd.f32 %v2742, %v2748
        %v2752 = vsel %vm591, %v2750, 0.0
        %2753 = vadd.xlane.f32.xlu0 %v2752
        %v2754 = vpop.xlane.xlu0 %2753
        %v2755 = vsel %vm591, %v2751, 0.0
        %2756 = vadd.xlane.f32.xlu0 %v2755
        %v2757 = vpop.xlane.xlu0 %2756
        %v2758 = vmul.f32 %v2754, %v598
        %v2759 = vmul.f32 %v2757, %v598
        %v2760 = vsub.f32 %v2750, %v2758
        %v2761 = vsub.f32 %v2751, %v2759
        %v2762 = vmul.f32 %v2760, %v2760
        %v2763 = vmul.f32 %v2761, %v2761
        %v2764 = vsel %vm591, %v2762, 0.0
        %2765 = vadd.xlane.f32.xlu0 %v2764
        %v2766 = vpop.xlane.xlu0 %2765
        %v2767 = vsel %vm591, %v2763, 0.0
        %2768 = vadd.xlane.f32.xlu0 %v2767
        %v2769 = vpop.xlane.xlu0 %2768
        %v2770 = vmul.f32 %v2766, %v598
        %v2771 = vmul.f32 %v2769, %v598
        %v2772 = vadd.f32 %v2770, 1e-05
        %v2773 = vadd.f32 %v2771, 1e-05
        %v2774 = vrsqrt.pop %v2772
        %v2775 = vrsqrt.pop %v2773
        %v2776 = vmul.f32 %v2760, %v2774
        %v2777 = vmul.f32 %v2761, %v2775
        %v2778 = vlaneseq
        %v2779 = vshrl.u32 %v2778, 7
        %v2780 = vsub.s32 2, %v2779
        %v2781 = vrot.slane %v589, %v2780
        %v2782 = vmul.f32 %v2776, %v2781
        %v2783 = vmul.f32 %v2777, %v2781
        %v2784 = vlaneseq
        %v2785 = vshrl.u32 %v2784, 7
        %v2786 = vsub.s32 2, %v2785
        %v2787 = vrot.slane %v590, %v2786
        %v2788 = vadd.f32 %v2782, %v2787
        %v2789 = vadd.f32 %v2783, %v2787
        %v2790 = vld [vmem:[%s11] sm:$0xff]
        %v2791 = vld [vmem:[%s11 + $0x8] sm:$0xff]
        %v2792 = vld [vmem:[%s11 + $0x10] sm:$0xff]
        %v2793 = vld [vmem:[%s11 + $0x18] sm:$0xff]
        %v2794 = vld [vmem:[%s11 + $0x20] sm:$0xff]
        %v2795 = vld [vmem:[%s11 + $0x28] sm:$0xff]
        %v2796 = vld [vmem:[%s11 + $0x30] sm:$0xff]
        %v2797 = vld [vmem:[%s11 + $0x38] sm:$0xff]
        %v2798 = vld [vmem:[%s12] sm:$0x3]
        %v2800 = vlaneseq
        %v2801 = vshrl.u32 %v2800, 7
        %v2802 = vsub.s32 0, %v2801
        %v2803 = vrot.slane %v2798, %v2802
        %v2804 = vlaneseq
        %v2805 = vshrl.u32 %v2804, 7
        %v2806 = vsub.s32 1, %v2805
        %v2807 = vrot.slane %v2798, %v2806
        %v2811 = vsel %vm591, %v2788, 0
        %v2814 = vsel %vm591, %v2789, 0
        %2816 = vmatprep.subr.mxu0 0.0
        %2817 = vmatpush1.msra.mxu0 0.0
        %2818 = vmatprep.subr.mxu0 0.0
        %2819 = vmatpush1.msra.mxu0 0.0
        %2820 = vmatprep.subr.mxu0 0.0
        %2821 = vmatpush1.msra.mxu0 0.0
        %2822 = vmatprep.subr.mxu0 0.0
        %2823 = vmatpush1.msra.mxu0 0.0
        %2824 = vmatprep.subr.mxu0 0.0
        %2825 = vmatpush1.msra.mxu0 0.0
        %2826 = vmatprep.subr.mxu0 0.0
        %2827 = vmatpush1.msra.mxu0 0.0
        %2828 = vmatprep.subr.mxu0 0.0
        %2829 = vmatpush1.msra.mxu0 0.0
        %2830 = vmatprep.subr.mxu0 0.0
        %2831 = vmatpush1.msra.mxu0 0.0
        %2832 = vmatprep.subr.mxu0 0.0
        %2833 = vmatpush1.msra.mxu0 0.0
        %2834 = vmatprep.subr.mxu0 0.0
        %2835 = vmatpush1.msra.mxu0 0.0
        %2836 = vmatprep.subr.mxu0 0.0
        %2837 = vmatpush1.msra.mxu0 0.0
        %2838 = vmatprep.subr.mxu0 0.0
        %2839 = vmatpush1.msra.mxu0 0.0
        %2840 = vmatprep.subr.mxu0 %v2797
        %2841 = vmatpush1.msra.mxu0 %v2796
        %2842 = vmatprep.subr.mxu0 %v2795
        %2843 = vmatpush1.msra.mxu0 %v2794
        %2844 = vmatprep.subr.mxu0 %v2793
        %2845 = vmatpush1.msra.mxu0 %v2792
        %2846 = vmatprep.subr.mxu0 %v2791
        %2847 = vmatpush1.msra.mxu0 %v2790
        %2848 = vmatprep.subr.mxu0 0.0
        %2849 = vmatpush2.msra.mxu0 0.0
        %2850 = vmatprep.subr.mxu0 0.0
        %2851 = vmatpush2.msra.mxu0 0.0
        %2852 = vmatprep.subr.mxu0 0.0
        %2853 = vmatpush2.msra.mxu0 0.0
        %2854 = vmatprep.subr.mxu0 0.0
        %2855 = vmatpush2.msra.mxu0 0.0
        %2856 = vmatprep.subr.mxu0 0.0
        %2857 = vmatpush2.msra.mxu0 0.0
        %2858 = vmatprep.subr.mxu0 0.0
        %2859 = vmatpush2.msra.mxu0 0.0
        %2860 = vmatprep.subr.mxu0 0.0
        %2861 = vmatpush2.msra.mxu0 0.0
        %2862 = vmatprep.subr.mxu0 0.0
        %2863 = vmatpush2.msra.mxu0 0.0
        %2864 = vmatprep.subr.mxu0 0.0
        %2865 = vmatpush2.msra.mxu0 0.0
        %2866 = vmatprep.subr.mxu0 0.0
        %2867 = vmatpush2.msra.mxu0 0.0
        %2868 = vmatprep.subr.mxu0 0.0
        %2869 = vmatpush2.msra.mxu0 0.0
        %2870 = vmatprep.subr.mxu0 0.0
        %2871 = vmatpush2.msra.mxu0 0.0
        %2872 = vmatprep.subr.mxu0 0.0
        %2873 = vmatpush2.msra.mxu0 0.0
        %2874 = vmatprep.subr.mxu0 0.0
        %2875 = vmatpush2.msra.mxu0 0.0
        %2876 = vmatprep.subr.mxu0 0.0
        %2877 = vmatpush2.msra.mxu0 0.0
        %2878 = vmatprep.subr.mxu0 0.0
        %2879 = vmatpush2.msra.mxu0 0.0
        %2880 = vmatprep.mubr.f32.mxu0 0.0
        %2881 = vmatmul.mubr.f32.gmra.mxu0 %v2811
        %v2882 = vpop.f32.mrf.mxu0
        %v2883 = vadd.f32 %v2803, %v2882
        %v2884 = vpop.f32.mrf.mxu0
        %v2885 = vadd.f32 %v2807, %v2884
        %2886 = vmatprep.mubr.f32.mxu0 0.0
        %2887 = vmatmul.mubr.f32.gmra.mxu0 %v2814
        %v2888 = vpop.f32.mrf.mxu0
        %v2889 = vadd.f32 %v2803, %v2888
        %v2890 = vpop.f32.mrf.mxu0
        %v2891 = vadd.f32 %v2807, %v2890
        %2892 = vdwg.mxu0
        %v2893 = vmul.f32 %v2885, 0.5
        %v2894 = vmul.f32 %v2891, 0.5
        %v2895 = vmul.f32 %v2885, 0.044715
        %v2896 = vmul.f32 %v2891, 0.044715
        %v2897 = vmul.f32 %v2895, %v2885
        %v2898 = vmul.f32 %v2896, %v2891
        %v2899 = vmul.f32 %v2897, %v2885
        %v2900 = vmul.f32 %v2898, %v2891
        %v2901 = vadd.f32 %v2885, %v2899
        %v2902 = vadd.f32 %v2891, %v2900
        %v2903 = vmul.f32 %v2901, 0.7978846
        %v2904 = vmul.f32 %v2902, 0.7978846
        %v2905 = vtanh.pop %v2903
        %v2906 = vtanh.pop %v2904
        %v2907 = vadd.f32 %v2905, 1.0
        %v2908 = vadd.f32 %v2906, 1.0
        %v2909 = vmul.f32 %v2893, %v2907
        %v2910 = vmul.f32 %v2894, %v2908
        %v2911 = vmul.f32 %v2883, %v2909
        %v2912 = vmul.f32 %v2889, %v2910
        %v2913 = vld [vmem:[%s13] sm:$0xff]
        %v2914 = vld [vmem:[%s13 + $0x8] sm:$0xff]
        %v2915 = vld [vmem:[%s13 + $0x10] sm:$0xff]
        %v2916 = vld [vmem:[%s13 + $0x18] sm:$0xff]
        %v2917 = vld [vmem:[%s13 + $0x20] sm:$0xff]
        %v2918 = vld [vmem:[%s13 + $0x28] sm:$0xff]
        %v2919 = vld [vmem:[%s13 + $0x30] sm:$0xff]
        %v2920 = vld [vmem:[%s13 + $0x38] sm:$0xff]
        %v2921 = vld [vmem:[%s13 + $0x40] sm:$0xff]
        %v2922 = vld [vmem:[%s13 + $0x48] sm:$0xff]
        %v2923 = vld [vmem:[%s13 + $0x50] sm:$0xff]
        %v2924 = vld [vmem:[%s13 + $0x58] sm:$0xff]
        %v2925 = vld [vmem:[%s13 + $0x60] sm:$0xff]
        %v2926 = vld [vmem:[%s13 + $0x68] sm:$0xff]
        %v2927 = vld [vmem:[%s13 + $0x70] sm:$0xff]
        %v2928 = vld [vmem:[%s13 + $0x78] sm:$0xff]
        %2929 = vmatprep.subr.mxu0 0.0
        %2930 = vmatpush1.msra.mxu0 %v2928
        %2931 = vmatprep.subr.mxu0 0.0
        %2932 = vmatpush1.msra.mxu0 %v2927
        %2933 = vmatprep.subr.mxu0 0.0
        %2934 = vmatpush1.msra.mxu0 %v2926
        %2935 = vmatprep.subr.mxu0 0.0
        %2936 = vmatpush1.msra.mxu0 %v2925
        %2937 = vmatprep.subr.mxu0 0.0
        %2938 = vmatpush1.msra.mxu0 %v2924
        %2939 = vmatprep.subr.mxu0 0.0
        %2940 = vmatpush1.msra.mxu0 %v2923
        %2941 = vmatprep.subr.mxu0 0.0
        %2942 = vmatpush1.msra.mxu0 %v2922
        %2943 = vmatprep.subr.mxu0 0.0
        %2944 = vmatpush1.msra.mxu0 %v2921
        %2945 = vmatprep.subr.mxu0 0.0
        %2946 = vmatpush1.msra.mxu0 %v2920
        %2947 = vmatprep.subr.mxu0 0.0
        %2948 = vmatpush1.msra.mxu0 %v2919
        %2949 = vmatprep.subr.mxu0 0.0
        %2950 = vmatpush1.msra.mxu0 %v2918
        %2951 = vmatprep.subr.mxu0 0.0
        %2952 = vmatpush1.msra.mxu0 %v2917
        %2953 = vmatprep.subr.mxu0 0.0
        %2954 = vmatpush1.msra.mxu0 %v2916
        %2955 = vmatprep.subr.mxu0 0.0
        %2956 = vmatpush1.msra.mxu0 %v2915
        %2957 = vmatprep.subr.mxu0 0.0
        %2958 = vmatpush1.msra.mxu0 %v2914
        %2959 = vmatprep.subr.mxu0 0.0
        %2960 = vmatpush1.msra.mxu0 %v2913
        %2961 = vmatprep.subr.mxu0 0.0
        %2962 = vmatpush2.msra.mxu0 0.0
        %2963 = vmatprep.subr.mxu0 0.0
        %2964 = vmatpush2.msra.mxu0 0.0
        %2965 = vmatprep.subr.mxu0 0.0
        %2966 = vmatpush2.msra.mxu0 0.0
        %2967 = vmatprep.subr.mxu0 0.0
        %2968 = vmatpush2.msra.mxu0 0.0
        %2969 = vmatprep.subr.mxu0 0.0
        %2970 = vmatpush2.msra.mxu0 0.0
        %2971 = vmatprep.subr.mxu0 0.0
        %2972 = vmatpush2.msra.mxu0 0.0
        %2973 = vmatprep.subr.mxu0 0.0
        %2974 = vmatpush2.msra.mxu0 0.0
        %2975 = vmatprep.subr.mxu0 0.0
        %2976 = vmatpush2.msra.mxu0 0.0
        %2977 = vmatprep.subr.mxu0 0.0
        %2978 = vmatpush2.msra.mxu0 0.0
        %2979 = vmatprep.subr.mxu0 0.0
        %2980 = vmatpush2.msra.mxu0 0.0
        %2981 = vmatprep.subr.mxu0 0.0
        %2982 = vmatpush2.msra.mxu0 0.0
        %2983 = vmatprep.subr.mxu0 0.0
        %2984 = vmatpush2.msra.mxu0 0.0
        %2985 = vmatprep.subr.mxu0 0.0
        %2986 = vmatpush2.msra.mxu0 0.0
        %2987 = vmatprep.subr.mxu0 0.0
        %2988 = vmatpush2.msra.mxu0 0.0
        %2989 = vmatprep.subr.mxu0 0.0
        %2990 = vmatpush2.msra.mxu0 0.0
        %2991 = vmatprep.subr.mxu0 0.0
        %2992 = vmatpush2.msra.mxu0 0.0
        %2993 = vmatprep.mubr.f32.mxu0 0.0
        %2994 = vmatmul.mubr.f32.gmra.mxu0 %v2911
        %v2995 = vpop.f32.mrf.mxu0
        %v2996 = vadd.f32 0.0, %v2995
        %v2997 = vpop.f32.mrf.mxu0
        %2998 = vmatprep.mubr.f32.mxu0 0.0
        %2999 = vmatmul.mubr.f32.gmra.mxu0 %v2912
        %v3000 = vpop.f32.mrf.mxu0
        %v3001 = vadd.f32 0.0, %v3000
        %v3002 = vpop.f32.mrf.mxu0
        %3003 = vdwg.mxu0
        %v3004 = vadd.f32 %v2750, %v2996
        %v3005 = vadd.f32 %v2751, %v3001
        %v3006 = vld [vmem:[%s14] sm:$0x1]
        %v3008 = vlaneseq
        %v3009 = vshrl.u32 %v3008, 7
        %v3010 = vsub.s32 0, %v3009
        %v3011 = vrot.slane %v3006, %v3010
        %v3013 = vadd.f32 %v3004, %v3011
        %v3014 = vadd.f32 %v3005, %v3011
        %3015 = vst.msk [vmem:[%s580] sm:$0xff] %vm591, %v3013
        %3016 = vst.msk [vmem:[%s580 + $0x8] sm:$0xff] %vm591, %v3014
        %s3017 = sand.u32 %s367, 1
        %s3018 = scalar_lea.sflag [#allocation4], %s3017
        %s3019 = sand.u32 %s367, 1
        %s3020 = smul.addr %s3019, 16
        %s3021 = scalar_lea.vmem [#allocation11], %s3020
        // Predicated region
        $region101: #{tpu_custom_call.1} parent=79 // pred_check
          %p3022 = pneg %p377
        $region102: #{tpu_custom_call.1} parent=79 // pred_check_branch
          %3024 = sbr.rel (%p3022) target = $region104
        $region103: #{tpu_custom_call.1} parent=79 // pred_region
          %s3026 = ssub.s32 256, 256
          %3027 = vsyncadd %s3018, %s3026
          %s3028 = smul.addr %s34, 2
          %s3029 = smul.addr %s3028, 128
          %s3030 = scalar_lea.hbm %s15, %s3029
          %s3031 = sshll.u32 %s3021, 4
          %s3032 = int_to_ptr.vmem [resolvable:$true] %s3031
          %3037 = dma.vmem_to_hbm [thread:$0]  %s3032, 256, %s3030, %s3018, 128, 128, 8
        $region104: #{tpu_custom_call.1} parent=79 // pred_fallthru
          _
      $region80: #{tpu_custom_call.1} parent=5 // pred_fallthru
        _
      %p3038 = scmp.le.s32.totalorder 2, %s29
      // Predicated region
      $region105: #{tpu_custom_call.1} parent=5 // pred_check
        %p3039 = pneg %p3038
      $region106: #{tpu_custom_call.1} parent=5 // pred_check_branch
        %3041 = sbr.rel (%p3039) target = $region108
      $region107: #{tpu_custom_call.1} parent=5 // pred_region
        %s3042 = ssub.s32 %s29, 2
        // Predicated region
        $region109: #{tpu_custom_call.1} parent=107 // pred_check
          %p3043 = pneg %p383
        $region110: #{tpu_custom_call.1} parent=107 // pred_check_branch
          %3045 = sbr.rel (%p3043) target = $region112
        $region111: #{tpu_custom_call.1} parent=107 // pred_region
          %s3046 = sand.u32 %s368, 1
          %s3047 = scalar_lea.sflag [#allocation4], %s3046
          %s3048 = sand.u32 %s368, 1
          %s3049 = smul.addr %s3048, 16
          %s3050 = scalar_lea.vmem [#allocation11], %s3049
          %3051 = dma.done %s3047, 256
        $region112: #{tpu_custom_call.1} parent=107 // pred_fallthru
          _
      $region108: #{tpu_custom_call.1} parent=5 // pred_fallthru
        _
    $region6: #{tpu_custom_call.1} parent=1 // loop_footer
      %s33 = sadd.s32 1, %s29
    $region7: #{tpu_custom_call.1} parent=1 // loop_footer_branch
      %28 = sbr.rel target = $region3
    $region8: #{tpu_custom_call.1} parent=1 // loop_exit
      _
    %3052 = vsyncpa [#allocation3], 1
    %s3053 = scalar_lea.sflag [#allocation3], 1
    %3054 = vsyncpa %s3053, 1
    %3055 = vsyncpa [#allocation6], 1
    %3056 = vsyncpa [#allocation9], 1
    %3057 = vsyncpa [#allocation4], 1
    %s3058 = scalar_lea.sflag [#allocation4], 1
    %3059 = vsyncpa %s3058, 1

</llo_original>
